<compile_context>
chip_gen: v7x
topology: tpu7x:2x2x1
jax: 0.10.0
libtpu: 0.0.40
codegen_flags: <defaults>
</compile_context>

<pallas_src>
import jax
import jax.numpy as jnp
from jax.experimental import pallas as pl
from jax.experimental.pallas import tpu as pltpu

_EPS = 1e-5
_PREC = jax.lax.Precision.HIGHEST


def _basic_block_kernel(x_ref, b1_ref, b2_ref, g1_ref, be1_ref,
                        g2_ref, be2_ref, p_ref, out_ref):
    H, L = x_ref.shape                                  # rows = H, lanes = N*W*C
    row = jax.lax.broadcasted_iota(jnp.int32, (H, L), 0)
    not_top = row > 0                                   # kill wrapped row for kh=0
    not_bot = row < H - 1                               # kill wrapped row for kh=2

    def conv3x3(x, b_ref):
        # 3 MXU dots (one per kh). kw taps, zero padding and the per-image
        # block structure live inside the (L, L) Toeplitz weights, so there is
        # no padded scratch and no slice+reshape copies; row shifts go through
        # the XLU (pltpu.roll) with a VPU row mask for the image boundary.
        x_up = jnp.where(not_top, pltpu.roll(x, shift=1, axis=0), 0.0)      # x[h-1]
        x_dn = jnp.where(not_bot, pltpu.roll(x, shift=H - 1, axis=0), 0.0)  # x[h+1]
        out = jnp.dot(x_up, b_ref[0], precision=_PREC,
                      preferred_element_type=jnp.float32)
        out = out + jnp.dot(x, b_ref[1], precision=_PREC,
                            preferred_element_type=jnp.float32)
        out = out + jnp.dot(x_dn, b_ref[2], precision=_PREC,
                            preferred_element_type=jnp.float32)
        return out

    def batchnorm(y, g_ref, be_ref):
        # Training-mode BN folded to one per-lane multiply-add. Per-channel
        # batch stats are gathered with a SINGLE fused same-channel projection
        # matmul ([sum; sum_sq] @ P); P is pre-scaled by 1/(N*H*W) upstream.
        csum = jnp.sum(y, axis=0, keepdims=True)                  # (1, L)
        csq = jnp.sum(y * y, axis=0, keepdims=True)               # (1, L)
        two = jax.lax.broadcasted_iota(jnp.int32, (2, L), 0)
        stats = jnp.where(two == 0, csum, csq)                    # (2, L)
        proj = jnp.dot(stats, p_ref[...], precision=_PREC,
                       preferred_element_type=jnp.float32)        # (2, L)
        mean = proj[0:1, :]
        var = jnp.maximum(proj[1:2, :] - mean * mean, 0.0)        # cancellation guard
        scale = g_ref[...] * jax.lax.rsqrt(var + _EPS)
        shift = be_ref[...] - mean * scale
        return y * scale + shift

    x = x_ref[...]
    # conv1 -> bn1 -> relu
    y1 = jnp.maximum(batchnorm(conv3x3(x, b1_ref), g1_ref, be1_ref), 0.0)
    # conv2 -> bn2
    y2 = batchnorm(conv3x3(y1, b2_ref), g2_ref, be2_ref)
    # residual add + relu (lane-dense, full-width unmasked store)
    out_ref[...] = jnp.maximum(y2 + x, 0.0).astype(out_ref.dtype)


def _toeplitz_conv_weights(w_oihw, width, n_batch):
    """3x3 OIHW conv weight -> B[kh] of shape (N*W*Ci, N*W*Co).

    Block-diagonal per image, Toeplitz in kw with out-of-range taps zeroed
    (the zero padding along W is folded into the weights)."""
    co_n, ci_n = int(w_oihw.shape[0]), int(w_oihw.shape[1])
    w_hwio = jnp.transpose(w_oihw, (2, 3, 1, 0))            # (3, 3, Ci, Co)
    li = n_batch * width * ci_n
    lj = n_batch * width * co_n
    i = jnp.arange(li)
    j = jnp.arange(lj)
    ni, wi, ci = i // (width * ci_n), (i // ci_n) % width, i % ci_n
    nj, wj, co = j // (width * co_n), (j // co_n) % width, j % co_n
    kw = wi[:, None] - wj[None, :] + 1                      # input col = out col + kw - 1
    valid = (kw >= 0) & (kw <= 2) & (ni[:, None] == nj[None, :])
    kw_c = jnp.clip(kw, 0, 2)
    ci_b = jnp.broadcast_to(ci[:, None], kw.shape)
    co_b = jnp.broadcast_to(co[None, :], kw.shape)
    b = jnp.where(valid[None, :, :], w_hwio[:, kw_c, ci_b, co_b], 0.0)
    return b.astype(jnp.float32)                            # (3, li, lj)


def _full_spec(shape):
    n = len(shape)
    return pl.BlockSpec(shape, lambda i, n=n: (0,) * n)


@jax.jit
def basic_block_forward(x_nchw, w1_oihw, g1, b1, w2_oihw, g2, b2):
    """x_nchw: (N, C, H, W) float32, PyTorch layout. Returns NCHW."""
    N, C, H, W = x_nchw.shape
    L = N * W * C                                            # 128 at toy size

    # Lane-dense slab: row = h, lane = n*W*C + w*C + c.
    x_rows = jnp.transpose(x_nchw, (2, 0, 3, 1)).reshape(H, L)

    b1_toe = _toeplitz_conv_weights(w1_oihw, W, N)           # (3, L, L)
    b2_toe = _toeplitz_conv_weights(w2_oihw, W, N)

    # Per-lane BN affine params (lane l -> channel l % C).
    g1_l = jnp.tile(g1, N * W).reshape(1, L)
    be1_l = jnp.tile(b1, N * W).reshape(1, L)
    g2_l = jnp.tile(g2, N * W).reshape(1, L)
    be2_l = jnp.tile(b2, N * W).reshape(1, L)

    # Same-channel projection, pre-scaled by 1/(N*H*W) so the kernel does no
    # extra scaling (1/512 is a power of two -> exact).
    inv_count = 1.0 / float(N * H * W)
    lane = jnp.arange(L)
    p_scaled = ((lane[:, None] % C) == (lane[None, :] % C)).astype(jnp.float32) \
        * inv_count

    out_rows = pl.pallas_call(
        _basic_block_kernel,
        out_shape=jax.ShapeDtypeStruct((H, L), jnp.float32),
        grid=(1,),
        in_specs=[
            _full_spec((H, L)),
            _full_spec(b1_toe.shape),
            _full_spec(b2_toe.shape),
            _full_spec((1, L)), _full_spec((1, L)),
            _full_spec((1, L)), _full_spec((1, L)),
            _full_spec((L, L)),
        ],
        out_specs=_full_spec((H, L)),
        compiler_params=pltpu.CompilerParams(
            dimension_semantics=("arbitrary",)),
    )(x_rows, b1_toe, b2_toe, g1_l, be1_l, g2_l, be2_l, p_scaled)

    # TODO(synk): at production sizes, band-split H on a leading "parallel"
    # grid axis (v7x 2 TCs) with two-pass BN stats, cast conv operands to bf16
    # on v6e/v7x, and band the Toeplitz weights per W-tile to respect v7x's
    # 64 MiB VMEM; at this ~8 KiB problem size one grid step is fastest.
    return jnp.transpose(out_rows.reshape(H, N, W, C), (1, 3, 0, 2))


# ------------------------- pure-JAX reference --------------------------------
def _reference(x_nchw, w1, g1, b1, w2, g2, b2):
    def conv(x, w):
        return jax.lax.conv_general_dilated(
            x, w, window_strides=(1, 1), padding=((1, 1), (1, 1)),
            dimension_numbers=("NCHW", "OIHW", "NCHW"), precision=_PREC)

    def bn(y, g, b):
        mean = jnp.mean(y, axis=(0, 2, 3), keepdims=True)
        var = jnp.mean((y - mean) ** 2, axis=(0, 2, 3), keepdims=True)
        return (y - mean) * jax.lax.rsqrt(var + _EPS) * g.reshape(1, -1, 1, 1) \
            + b.reshape(1, -1, 1, 1)

    out = jax.nn.relu(bn(conv(x_nchw, w1), g1, b1))
    out = bn(conv(out, w2), g2, b2)
    return jax.nn.relu(out + x_nchw)


if __name__ == "__main__":
    key = jax.random.PRNGKey(0)
    k_x, k_w1, k_w2, k_g1, k_b1, k_g2, k_b2 = jax.random.split(key, 7)

    N, C, H, W = 2, 4, 16, 16          # inplanes = planes = 4, stride = 1
    x = jax.random.normal(k_x, (N, C, H, W), jnp.float32)

    w1 = jax.random.normal(k_w1, (C, C, 3, 3), jnp.float32) * 0.1   # conv1 OIHW
    w2 = jax.random.normal(k_w2, (C, C, 3, 3), jnp.float32) * 0.1   # conv2 OIHW
    g1 = 1.0 + 0.1 * jax.random.normal(k_g1, (C,), jnp.float32)     # bn1 weight
    b1 = 0.1 * jax.random.normal(k_b1, (C,), jnp.float32)           # bn1 bias
    g2 = 1.0 + 0.1 * jax.random.normal(k_g2, (C,), jnp.float32)     # bn2 weight
    b2 = 0.1 * jax.random.normal(k_b2, (C,), jnp.float32)           # bn2 bias

    out = basic_block_forward(x, w1, g1, b1, w2, g2, b2)
    out = jax.block_until_ready(out)

    ref = _reference(x, w1, g1, b1, w2, g2, b2)
    assert out.shape == (N, C, H, W)
    err = float(jnp.max(jnp.abs(out - ref)))
    assert jnp.allclose(out, ref, atol=2e-4, rtol=2e-4), err

    print("KERNEL_OK")
</pallas_src>

<mosaic_0001>
module attributes {stable_mosaic.version = 11 : i64} {
  func.func @_basic_block_kernel(%arg0: i32, %arg1: memref<16x128xf32, #tpu.memory_space<vmem>>, %arg2: memref<3x128x128xf32, #tpu.memory_space<vmem>>, %arg3: memref<3x128x128xf32, #tpu.memory_space<vmem>>, %arg4: memref<1x128xf32, #tpu.memory_space<vmem>>, %arg5: memref<1x128xf32, #tpu.memory_space<vmem>>, %arg6: memref<1x128xf32, #tpu.memory_space<vmem>>, %arg7: memref<1x128xf32, #tpu.memory_space<vmem>>, %arg8: memref<128x128xf32, #tpu.memory_space<vmem>>, %arg9: memref<16x128xf32, #tpu.memory_space<vmem>>) attributes {dimension_semantics = [#tpu.dimension_semantics<arbitrary>], iteration_bounds = array<i64: 1>, scalar_prefetch = 0 : i64, scratch_operands = 0 : i64, tpu.core_type = #tpu.core_type<tc>, window_params = [{pipeline_mode = #tpu.pipeline_mode<synchronous>, transform_indices = @transform_0, window_bounds = array<i64: 16, 128>}, {pipeline_mode = #tpu.pipeline_mode<synchronous>, transform_indices = @transform_1, window_bounds = array<i64: 3, 128, 128>}, {pipeline_mode = #tpu.pipeline_mode<synchronous>, transform_indices = @transform_2, window_bounds = array<i64: 3, 128, 128>}, {pipeline_mode = #tpu.pipeline_mode<synchronous>, transform_indices = @transform_3, window_bounds = array<i64: 1, 128>}, {pipeline_mode = #tpu.pipeline_mode<synchronous>, transform_indices = @transform_4, window_bounds = array<i64: 1, 128>}, {pipeline_mode = #tpu.pipeline_mode<synchronous>, transform_indices = @transform_5, window_bounds = array<i64: 1, 128>}, {pipeline_mode = #tpu.pipeline_mode<synchronous>, transform_indices = @transform_6, window_bounds = array<i64: 1, 128>}, {pipeline_mode = #tpu.pipeline_mode<synchronous>, transform_indices = @transform_7, window_bounds = array<i64: 128, 128>}, {pipeline_mode = #tpu.pipeline_mode<synchronous>, transform_indices = @transform_8, window_bounds = array<i64: 16, 128>}]} {
    %0 = tpu.iota {dimensions = array<i32: 0>} : vector<16x128xi32>
    %c0_i32 = arith.constant 0 : i32
    %1 = vector.broadcast %c0_i32 : i32 to vector<16x128xi32>
    %2 = arith.cmpi sgt, %0, %1 : vector<16x128xi32>
    %c15_i32 = arith.constant 15 : i32
    %3 = vector.broadcast %c15_i32 : i32 to vector<16x128xi32>
    %4 = arith.cmpi slt, %0, %3 : vector<16x128xi32>
    %c0 = arith.constant 0 : index
    %c0_0 = arith.constant 0 : index
    %5 = vector.load %arg1[%c0, %c0_0] : memref<16x128xf32, #tpu.memory_space<vmem>>, vector<16x128xf32>
    %c1_i32 = arith.constant 1 : i32
    %6 = tpu.dynamic_rotate %5 by %c1_i32 dim 0 : vector<16x128xf32>, i32 -> vector<16x128xf32>
    %cst = arith.constant 0.000000e+00 : f32
    %7 = vector.broadcast %cst : f32 to vector<16x128xf32>
    %8 = arith.select %2, %6, %7 : vector<16x128xi1>, vector<16x128xf32>
    %c15_i32_1 = arith.constant 15 : i32
    %9 = tpu.dynamic_rotate %5 by %c15_i32_1 dim 0 : vector<16x128xf32>, i32 -> vector<16x128xf32>
    %cst_2 = arith.constant 0.000000e+00 : f32
    %10 = vector.broadcast %cst_2 : f32 to vector<16x128xf32>
    %11 = arith.select %4, %9, %10 : vector<16x128xi1>, vector<16x128xf32>
    %c0_3 = arith.constant 0 : index
    %c0_4 = arith.constant 0 : index
    %c0_5 = arith.constant 0 : index
    %12 = vector.load %arg2[%c0_3, %c0_4, %c0_5] : memref<3x128x128xf32, #tpu.memory_space<vmem>>, vector<1x128x128xf32>
    %13 = vector.shape_cast %12 : vector<1x128x128xf32> to vector<128x128xf32>
    %cst_6 = arith.constant dense<0.000000e+00> : vector<16x128xf32>
    %14 = tpu.matmul %8, %13, %cst_6 {dimension_numbers = #tpu.dot_dimension_numbers<[1], [0], [0], [1], [0, 0, 1, 1], [], []>, precision = #tpu.contract_precision<fp32>} : vector<16x128xf32>, vector<128x128xf32>, vector<16x128xf32> -> vector<16x128xf32>
    %c1 = arith.constant 1 : index
    %c0_7 = arith.constant 0 : index
    %c0_8 = arith.constant 0 : index
    %15 = vector.load %arg2[%c1, %c0_7, %c0_8] : memref<3x128x128xf32, #tpu.memory_space<vmem>>, vector<1x128x128xf32>
    %16 = vector.shape_cast %15 : vector<1x128x128xf32> to vector<128x128xf32>
    %cst_9 = arith.constant dense<0.000000e+00> : vector<16x128xf32>
    %17 = tpu.matmul %5, %16, %cst_9 {dimension_numbers = #tpu.dot_dimension_numbers<[1], [0], [0], [1], [0, 0, 1, 1], [], []>, precision = #tpu.contract_precision<fp32>} : vector<16x128xf32>, vector<128x128xf32>, vector<16x128xf32> -> vector<16x128xf32>
    %18 = arith.addf %14, %17 : vector<16x128xf32>
    %c2 = arith.constant 2 : index
    %c0_10 = arith.constant 0 : index
    %c0_11 = arith.constant 0 : index
    %19 = vector.load %arg2[%c2, %c0_10, %c0_11] : memref<3x128x128xf32, #tpu.memory_space<vmem>>, vector<1x128x128xf32>
    %20 = vector.shape_cast %19 : vector<1x128x128xf32> to vector<128x128xf32>
    %cst_12 = arith.constant dense<0.000000e+00> : vector<16x128xf32>
    %21 = tpu.matmul %11, %20, %cst_12 {dimension_numbers = #tpu.dot_dimension_numbers<[1], [0], [0], [1], [0, 0, 1, 1], [], []>, precision = #tpu.contract_precision<fp32>} : vector<16x128xf32>, vector<128x128xf32>, vector<16x128xf32> -> vector<16x128xf32>
    %22 = arith.addf %18, %21 : vector<16x128xf32>
    %cst_13 = arith.constant dense<0.000000e+00> : vector<128xf32>
    %23 = vector.multi_reduction <add>, %22, %cst_13 [0] : vector<16x128xf32> to vector<128xf32>
    %24 = vector.shape_cast %23 : vector<128xf32> to vector<1x128xf32>
    %25 = arith.mulf %22, %22 : vector<16x128xf32>
    %cst_14 = arith.constant dense<0.000000e+00> : vector<128xf32>
    %26 = vector.multi_reduction <add>, %25, %cst_14 [0] : vector<16x128xf32> to vector<128xf32>
    %27 = vector.shape_cast %26 : vector<128xf32> to vector<1x128xf32>
    %28 = tpu.iota {dimensions = array<i32: 0>} : vector<2x128xi32>
    %c0_i32_15 = arith.constant 0 : i32
    %29 = vector.broadcast %c0_i32_15 : i32 to vector<2x128xi32>
    %30 = arith.cmpi eq, %28, %29 : vector<2x128xi32>
    %31 = vector.shape_cast %24 : vector<1x128xf32> to vector<1x128xf32>
    %32 = vector.broadcast %31 : vector<1x128xf32> to vector<2x128xf32>
    %33 = vector.shape_cast %27 : vector<1x128xf32> to vector<1x128xf32>
    %34 = vector.broadcast %33 : vector<1x128xf32> to vector<2x128xf32>
    %35 = arith.select %30, %32, %34 : vector<2x128xi1>, vector<2x128xf32>
    %c0_16 = arith.constant 0 : index
    %c0_17 = arith.constant 0 : index
    %36 = vector.load %arg8[%c0_16, %c0_17] : memref<128x128xf32, #tpu.memory_space<vmem>>, vector<128x128xf32>
    %cst_18 = arith.constant dense<0.000000e+00> : vector<2x128xf32>
    %37 = tpu.matmul %35, %36, %cst_18 {dimension_numbers = #tpu.dot_dimension_numbers<[1], [0], [0], [1], [0, 0, 1, 1], [], []>, precision = #tpu.contract_precision<fp32>} : vector<2x128xf32>, vector<128x128xf32>, vector<2x128xf32> -> vector<2x128xf32>
    %38 = vector.extract_strided_slice %37 {offsets = [0, 0], sizes = [1, 128], strides = [1, 1]} : vector<2x128xf32> to vector<1x128xf32>
    %39 = vector.extract_strided_slice %37 {offsets = [1, 0], sizes = [1, 128], strides = [1, 1]} : vector<2x128xf32> to vector<1x128xf32>
    %40 = arith.mulf %38, %38 : vector<1x128xf32>
    %41 = arith.subf %39, %40 : vector<1x128xf32>
    %cst_19 = arith.constant 0.000000e+00 : f32
    %42 = vector.broadcast %cst_19 : f32 to vector<1x128xf32>
    %43 = arith.maximumf %41, %42 : vector<1x128xf32>
    %c0_20 = arith.constant 0 : index
    %c0_21 = arith.constant 0 : index
    %44 = vector.load %arg4[%c0_20, %c0_21] : memref<1x128xf32, #tpu.memory_space<vmem>>, vector<1x128xf32>
    %cst_22 = arith.constant 9.99999974E-6 : f32
    %45 = vector.broadcast %cst_22 : f32 to vector<1x128xf32>
    %46 = arith.addf %43, %45 : vector<1x128xf32>
    %47 = math.rsqrt %46 : vector<1x128xf32>
    %48 = arith.mulf %44, %47 : vector<1x128xf32>
    %c0_23 = arith.constant 0 : index
    %c0_24 = arith.constant 0 : index
    %49 = vector.load %arg5[%c0_23, %c0_24] : memref<1x128xf32, #tpu.memory_space<vmem>>, vector<1x128xf32>
    %50 = arith.mulf %38, %48 : vector<1x128xf32>
    %51 = arith.subf %49, %50 : vector<1x128xf32>
    %52 = vector.broadcast %48 : vector<1x128xf32> to vector<16x128xf32>
    %53 = arith.mulf %22, %52 : vector<16x128xf32>
    %54 = vector.broadcast %51 : vector<1x128xf32> to vector<16x128xf32>
    %55 = arith.addf %53, %54 : vector<16x128xf32>
    %cst_25 = arith.constant 0.000000e+00 : f32
    %56 = vector.broadcast %cst_25 : f32 to vector<16x128xf32>
    %57 = arith.maximumf %55, %56 : vector<16x128xf32>
    %c1_i32_26 = arith.constant 1 : i32
    %58 = tpu.dynamic_rotate %57 by %c1_i32_26 dim 0 : vector<16x128xf32>, i32 -> vector<16x128xf32>
    %cst_27 = arith.constant 0.000000e+00 : f32
    %59 = vector.broadcast %cst_27 : f32 to vector<16x128xf32>
    %60 = arith.select %2, %58, %59 : vector<16x128xi1>, vector<16x128xf32>
    %c15_i32_28 = arith.constant 15 : i32
    %61 = tpu.dynamic_rotate %57 by %c15_i32_28 dim 0 : vector<16x128xf32>, i32 -> vector<16x128xf32>
    %cst_29 = arith.constant 0.000000e+00 : f32
    %62 = vector.broadcast %cst_29 : f32 to vector<16x128xf32>
    %63 = arith.select %4, %61, %62 : vector<16x128xi1>, vector<16x128xf32>
    %c0_30 = arith.constant 0 : index
    %c0_31 = arith.constant 0 : index
    %c0_32 = arith.constant 0 : index
    %64 = vector.load %arg3[%c0_30, %c0_31, %c0_32] : memref<3x128x128xf32, #tpu.memory_space<vmem>>, vector<1x128x128xf32>
    %65 = vector.shape_cast %64 : vector<1x128x128xf32> to vector<128x128xf32>
    %cst_33 = arith.constant dense<0.000000e+00> : vector<16x128xf32>
    %66 = tpu.matmul %60, %65, %cst_33 {dimension_numbers = #tpu.dot_dimension_numbers<[1], [0], [0], [1], [0, 0, 1, 1], [], []>, precision = #tpu.contract_precision<fp32>} : vector<16x128xf32>, vector<128x128xf32>, vector<16x128xf32> -> vector<16x128xf32>
    %c1_34 = arith.constant 1 : index
    %c0_35 = arith.constant 0 : index
    %c0_36 = arith.constant 0 : index
    %67 = vector.load %arg3[%c1_34, %c0_35, %c0_36] : memref<3x128x128xf32, #tpu.memory_space<vmem>>, vector<1x128x128xf32>
    %68 = vector.shape_cast %67 : vector<1x128x128xf32> to vector<128x128xf32>
    %cst_37 = arith.constant dense<0.000000e+00> : vector<16x128xf32>
    %69 = tpu.matmul %57, %68, %cst_37 {dimension_numbers = #tpu.dot_dimension_numbers<[1], [0], [0], [1], [0, 0, 1, 1], [], []>, precision = #tpu.contract_precision<fp32>} : vector<16x128xf32>, vector<128x128xf32>, vector<16x128xf32> -> vector<16x128xf32>
    %70 = arith.addf %66, %69 : vector<16x128xf32>
    %c2_38 = arith.constant 2 : index
    %c0_39 = arith.constant 0 : index
    %c0_40 = arith.constant 0 : index
    %71 = vector.load %arg3[%c2_38, %c0_39, %c0_40] : memref<3x128x128xf32, #tpu.memory_space<vmem>>, vector<1x128x128xf32>
    %72 = vector.shape_cast %71 : vector<1x128x128xf32> to vector<128x128xf32>
    %cst_41 = arith.constant dense<0.000000e+00> : vector<16x128xf32>
    %73 = tpu.matmul %63, %72, %cst_41 {dimension_numbers = #tpu.dot_dimension_numbers<[1], [0], [0], [1], [0, 0, 1, 1], [], []>, precision = #tpu.contract_precision<fp32>} : vector<16x128xf32>, vector<128x128xf32>, vector<16x128xf32> -> vector<16x128xf32>
    %74 = arith.addf %70, %73 : vector<16x128xf32>
    %cst_42 = arith.constant dense<0.000000e+00> : vector<128xf32>
    %75 = vector.multi_reduction <add>, %74, %cst_42 [0] : vector<16x128xf32> to vector<128xf32>
    %76 = vector.shape_cast %75 : vector<128xf32> to vector<1x128xf32>
    %77 = arith.mulf %74, %74 : vector<16x128xf32>
    %cst_43 = arith.constant dense<0.000000e+00> : vector<128xf32>
    %78 = vector.multi_reduction <add>, %77, %cst_43 [0] : vector<16x128xf32> to vector<128xf32>
    %79 = vector.shape_cast %78 : vector<128xf32> to vector<1x128xf32>
    %80 = tpu.iota {dimensions = array<i32: 0>} : vector<2x128xi32>
    %c0_i32_44 = arith.constant 0 : i32
    %81 = vector.broadcast %c0_i32_44 : i32 to vector<2x128xi32>
    %82 = arith.cmpi eq, %80, %81 : vector<2x128xi32>
    %83 = vector.shape_cast %76 : vector<1x128xf32> to vector<1x128xf32>
    %84 = vector.broadcast %83 : vector<1x128xf32> to vector<2x128xf32>
    %85 = vector.shape_cast %79 : vector<1x128xf32> to vector<1x128xf32>
    %86 = vector.broadcast %85 : vector<1x128xf32> to vector<2x128xf32>
    %87 = arith.select %82, %84, %86 : vector<2x128xi1>, vector<2x128xf32>
    %c0_45 = arith.constant 0 : index
    %c0_46 = arith.constant 0 : index
    %88 = vector.load %arg8[%c0_45, %c0_46] : memref<128x128xf32, #tpu.memory_space<vmem>>, vector<128x128xf32>
    %cst_47 = arith.constant dense<0.000000e+00> : vector<2x128xf32>
    %89 = tpu.matmul %87, %88, %cst_47 {dimension_numbers = #tpu.dot_dimension_numbers<[1], [0], [0], [1], [0, 0, 1, 1], [], []>, precision = #tpu.contract_precision<fp32>} : vector<2x128xf32>, vector<128x128xf32>, vector<2x128xf32> -> vector<2x128xf32>
    %90 = vector.extract_strided_slice %89 {offsets = [0, 0], sizes = [1, 128], strides = [1, 1]} : vector<2x128xf32> to vector<1x128xf32>
    %91 = vector.extract_strided_slice %89 {offsets = [1, 0], sizes = [1, 128], strides = [1, 1]} : vector<2x128xf32> to vector<1x128xf32>
    %92 = arith.mulf %90, %90 : vector<1x128xf32>
    %93 = arith.subf %91, %92 : vector<1x128xf32>
    %cst_48 = arith.constant 0.000000e+00 : f32
    %94 = vector.broadcast %cst_48 : f32 to vector<1x128xf32>
    %95 = arith.maximumf %93, %94 : vector<1x128xf32>
    %c0_49 = arith.constant 0 : index
    %c0_50 = arith.constant 0 : index
    %96 = vector.load %arg6[%c0_49, %c0_50] : memref<1x128xf32, #tpu.memory_space<vmem>>, vector<1x128xf32>
    %cst_51 = arith.constant 9.99999974E-6 : f32
    %97 = vector.broadcast %cst_51 : f32 to vector<1x128xf32>
    %98 = arith.addf %95, %97 : vector<1x128xf32>
    %99 = math.rsqrt %98 : vector<1x128xf32>
    %100 = arith.mulf %96, %99 : vector<1x128xf32>
    %c0_52 = arith.constant 0 : index
    %c0_53 = arith.constant 0 : index
    %101 = vector.load %arg7[%c0_52, %c0_53] : memref<1x128xf32, #tpu.memory_space<vmem>>, vector<1x128xf32>
    %102 = arith.mulf %90, %100 : vector<1x128xf32>
    %103 = arith.subf %101, %102 : vector<1x128xf32>
    %104 = vector.broadcast %100 : vector<1x128xf32> to vector<16x128xf32>
    %105 = arith.mulf %74, %104 : vector<16x128xf32>
    %106 = vector.broadcast %103 : vector<1x128xf32> to vector<16x128xf32>
    %107 = arith.addf %105, %106 : vector<16x128xf32>
    %108 = arith.addf %107, %5 : vector<16x128xf32>
    %cst_54 = arith.constant 0.000000e+00 : f32
    %109 = vector.broadcast %cst_54 : f32 to vector<16x128xf32>
    %110 = arith.maximumf %108, %109 : vector<16x128xf32>
    %c0_55 = arith.constant 0 : index
    %c0_56 = arith.constant 0 : index
    %111 = vector.load %arg9[%c0_55, %c0_56] : memref<16x128xf32, #tpu.memory_space<vmem>>, vector<16x128xf32>
    tpu.vector_store %arg9[%c0_55, %c0_56], %110 {strides = array<i32>} : memref<16x128xf32, #tpu.memory_space<vmem>>, vector<16x128xf32>,
    return
  }
  func.func @transform_0(%arg0: i32) -> (i32, i32) {
    %c0_i32 = arith.constant 0 : i32
    %c0_i32_0 = arith.constant 0 : i32
    %c0_i32_1 = arith.constant 0 : i32
    return %c0_i32, %c0_i32_0 : i32, i32
  }
  func.func @transform_1(%arg0: i32) -> (i32, i32, i32) {
    %c0_i32 = arith.constant 0 : i32
    %c0_i32_0 = arith.constant 0 : i32
    %c0_i32_1 = arith.constant 0 : i32
    %c0_i32_2 = arith.constant 0 : i32
    return %c0_i32, %c0_i32_0, %c0_i32_1 : i32, i32, i32
  }
  func.func @transform_2(%arg0: i32) -> (i32, i32, i32) {
    %c0_i32 = arith.constant 0 : i32
    %c0_i32_0 = arith.constant 0 : i32
    %c0_i32_1 = arith.constant 0 : i32
    %c0_i32_2 = arith.constant 0 : i32
    return %c0_i32, %c0_i32_0, %c0_i32_1 : i32, i32, i32
  }
  func.func @transform_3(%arg0: i32) -> (i32, i32) {
    %c0_i32 = arith.constant 0 : i32
    %c0_i32_0 = arith.constant 0 : i32
    %c0_i32_1 = arith.constant 0 : i32
    return %c0_i32, %c0_i32_0 : i32, i32
  }
  func.func @transform_4(%arg0: i32) -> (i32, i32) {
    %c0_i32 = arith.constant 0 : i32
    %c0_i32_0 = arith.constant 0 : i32
    %c0_i32_1 = arith.constant 0 : i32
    return %c0_i32, %c0_i32_0 : i32, i32
  }
  func.func @transform_5(%arg0: i32) -> (i32, i32) {
    %c0_i32 = arith.constant 0 : i32
    %c0_i32_0 = arith.constant 0 : i32
    %c0_i32_1 = arith.constant 0 : i32
    return %c0_i32, %c0_i32_0 : i32, i32
  }
  func.func @transform_6(%arg0: i32) -> (i32, i32) {
    %c0_i32 = arith.constant 0 : i32
    %c0_i32_0 = arith.constant 0 : i32
    %c0_i32_1 = arith.constant 0 : i32
    return %c0_i32, %c0_i32_0 : i32, i32
  }
  func.func @transform_7(%arg0: i32) -> (i32, i32) {
    %c0_i32 = arith.constant 0 : i32
    %c0_i32_0 = arith.constant 0 : i32
    %c0_i32_1 = arith.constant 0 : i32
    return %c0_i32, %c0_i32_0 : i32, i32
  }
  func.func @transform_8(%arg0: i32) -> (i32, i32) {
    %c0_i32 = arith.constant 0 : i32
    %c0_i32_0 = arith.constant 0 : i32
    %c0_i32_1 = arith.constant 0 : i32
    return %c0_i32, %c0_i32_0 : i32, i32
  }
}

</mosaic_0001>

<llo_original>
// kernel: tile.23
$region0: #{tile.23}
  #allocation0 [shape = 's32[1]{0}', space=sflag, size = 0x4, scoped, tag = 'scoped memory for tile.23']
  %s0 = inlined_call_operand.vmem [shape: f32[4], index: 0, kind: input, shape index: {}]
  %s1 = inlined_call_operand.vmem [shape: f32[32,4], index: 1, kind: output, shape index: {}]
  // Predicated region
  $region2: #{tile.23} parent=0 // pred_check
    _
  $region3: #{tile.23} parent=0 // pred_check_branch
    %3 = sbr.rel (0) target = $region5
  $region4: #{tile.23} parent=0 // pred_region
    _
  $region5: #{tile.23} parent=0 // pred_fallthru
    _
  %v4 = vld [vmem:[%s0] ss:$0 sm:$0xff]
  %5 = vst [vmem:[%s1] sm:$0xff] %v4
  %s6 = scalar_lea.vmem %s1, 8
  %7 = vst [vmem:[%s6] sm:$0xff] %v4
  %s8 = scalar_lea.vmem %s1, 16
  %9 = vst [vmem:[%s8] sm:$0xff] %v4
  %s10 = scalar_lea.vmem %s1, 24
  %11 = vst [vmem:[%s10] sm:$0xff] %v4

// kernel: tile.24
$region0: #{tile.24}
  %s0 = inlined_call_operand.vmem [shape: f32[32,4], index: 0, kind: input, shape index: {}]
  %s1 = inlined_call_operand.vmem [shape: f32[1,128], index: 1, kind: output, shape index: {}]
  $region1: #{tile.24} parent=0
    #allocation0 [shape = 'u8[4096]{0}', space=vmem, size = 0x1000, scoped, tag = 'scoped mem for output reshape']
    %v2 = vld [vmem:[%s0] sm:$0x1]
    %vm3 = vcmask 31744
    %4 = vst.msk [vmem:[#allocation0] sm:$0x1] %vm3, %v2
    %s5 = scalar_lea.vmem %s0, 31
    %v6 = vld [vmem:[%s5] sm:$0x1]
    %7 = vrot.lane.b32.xlu0 %v6, 124
    %v8 = vpop.permute.xlu0 %7
    %vm9 = vcmask 1048544
    %10 = vst.msk [vmem:[#allocation0] sm:$0x1] %vm9, %v8
    %s11 = scalar_lea.vmem %s0, 30
    %v12 = vld [vmem:[%s11] sm:$0x1]
    %13 = vrot.lane.b32.xlu0 %v12, 120
    %v14 = vpop.permute.xlu0 %13
    %vm15 = vcmask 1015744
    %16 = vst.msk [vmem:[#allocation0] sm:$0x1] %vm15, %v14
    %s17 = scalar_lea.vmem %s0, 29
    %v18 = vld [vmem:[%s17] sm:$0x1]
    %19 = vrot.lane.b32.xlu0 %v18, 116
    %v20 = vpop.permute.xlu0 %19
    %vm21 = vcmask 982944
    %22 = vst.msk [vmem:[#allocation0] sm:$0x1] %vm21, %v20
    %s23 = scalar_lea.vmem %s0, 28
    %v24 = vld [vmem:[%s23] sm:$0x1]
    %25 = vrot.lane.b32.xlu0 %v24, 112
    %v26 = vpop.permute.xlu0 %25
    %vm27 = vcmask 950144
    %28 = vst.msk [vmem:[#allocation0] sm:$0x1] %vm27, %v26
    %s29 = scalar_lea.vmem %s0, 27
    %v30 = vld [vmem:[%s29] sm:$0x1]
    %31 = vrot.lane.b32.xlu0 %v30, 108
    %v32 = vpop.permute.xlu0 %31
    %vm33 = vcmask 917344
    %34 = vst.msk [vmem:[#allocation0] sm:$0x1] %vm33, %v32
    %s35 = scalar_lea.vmem %s0, 26
    %v36 = vld [vmem:[%s35] sm:$0x1]
    %37 = vrot.lane.b32.xlu0 %v36, 104
    %v38 = vpop.permute.xlu0 %37
    %vm39 = vcmask 884544
    %40 = vst.msk [vmem:[#allocation0] sm:$0x1] %vm39, %v38
    %s41 = scalar_lea.vmem %s0, 25
    %v42 = vld [vmem:[%s41] sm:$0x1]
    %43 = vrot.lane.b32.xlu0 %v42, 100
    %v44 = vpop.permute.xlu0 %43
    %vm45 = vcmask 851744
    %46 = vst.msk [vmem:[#allocation0] sm:$0x1] %vm45, %v44
    %s47 = scalar_lea.vmem %s0, 24
    %v48 = vld [vmem:[%s47] sm:$0x1]
    %49 = vrot.lane.b32.xlu0 %v48, 96
    %v50 = vpop.permute.xlu0 %49
    %vm51 = vcmask 818944
    %52 = vst.msk [vmem:[#allocation0] sm:$0x1] %vm51, %v50
    %s53 = scalar_lea.vmem %s0, 23
    %v54 = vld [vmem:[%s53] sm:$0x1]
    %55 = vrot.lane.b32.xlu0 %v54, 92
    %v56 = vpop.permute.xlu0 %55
    %vm57 = vcmask 786144
    %58 = vst.msk [vmem:[#allocation0] sm:$0x1] %vm57, %v56
    %s59 = scalar_lea.vmem %s0, 22
    %v60 = vld [vmem:[%s59] sm:$0x1]
    %61 = vrot.lane.b32.xlu0 %v60, 88
    %v62 = vpop.permute.xlu0 %61
    %vm63 = vcmask 753344
    %64 = vst.msk [vmem:[#allocation0] sm:$0x1] %vm63, %v62
    %s65 = scalar_lea.vmem %s0, 21
    %v66 = vld [vmem:[%s65] sm:$0x1]
    %67 = vrot.lane.b32.xlu0 %v66, 84
    %v68 = vpop.permute.xlu0 %67
    %vm69 = vcmask 720544
    %70 = vst.msk [vmem:[#allocation0] sm:$0x1] %vm69, %v68
    %s71 = scalar_lea.vmem %s0, 20
    %v72 = vld [vmem:[%s71] sm:$0x1]
    %73 = vrot.lane.b32.xlu0 %v72, 80
    %v74 = vpop.permute.xlu0 %73
    %vm75 = vcmask 687744
    %76 = vst.msk [vmem:[#allocation0] sm:$0x1] %vm75, %v74
    %s77 = scalar_lea.vmem %s0, 19
    %v78 = vld [vmem:[%s77] sm:$0x1]
    %79 = vrot.lane.b32.xlu0 %v78, 76
    %v80 = vpop.permute.xlu0 %79
    %vm81 = vcmask 654944
    %82 = vst.msk [vmem:[#allocation0] sm:$0x1] %vm81, %v80
    %s83 = scalar_lea.vmem %s0, 18
    %v84 = vld [vmem:[%s83] sm:$0x1]
    %85 = vrot.lane.b32.xlu0 %v84, 72
    %v86 = vpop.permute.xlu0 %85
    %vm87 = vcmask 622144
    %88 = vst.msk [vmem:[#allocation0] sm:$0x1] %vm87, %v86
    %s89 = scalar_lea.vmem %s0, 17
    %v90 = vld [vmem:[%s89] sm:$0x1]
    %91 = vrot.lane.b32.xlu0 %v90, 68
    %v92 = vpop.permute.xlu0 %91
    %vm93 = vcmask 589344
    %94 = vst.msk [vmem:[#allocation0] sm:$0x1] %vm93, %v92
    %s95 = scalar_lea.vmem %s0, 16
    %v96 = vld [vmem:[%s95] sm:$0x1]
    %97 = vrot.lane.b32.xlu0 %v96, 64
    %v98 = vpop.permute.xlu0 %97
    %vm99 = vcmask 556544
    %100 = vst.msk [vmem:[#allocation0] sm:$0x1] %vm99, %v98
    %s101 = scalar_lea.vmem %s0, 15
    %v102 = vld [vmem:[%s101] sm:$0x1]
    %103 = vrot.lane.b32.xlu0 %v102, 60
    %v104 = vpop.permute.xlu0 %103
    %vm105 = vcmask 523744
    %106 = vst.msk [vmem:[#allocation0] sm:$0x1] %vm105, %v104
    %s107 = scalar_lea.vmem %s0, 14
    %v108 = vld [vmem:[%s107] sm:$0x1]
    %109 = vrot.lane.b32.xlu0 %v108, 56
    %v110 = vpop.permute.xlu0 %109
    %vm111 = vcmask 490944
    %112 = vst.msk [vmem:[#allocation0] sm:$0x1] %vm111, %v110
    %s113 = scalar_lea.vmem %s0, 13
    %v114 = vld [vmem:[%s113] sm:$0x1]
    %115 = vrot.lane.b32.xlu0 %v114, 52
    %v116 = vpop.permute.xlu0 %115
    %vm117 = vcmask 458144
    %118 = vst.msk [vmem:[#allocation0] sm:$0x1] %vm117, %v116
    %s119 = scalar_lea.vmem %s0, 12
    %v120 = vld [vmem:[%s119] sm:$0x1]
    %121 = vrot.lane.b32.xlu0 %v120, 48
    %v122 = vpop.permute.xlu0 %121
    %vm123 = vcmask 425344
    %124 = vst.msk [vmem:[#allocation0] sm:$0x1] %vm123, %v122
    %s125 = scalar_lea.vmem %s0, 11
    %v126 = vld [vmem:[%s125] sm:$0x1]
    %127 = vrot.lane.b32.xlu0 %v126, 44
    %v128 = vpop.permute.xlu0 %127
    %vm129 = vcmask 392544
    %130 = vst.msk [vmem:[#allocation0] sm:$0x1] %vm129, %v128
    %s131 = scalar_lea.vmem %s0, 10
    %v132 = vld [vmem:[%s131] sm:$0x1]
    %133 = vrot.lane.b32.xlu0 %v132, 40
    %v134 = vpop.permute.xlu0 %133
    %vm135 = vcmask 359744
    %136 = vst.msk [vmem:[#allocation0] sm:$0x1] %vm135, %v134
    %s137 = scalar_lea.vmem %s0, 9
    %v138 = vld [vmem:[%s137] sm:$0x1]
    %139 = vrot.lane.b32.xlu0 %v138, 36
    %v140 = vpop.permute.xlu0 %139
    %vm141 = vcmask 326944
    %142 = vst.msk [vmem:[#allocation0] sm:$0x1] %vm141, %v140
    %s143 = scalar_lea.vmem %s0, 8
    %v144 = vld [vmem:[%s143] sm:$0x1]
    %145 = vrot.lane.b32.xlu0 %v144, 32
    %v146 = vpop.permute.xlu0 %145
    %vm147 = vcmask 294144
    %148 = vst.msk [vmem:[#allocation0] sm:$0x1] %vm147, %v146
    %s149 = scalar_lea.vmem %s0, 7
    %v150 = vld [vmem:[%s149] sm:$0x1]
    %151 = vrot.lane.b32.xlu0 %v150, 28
    %v152 = vpop.permute.xlu0 %151
    %vm153 = vcmask 261344
    %154 = vst.msk [vmem:[#allocation0] sm:$0x1] %vm153, %v152
    %s155 = scalar_lea.vmem %s0, 6
    %v156 = vld [vmem:[%s155] sm:$0x1]
    %157 = vrot.lane.b32.xlu0 %v156, 24
    %v158 = vpop.permute.xlu0 %157
    %vm159 = vcmask 228544
    %160 = vst.msk [vmem:[#allocation0] sm:$0x1] %vm159, %v158
    %s161 = scalar_lea.vmem %s0, 5
    %v162 = vld [vmem:[%s161] sm:$0x1]
    %163 = vrot.lane.b32.xlu0 %v162, 20
    %v164 = vpop.permute.xlu0 %163
    %vm165 = vcmask 195744
    %166 = vst.msk [vmem:[#allocation0] sm:$0x1] %vm165, %v164
    %s167 = scalar_lea.vmem %s0, 4
    %v168 = vld [vmem:[%s167] sm:$0x1]
    %169 = vrot.lane.b32.xlu0 %v168, 16
    %v170 = vpop.permute.xlu0 %169
    %vm171 = vcmask 162944
    %172 = vst.msk [vmem:[#allocation0] sm:$0x1] %vm171, %v170
    %s173 = scalar_lea.vmem %s0, 3
    %v174 = vld [vmem:[%s173] sm:$0x1]
    %175 = vrot.lane.b32.xlu0 %v174, 12
    %v176 = vpop.permute.xlu0 %175
    %vm177 = vcmask 130144
    %178 = vst.msk [vmem:[#allocation0] sm:$0x1] %vm177, %v176
    %s179 = scalar_lea.vmem %s0, 2
    %v180 = vld [vmem:[%s179] sm:$0x1]
    %181 = vrot.lane.b32.xlu0 %v180, 8
    %v182 = vpop.permute.xlu0 %181
    %vm183 = vcmask 97344
    %184 = vst.msk [vmem:[#allocation0] sm:$0x1] %vm183, %v182
    %s185 = scalar_lea.vmem %s0, 1
    %v186 = vld [vmem:[%s185] sm:$0x1]
    %187 = vrot.lane.b32.xlu0 %v186, 4
    %v188 = vpop.permute.xlu0 %187
    %vm189 = vcmask 64544
    %190 = vst.msk [vmem:[#allocation0] sm:$0x1] %vm189, %v188
    %s192 = sshllo.u32 0, 1
    %v194 = vld [vmem:[#allocation0] sm:%s192]
    %s195 = sshllo.u32 0, 1
    %196 = vst [vmem:[%s1] sm:%s195] %v194

// kernel: basic_block_forward.1
$region0: #{basic_block_forward.1}
  #allocation0 [shape = 'u32[]', space=smem, size = 0x4, offset = 0x4, fixed_abs, tag = 'smem constant byte address 0x4 - core index']
  #allocation1 [shape = 'u32[144,128]{1,0:T(1,128)}', space=vmem, size = 0x12000, scoped, tag = 'internal scratch']
  %s0 = inlined_call_operand.vmem [shape: f32[16,128], index: 0, kind: input, shape index: {}]
  %s1 = inlined_call_operand.vmem [shape: f32[3,128,128], index: 1, kind: input, shape index: {}]
  %s2 = inlined_call_operand.vmem [shape: f32[3,128,128], index: 2, kind: input, shape index: {}]
  %s3 = inlined_call_operand.vmem [shape: f32[1,128], index: 3, kind: input, shape index: {}]
  %s4 = inlined_call_operand.vmem [shape: f32[1,128], index: 4, kind: input, shape index: {}]
  %s5 = inlined_call_operand.vmem [shape: f32[1,128], index: 5, kind: input, shape index: {}]
  %s6 = inlined_call_operand.vmem [shape: f32[1,128], index: 6, kind: input, shape index: {}]
  %s7 = inlined_call_operand.vmem [shape: f32[128,128], index: 7, kind: input, shape index: {}]
  %s8 = inlined_call_operand.vmem [shape: f32[16,128], index: 8, kind: output, shape index: {}]
  %s9 = sld [smem:[#allocation0]]
  $region42: #{basic_block_forward.1} parent=0
    _
  %s11 = ssub.s32 1, %s9
  %s12 = scalar_select 0, %s11, %s9
  // Predicated region
  $region2: #{basic_block_forward.1} parent=0 // pred_check
    _
  $region3: #{basic_block_forward.1} parent=0 // pred_check_branch
    %14 = sbr.rel (0) target = $region5
  $region4: #{basic_block_forward.1} parent=0 // pred_region
    _
  $region5: #{basic_block_forward.1} parent=0 // pred_fallthru
    _
  // Predicated region
  $region6: #{basic_block_forward.1} parent=0 // pred_check
    _
  $region7: #{basic_block_forward.1} parent=0 // pred_check_branch
    %16 = sbr.rel (0) target = $region9
  $region8: #{basic_block_forward.1} parent=0 // pred_region
    _
  $region9: #{basic_block_forward.1} parent=0 // pred_fallthru
    _
  // Predicated region
  $region10: #{basic_block_forward.1} parent=0 // pred_check
    _
  $region11: #{basic_block_forward.1} parent=0 // pred_check_branch
    %18 = sbr.rel (0) target = $region13
  $region12: #{basic_block_forward.1} parent=0 // pred_region
    _
  $region13: #{basic_block_forward.1} parent=0 // pred_fallthru
    _
  // Predicated region
  $region14: #{basic_block_forward.1} parent=0 // pred_check
    _
  $region15: #{basic_block_forward.1} parent=0 // pred_check_branch
    %20 = sbr.rel (0) target = $region17
  $region16: #{basic_block_forward.1} parent=0 // pred_region
    _
  $region17: #{basic_block_forward.1} parent=0 // pred_fallthru
    _
  // Predicated region
  $region18: #{basic_block_forward.1} parent=0 // pred_check
    _
  $region19: #{basic_block_forward.1} parent=0 // pred_check_branch
    %22 = sbr.rel (0) target = $region21
  $region20: #{basic_block_forward.1} parent=0 // pred_region
    _
  $region21: #{basic_block_forward.1} parent=0 // pred_fallthru
    _
  // Predicated region
  $region22: #{basic_block_forward.1} parent=0 // pred_check
    _
  $region23: #{basic_block_forward.1} parent=0 // pred_check_branch
    %24 = sbr.rel (0) target = $region25
  $region24: #{basic_block_forward.1} parent=0 // pred_region
    _
  $region25: #{basic_block_forward.1} parent=0 // pred_fallthru
    _
  // Predicated region
  $region26: #{basic_block_forward.1} parent=0 // pred_check
    _
  $region27: #{basic_block_forward.1} parent=0 // pred_check_branch
    %26 = sbr.rel (0) target = $region29
  $region28: #{basic_block_forward.1} parent=0 // pred_region
    _
  $region29: #{basic_block_forward.1} parent=0 // pred_fallthru
    _
  // Predicated region
  $region30: #{basic_block_forward.1} parent=0 // pred_check
    _
  $region31: #{basic_block_forward.1} parent=0 // pred_check_branch
    %28 = sbr.rel (0) target = $region33
  $region32: #{basic_block_forward.1} parent=0 // pred_region
    _
  $region33: #{basic_block_forward.1} parent=0 // pred_fallthru
    _
  %v29 = vlaneseq
  %v30 = vshrl.u32 %v29, 7
  %v31 = vadd.s32 %v30, 8
  %vm32 = vcmp.gt.s32.totalorder %v30, 0
  %vm33 = vcmp.gt.s32.totalorder %v31, 0
  %vm34 = vcmp.lt.s32.totalorder %v30, 15
  %vm35 = vcmp.lt.s32.totalorder %v31, 15
  %v36 = vld [vmem:[%s0] sm:$0xff]
  %v37 = vld [vmem:[%s0 + $0x8] sm:$0xff]
  %v38 = vrot.slane %v36, 7
  %v39 = vrot.slane %v37, 7
  %vm40 = vcmp.lt.s32.totalorder %v30, 1
  %v41 = vsel %vm40, %v38, %v39
  %v42 = vsel %vm40, %v39, %v38
  %v43 = vsel %vm32, %v42, 0.0
  %v44 = vsel %vm33, %v41, 0.0
  %v45 = vrot.slane %v36, 1
  %v46 = vrot.slane %v37, 1
  %vm47 = vcmp.lt.s32.totalorder %v30, 7
  %v48 = vsel %vm47, %v45, %v46
  %v49 = vsel %vm47, %v46, %v45
  %v50 = vsel %vm34, %v48, 0.0
  %v51 = vsel %vm35, %v49, 0.0
  %v52 = vld [vmem:[%s1] sm:$0xff]
  %v53 = vld [vmem:[%s1 + $0x8] sm:$0xff]
  %v54 = vld [vmem:[%s1 + $0x10] sm:$0xff]
  %v55 = vld [vmem:[%s1 + $0x18] sm:$0xff]
  %v56 = vld [vmem:[%s1 + $0x20] sm:$0xff]
  %v57 = vld [vmem:[%s1 + $0x28] sm:$0xff]
  %v58 = vld [vmem:[%s1 + $0x30] sm:$0xff]
  %v59 = vld [vmem:[%s1 + $0x38] sm:$0xff]
  %v60 = vld [vmem:[%s1 + $0x40] sm:$0xff]
  %v61 = vld [vmem:[%s1 + $0x48] sm:$0xff]
  %v62 = vld [vmem:[%s1 + $0x50] sm:$0xff]
  %v63 = vld [vmem:[%s1 + $0x58] sm:$0xff]
  %v64 = vld [vmem:[%s1 + $0x60] sm:$0xff]
  %v65 = vld [vmem:[%s1 + $0x68] sm:$0xff]
  %v66 = vld [vmem:[%s1 + $0x70] sm:$0xff]
  %v67 = vld [vmem:[%s1 + $0x78] sm:$0xff]
  %s68 = scalar_lea.vmem %s1, 128
  %v69 = vld [vmem:[%s68] sm:$0xff]
  %v70 = vld [vmem:[%s68 + $0x8] sm:$0xff]
  %v71 = vld [vmem:[%s68 + $0x10] sm:$0xff]
  %v72 = vld [vmem:[%s68 + $0x18] sm:$0xff]
  %v73 = vld [vmem:[%s68 + $0x20] sm:$0xff]
  %v74 = vld [vmem:[%s68 + $0x28] sm:$0xff]
  %v75 = vld [vmem:[%s68 + $0x30] sm:$0xff]
  %v76 = vld [vmem:[%s68 + $0x38] sm:$0xff]
  %v77 = vld [vmem:[%s68 + $0x40] sm:$0xff]
  %v78 = vld [vmem:[%s68 + $0x48] sm:$0xff]
  %v79 = vld [vmem:[%s68 + $0x50] sm:$0xff]
  %v80 = vld [vmem:[%s68 + $0x58] sm:$0xff]
  %v81 = vld [vmem:[%s68 + $0x60] sm:$0xff]
  %v82 = vld [vmem:[%s68 + $0x68] sm:$0xff]
  %v83 = vld [vmem:[%s68 + $0x70] sm:$0xff]
  %v84 = vld [vmem:[%s68 + $0x78] sm:$0xff]
  %85 = vmatprep.subr.mxu0 0.0
  %v86 = vand.u32 %v69, 4294901760
  %87 = vmatpush1.msra.mxu0 %v86
  %88 = vmatprep.subr.mxu0 0.0
  %v89 = vand.u32 %v70, 4294901760
  %90 = vmatpush1.msra.mxu0 %v89
  %91 = vmatprep.subr.mxu0 0.0
  %v92 = vand.u32 %v71, 4294901760
  %93 = vmatpush1.msra.mxu0 %v92
  %94 = vmatprep.subr.mxu0 0.0
  %v95 = vand.u32 %v72, 4294901760
  %96 = vmatpush1.msra.mxu0 %v95
  %97 = vmatprep.subr.mxu0 0.0
  %v98 = vand.u32 %v73, 4294901760
  %99 = vmatpush1.msra.mxu0 %v98
  %100 = vmatprep.subr.mxu0 0.0
  %v101 = vand.u32 %v74, 4294901760
  %102 = vmatpush1.msra.mxu0 %v101
  %103 = vmatprep.subr.mxu0 0.0
  %v104 = vand.u32 %v75, 4294901760
  %105 = vmatpush1.msra.mxu0 %v104
  %106 = vmatprep.subr.mxu0 0.0
  %v107 = vand.u32 %v76, 4294901760
  %108 = vmatpush1.msra.mxu0 %v107
  %109 = vmatprep.subr.mxu0 0.0
  %v110 = vand.u32 %v77, 4294901760
  %111 = vmatpush1.msra.mxu0 %v110
  %112 = vmatprep.subr.mxu0 0.0
  %v113 = vand.u32 %v78, 4294901760
  %114 = vmatpush1.msra.mxu0 %v113
  %115 = vmatprep.subr.mxu0 0.0
  %v116 = vand.u32 %v79, 4294901760
  %117 = vmatpush1.msra.mxu0 %v116
  %118 = vmatprep.subr.mxu0 0.0
  %v119 = vand.u32 %v80, 4294901760
  %120 = vmatpush1.msra.mxu0 %v119
  %121 = vmatprep.subr.mxu0 0.0
  %v122 = vand.u32 %v81, 4294901760
  %123 = vmatpush1.msra.mxu0 %v122
  %124 = vmatprep.subr.mxu0 0.0
  %v125 = vand.u32 %v82, 4294901760
  %126 = vmatpush1.msra.mxu0 %v125
  %127 = vmatprep.subr.mxu0 0.0
  %v128 = vand.u32 %v83, 4294901760
  %129 = vmatpush1.msra.mxu0 %v128
  %130 = vmatprep.subr.mxu0 0.0
  %v131 = vand.u32 %v84, 4294901760
  %132 = vmatpush1.msra.mxu0 %v131
  %133 = vmatprep.subr.mxu0 0.0
  %134 = vmatpush1.msra.mxu0 0.0
  %135 = vmatprep.subr.mxu0 0.0
  %136 = vmatpush1.msra.mxu0 0.0
  %137 = vmatprep.subr.mxu0 0.0
  %138 = vmatpush1.msra.mxu0 0.0
  %139 = vmatprep.subr.mxu0 0.0
  %140 = vmatpush1.msra.mxu0 0.0
  %141 = vmatprep.subr.mxu0 0.0
  %142 = vmatpush1.msra.mxu0 0.0
  %143 = vmatprep.subr.mxu0 0.0
  %144 = vmatpush1.msra.mxu0 0.0
  %145 = vmatprep.subr.mxu0 0.0
  %146 = vmatpush1.msra.mxu0 0.0
  %147 = vmatprep.subr.mxu0 0.0
  %148 = vmatpush1.msra.mxu0 0.0
  %149 = vmatprep.subr.mxu0 0.0
  %150 = vmatpush1.msra.mxu0 0.0
  %151 = vmatprep.subr.mxu0 0.0
  %152 = vmatpush1.msra.mxu0 0.0
  %153 = vmatprep.subr.mxu0 0.0
  %154 = vmatpush1.msra.mxu0 0.0
  %155 = vmatprep.subr.mxu0 0.0
  %156 = vmatpush1.msra.mxu0 0.0
  %157 = vmatprep.subr.mxu0 0.0
  %158 = vmatpush1.msra.mxu0 0.0
  %159 = vmatprep.subr.mxu0 0.0
  %160 = vmatpush1.msra.mxu0 0.0
  %161 = vmatprep.subr.mxu0 0.0
  %162 = vmatpush1.msra.mxu0 0.0
  %163 = vmatprep.subr.mxu0 0.0
  %164 = vmatpush1.msra.mxu0 0.0
  %165 = vmatprep.mubr.f32.mxu0 0.0
  %v166 = vand.u32 %v36, 4294901760
  %v167 = vsub.f32 %v36, %v166
  %v168 = vand.u32 %v167, 4294901760
  %v169 = vsub.f32 %v167, %v168
  %v170 = vand.u32 %v169, 4294901760
  %171 = vmatmul.mubr.f32.gmra.mrb[0].mxu0 %v170
  %v172 = vpop.f32.mrb[0].mxu0
  %v173 = vadd.f32 0.0, %v172
  %v174 = vpop.f32.mrb[0].mxu0
  %175 = vmatprep.mubr.f32.mxu0 0.0
  %v176 = vand.u32 %v37, 4294901760
  %v177 = vsub.f32 %v37, %v176
  %v178 = vand.u32 %v177, 4294901760
  %v179 = vsub.f32 %v177, %v178
  %v180 = vand.u32 %v179, 4294901760
  %181 = vmatmul.mubr.f32.gmra.mrb[0].mxu0 %v180
  %v182 = vpop.f32.mrb[0].mxu0
  %v183 = vadd.f32 0.0, %v182
  %v184 = vpop.f32.mrb[0].mxu0
  %185 = vdwg.mxu0
  %186 = vmatprep.subr.mxu0 0.0
  %v187 = vand.u32 %v69, 4294901760
  %v188 = vsub.f32 %v69, %v187
  %v189 = vand.u32 %v188, 4294901760
  %v190 = vsub.f32 %v188, %v189
  %v191 = vand.u32 %v190, 4294901760
  %192 = vmatpush1.msra.mxu0 %v191
  %193 = vmatprep.subr.mxu0 0.0
  %v194 = vand.u32 %v70, 4294901760
  %v195 = vsub.f32 %v70, %v194
  %v196 = vand.u32 %v195, 4294901760
  %v197 = vsub.f32 %v195, %v196
  %v198 = vand.u32 %v197, 4294901760
  %199 = vmatpush1.msra.mxu0 %v198
  %200 = vmatprep.subr.mxu0 0.0
  %v201 = vand.u32 %v71, 4294901760
  %v202 = vsub.f32 %v71, %v201
  %v203 = vand.u32 %v202, 4294901760
  %v204 = vsub.f32 %v202, %v203
  %v205 = vand.u32 %v204, 4294901760
  %206 = vmatpush1.msra.mxu0 %v205
  %207 = vmatprep.subr.mxu0 0.0
  %v208 = vand.u32 %v72, 4294901760
  %v209 = vsub.f32 %v72, %v208
  %v210 = vand.u32 %v209, 4294901760
  %v211 = vsub.f32 %v209, %v210
  %v212 = vand.u32 %v211, 4294901760
  %213 = vmatpush1.msra.mxu0 %v212
  %214 = vmatprep.subr.mxu0 0.0
  %v215 = vand.u32 %v73, 4294901760
  %v216 = vsub.f32 %v73, %v215
  %v217 = vand.u32 %v216, 4294901760
  %v218 = vsub.f32 %v216, %v217
  %v219 = vand.u32 %v218, 4294901760
  %220 = vmatpush1.msra.mxu0 %v219
  %221 = vmatprep.subr.mxu0 0.0
  %v222 = vand.u32 %v74, 4294901760
  %v223 = vsub.f32 %v74, %v222
  %v224 = vand.u32 %v223, 4294901760
  %v225 = vsub.f32 %v223, %v224
  %v226 = vand.u32 %v225, 4294901760
  %227 = vmatpush1.msra.mxu0 %v226
  %228 = vmatprep.subr.mxu0 0.0
  %v229 = vand.u32 %v75, 4294901760
  %v230 = vsub.f32 %v75, %v229
  %v231 = vand.u32 %v230, 4294901760
  %v232 = vsub.f32 %v230, %v231
  %v233 = vand.u32 %v232, 4294901760
  %234 = vmatpush1.msra.mxu0 %v233
  %235 = vmatprep.subr.mxu0 0.0
  %v236 = vand.u32 %v76, 4294901760
  %v237 = vsub.f32 %v76, %v236
  %v238 = vand.u32 %v237, 4294901760
  %v239 = vsub.f32 %v237, %v238
  %v240 = vand.u32 %v239, 4294901760
  %241 = vmatpush1.msra.mxu0 %v240
  %242 = vmatprep.subr.mxu0 0.0
  %v243 = vand.u32 %v77, 4294901760
  %v244 = vsub.f32 %v77, %v243
  %v245 = vand.u32 %v244, 4294901760
  %v246 = vsub.f32 %v244, %v245
  %v247 = vand.u32 %v246, 4294901760
  %248 = vmatpush1.msra.mxu0 %v247
  %249 = vmatprep.subr.mxu0 0.0
  %v250 = vand.u32 %v78, 4294901760
  %v251 = vsub.f32 %v78, %v250
  %v252 = vand.u32 %v251, 4294901760
  %v253 = vsub.f32 %v251, %v252
  %v254 = vand.u32 %v253, 4294901760
  %255 = vmatpush1.msra.mxu0 %v254
  %256 = vmatprep.subr.mxu0 0.0
  %v257 = vand.u32 %v79, 4294901760
  %v258 = vsub.f32 %v79, %v257
  %v259 = vand.u32 %v258, 4294901760
  %v260 = vsub.f32 %v258, %v259
  %v261 = vand.u32 %v260, 4294901760
  %262 = vmatpush1.msra.mxu0 %v261
  %263 = vmatprep.subr.mxu0 0.0
  %v264 = vand.u32 %v80, 4294901760
  %v265 = vsub.f32 %v80, %v264
  %v266 = vand.u32 %v265, 4294901760
  %v267 = vsub.f32 %v265, %v266
  %v268 = vand.u32 %v267, 4294901760
  %269 = vmatpush1.msra.mxu0 %v268
  %270 = vmatprep.subr.mxu0 0.0
  %v271 = vand.u32 %v81, 4294901760
  %v272 = vsub.f32 %v81, %v271
  %v273 = vand.u32 %v272, 4294901760
  %v274 = vsub.f32 %v272, %v273
  %v275 = vand.u32 %v274, 4294901760
  %276 = vmatpush1.msra.mxu0 %v275
  %277 = vmatprep.subr.mxu0 0.0
  %v278 = vand.u32 %v82, 4294901760
  %v279 = vsub.f32 %v82, %v278
  %v280 = vand.u32 %v279, 4294901760
  %v281 = vsub.f32 %v279, %v280
  %v282 = vand.u32 %v281, 4294901760
  %283 = vmatpush1.msra.mxu0 %v282
  %284 = vmatprep.subr.mxu0 0.0
  %v285 = vand.u32 %v83, 4294901760
  %v286 = vsub.f32 %v83, %v285
  %v287 = vand.u32 %v286, 4294901760
  %v288 = vsub.f32 %v286, %v287
  %v289 = vand.u32 %v288, 4294901760
  %290 = vmatpush1.msra.mxu0 %v289
  %291 = vmatprep.subr.mxu0 0.0
  %v292 = vand.u32 %v84, 4294901760
  %v293 = vsub.f32 %v84, %v292
  %v294 = vand.u32 %v293, 4294901760
  %v295 = vsub.f32 %v293, %v294
  %v296 = vand.u32 %v295, 4294901760
  %297 = vmatpush1.msra.mxu0 %v296
  %298 = vmatprep.subr.mxu0 0.0
  %299 = vmatpush1.msra.mxu0 0.0
  %300 = vmatprep.subr.mxu0 0.0
  %301 = vmatpush1.msra.mxu0 0.0
  %302 = vmatprep.subr.mxu0 0.0
  %303 = vmatpush1.msra.mxu0 0.0
  %304 = vmatprep.subr.mxu0 0.0
  %305 = vmatpush1.msra.mxu0 0.0
  %306 = vmatprep.subr.mxu0 0.0
  %307 = vmatpush1.msra.mxu0 0.0
  %308 = vmatprep.subr.mxu0 0.0
  %309 = vmatpush1.msra.mxu0 0.0
  %310 = vmatprep.subr.mxu0 0.0
  %311 = vmatpush1.msra.mxu0 0.0
  %312 = vmatprep.subr.mxu0 0.0
  %313 = vmatpush1.msra.mxu0 0.0
  %314 = vmatprep.subr.mxu0 0.0
  %315 = vmatpush1.msra.mxu0 0.0
  %316 = vmatprep.subr.mxu0 0.0
  %317 = vmatpush1.msra.mxu0 0.0
  %318 = vmatprep.subr.mxu0 0.0
  %319 = vmatpush1.msra.mxu0 0.0
  %320 = vmatprep.subr.mxu0 0.0
  %321 = vmatpush1.msra.mxu0 0.0
  %322 = vmatprep.subr.mxu0 0.0
  %323 = vmatpush1.msra.mxu0 0.0
  %324 = vmatprep.subr.mxu0 0.0
  %325 = vmatpush1.msra.mxu0 0.0
  %326 = vmatprep.subr.mxu0 0.0
  %327 = vmatpush1.msra.mxu0 0.0
  %328 = vmatprep.subr.mxu0 0.0
  %329 = vmatpush1.msra.mxu0 0.0
  %330 = vmatprep.mubr.f32.mxu0 0.0
  %v331 = vand.u32 %v36, 4294901760
  %332 = vmatmul.mubr.f32.gmra.mrb[0].mxu0 %v331
  %v333 = vpop.f32.mrb[0].mxu0
  %v334 = vadd.f32 %v173, %v333
  %v335 = vpop.f32.mrb[0].mxu0
  %336 = vmatprep.mubr.f32.mxu0 0.0
  %v337 = vand.u32 %v37, 4294901760
  %338 = vmatmul.mubr.f32.gmra.mrb[0].mxu0 %v337
  %v339 = vpop.f32.mrb[0].mxu0
  %v340 = vadd.f32 %v183, %v339
  %v341 = vpop.f32.mrb[0].mxu0
  %342 = vdwg.mxu0
  %343 = vmatprep.subr.mxu0 0.0
  %v344 = vand.u32 %v69, 4294901760
  %v345 = vsub.f32 %v69, %v344
  %346 = vmatpush1.msra.mxu0 %v345
  %347 = vmatprep.subr.mxu0 0.0
  %v348 = vand.u32 %v70, 4294901760
  %v349 = vsub.f32 %v70, %v348
  %350 = vmatpush1.msra.mxu0 %v349
  %351 = vmatprep.subr.mxu0 0.0
  %v352 = vand.u32 %v71, 4294901760
  %v353 = vsub.f32 %v71, %v352
  %354 = vmatpush1.msra.mxu0 %v353
  %355 = vmatprep.subr.mxu0 0.0
  %v356 = vand.u32 %v72, 4294901760
  %v357 = vsub.f32 %v72, %v356
  %358 = vmatpush1.msra.mxu0 %v357
  %359 = vmatprep.subr.mxu0 0.0
  %v360 = vand.u32 %v73, 4294901760
  %v361 = vsub.f32 %v73, %v360
  %362 = vmatpush1.msra.mxu0 %v361
  %363 = vmatprep.subr.mxu0 0.0
  %v364 = vand.u32 %v74, 4294901760
  %v365 = vsub.f32 %v74, %v364
  %366 = vmatpush1.msra.mxu0 %v365
  %367 = vmatprep.subr.mxu0 0.0
  %v368 = vand.u32 %v75, 4294901760
  %v369 = vsub.f32 %v75, %v368
  %370 = vmatpush1.msra.mxu0 %v369
  %371 = vmatprep.subr.mxu0 0.0
  %v372 = vand.u32 %v76, 4294901760
  %v373 = vsub.f32 %v76, %v372
  %374 = vmatpush1.msra.mxu0 %v373
  %375 = vmatprep.subr.mxu0 0.0
  %v376 = vand.u32 %v77, 4294901760
  %v377 = vsub.f32 %v77, %v376
  %378 = vmatpush1.msra.mxu0 %v377
  %379 = vmatprep.subr.mxu0 0.0
  %v380 = vand.u32 %v78, 4294901760
  %v381 = vsub.f32 %v78, %v380
  %382 = vmatpush1.msra.mxu0 %v381
  %383 = vmatprep.subr.mxu0 0.0
  %v384 = vand.u32 %v79, 4294901760
  %v385 = vsub.f32 %v79, %v384
  %386 = vmatpush1.msra.mxu0 %v385
  %387 = vmatprep.subr.mxu0 0.0
  %v388 = vand.u32 %v80, 4294901760
  %v389 = vsub.f32 %v80, %v388
  %390 = vmatpush1.msra.mxu0 %v389
  %391 = vmatprep.subr.mxu0 0.0
  %v392 = vand.u32 %v81, 4294901760
  %v393 = vsub.f32 %v81, %v392
  %394 = vmatpush1.msra.mxu0 %v393
  %395 = vmatprep.subr.mxu0 0.0
  %v396 = vand.u32 %v82, 4294901760
  %v397 = vsub.f32 %v82, %v396
  %398 = vmatpush1.msra.mxu0 %v397
  %399 = vmatprep.subr.mxu0 0.0
  %v400 = vand.u32 %v83, 4294901760
  %v401 = vsub.f32 %v83, %v400
  %402 = vmatpush1.msra.mxu0 %v401
  %403 = vmatprep.subr.mxu0 0.0
  %v404 = vand.u32 %v84, 4294901760
  %v405 = vsub.f32 %v84, %v404
  %406 = vmatpush1.msra.mxu0 %v405
  %407 = vmatprep.subr.mxu0 0.0
  %408 = vmatpush1.msra.mxu0 0.0
  %409 = vmatprep.subr.mxu0 0.0
  %410 = vmatpush1.msra.mxu0 0.0
  %411 = vmatprep.subr.mxu0 0.0
  %412 = vmatpush1.msra.mxu0 0.0
  %413 = vmatprep.subr.mxu0 0.0
  %414 = vmatpush1.msra.mxu0 0.0
  %415 = vmatprep.subr.mxu0 0.0
  %416 = vmatpush1.msra.mxu0 0.0
  %417 = vmatprep.subr.mxu0 0.0
  %418 = vmatpush1.msra.mxu0 0.0
  %419 = vmatprep.subr.mxu0 0.0
  %420 = vmatpush1.msra.mxu0 0.0
  %421 = vmatprep.subr.mxu0 0.0
  %422 = vmatpush1.msra.mxu0 0.0
  %423 = vmatprep.subr.mxu0 0.0
  %424 = vmatpush1.msra.mxu0 0.0
  %425 = vmatprep.subr.mxu0 0.0
  %426 = vmatpush1.msra.mxu0 0.0
  %427 = vmatprep.subr.mxu0 0.0
  %428 = vmatpush1.msra.mxu0 0.0
  %429 = vmatprep.subr.mxu0 0.0
  %430 = vmatpush1.msra.mxu0 0.0
  %431 = vmatprep.subr.mxu0 0.0
  %432 = vmatpush1.msra.mxu0 0.0
  %433 = vmatprep.subr.mxu0 0.0
  %434 = vmatpush1.msra.mxu0 0.0
  %435 = vmatprep.subr.mxu0 0.0
  %436 = vmatpush1.msra.mxu0 0.0
  %437 = vmatprep.subr.mxu0 0.0
  %438 = vmatpush1.msra.mxu0 0.0
  %439 = vmatprep.mubr.f32.mxu0 0.0
  %v440 = vand.u32 %v36, 4294901760
  %v441 = vsub.f32 %v36, %v440
  %442 = vmatmul.mubr.f32.gmra.mrb[0].mxu0 %v441
  %v443 = vpop.f32.mrb[0].mxu0
  %v444 = vadd.f32 %v334, %v443
  %v445 = vpop.f32.mrb[0].mxu0
  %446 = vmatprep.mubr.f32.mxu0 0.0
  %v447 = vand.u32 %v37, 4294901760
  %v448 = vsub.f32 %v37, %v447
  %449 = vmatmul.mubr.f32.gmra.mrb[0].mxu0 %v448
  %v450 = vpop.f32.mrb[0].mxu0
  %v451 = vadd.f32 %v340, %v450
  %v452 = vpop.f32.mrb[0].mxu0
  %453 = vdwg.mxu0
  %454 = vmatprep.subr.mxu0 0.0
  %v455 = vand.u32 %v69, 4294901760
  %456 = vmatpush1.msra.mxu0 %v455
  %457 = vmatprep.subr.mxu0 0.0
  %v458 = vand.u32 %v70, 4294901760
  %459 = vmatpush1.msra.mxu0 %v458
  %460 = vmatprep.subr.mxu0 0.0
  %v461 = vand.u32 %v71, 4294901760
  %462 = vmatpush1.msra.mxu0 %v461
  %463 = vmatprep.subr.mxu0 0.0
  %v464 = vand.u32 %v72, 4294901760
  %465 = vmatpush1.msra.mxu0 %v464
  %466 = vmatprep.subr.mxu0 0.0
  %v467 = vand.u32 %v73, 4294901760
  %468 = vmatpush1.msra.mxu0 %v467
  %469 = vmatprep.subr.mxu0 0.0
  %v470 = vand.u32 %v74, 4294901760
  %471 = vmatpush1.msra.mxu0 %v470
  %472 = vmatprep.subr.mxu0 0.0
  %v473 = vand.u32 %v75, 4294901760
  %474 = vmatpush1.msra.mxu0 %v473
  %475 = vmatprep.subr.mxu0 0.0
  %v476 = vand.u32 %v76, 4294901760
  %477 = vmatpush1.msra.mxu0 %v476
  %478 = vmatprep.subr.mxu0 0.0
  %v479 = vand.u32 %v77, 4294901760
  %480 = vmatpush1.msra.mxu0 %v479
  %481 = vmatprep.subr.mxu0 0.0
  %v482 = vand.u32 %v78, 4294901760
  %483 = vmatpush1.msra.mxu0 %v482
  %484 = vmatprep.subr.mxu0 0.0
  %v485 = vand.u32 %v79, 4294901760
  %486 = vmatpush1.msra.mxu0 %v485
  %487 = vmatprep.subr.mxu0 0.0
  %v488 = vand.u32 %v80, 4294901760
  %489 = vmatpush1.msra.mxu0 %v488
  %490 = vmatprep.subr.mxu0 0.0
  %v491 = vand.u32 %v81, 4294901760
  %492 = vmatpush1.msra.mxu0 %v491
  %493 = vmatprep.subr.mxu0 0.0
  %v494 = vand.u32 %v82, 4294901760
  %495 = vmatpush1.msra.mxu0 %v494
  %496 = vmatprep.subr.mxu0 0.0
  %v497 = vand.u32 %v83, 4294901760
  %498 = vmatpush1.msra.mxu0 %v497
  %499 = vmatprep.subr.mxu0 0.0
  %v500 = vand.u32 %v84, 4294901760
  %501 = vmatpush1.msra.mxu0 %v500
  %502 = vmatprep.subr.mxu0 0.0
  %503 = vmatpush1.msra.mxu0 0.0
  %504 = vmatprep.subr.mxu0 0.0
  %505 = vmatpush1.msra.mxu0 0.0
  %506 = vmatprep.subr.mxu0 0.0
  %507 = vmatpush1.msra.mxu0 0.0
  %508 = vmatprep.subr.mxu0 0.0
  %509 = vmatpush1.msra.mxu0 0.0
  %510 = vmatprep.subr.mxu0 0.0
  %511 = vmatpush1.msra.mxu0 0.0
  %512 = vmatprep.subr.mxu0 0.0
  %513 = vmatpush1.msra.mxu0 0.0
  %514 = vmatprep.subr.mxu0 0.0
  %515 = vmatpush1.msra.mxu0 0.0
  %516 = vmatprep.subr.mxu0 0.0
  %517 = vmatpush1.msra.mxu0 0.0
  %518 = vmatprep.subr.mxu0 0.0
  %519 = vmatpush1.msra.mxu0 0.0
  %520 = vmatprep.subr.mxu0 0.0
  %521 = vmatpush1.msra.mxu0 0.0
  %522 = vmatprep.subr.mxu0 0.0
  %523 = vmatpush1.msra.mxu0 0.0
  %524 = vmatprep.subr.mxu0 0.0
  %525 = vmatpush1.msra.mxu0 0.0
  %526 = vmatprep.subr.mxu0 0.0
  %527 = vmatpush1.msra.mxu0 0.0
  %528 = vmatprep.subr.mxu0 0.0
  %529 = vmatpush1.msra.mxu0 0.0
  %530 = vmatprep.subr.mxu0 0.0
  %531 = vmatpush1.msra.mxu0 0.0
  %532 = vmatprep.subr.mxu0 0.0
  %533 = vmatpush1.msra.mxu0 0.0
  %534 = vmatprep.mubr.f32.mxu0 0.0
  %v535 = vand.u32 %v36, 4294901760
  %v536 = vsub.f32 %v36, %v535
  %v537 = vand.u32 %v536, 4294901760
  %538 = vmatmul.mubr.f32.gmra.mrb[0].mxu0 %v537
  %v539 = vpop.f32.mrb[0].mxu0
  %v540 = vadd.f32 %v444, %v539
  %v541 = vpop.f32.mrb[0].mxu0
  %542 = vmatprep.mubr.f32.mxu0 0.0
  %v543 = vand.u32 %v37, 4294901760
  %v544 = vsub.f32 %v37, %v543
  %v545 = vand.u32 %v544, 4294901760
  %546 = vmatmul.mubr.f32.gmra.mrb[0].mxu0 %v545
  %v547 = vpop.f32.mrb[0].mxu0
  %v548 = vadd.f32 %v451, %v547
  %v549 = vpop.f32.mrb[0].mxu0
  %550 = vdwg.mxu0
  %551 = vmatprep.subr.mxu0 0.0
  %v552 = vand.u32 %v69, 4294901760
  %v553 = vsub.f32 %v69, %v552
  %v554 = vand.u32 %v553, 4294901760
  %555 = vmatpush1.msra.mxu0 %v554
  %556 = vmatprep.subr.mxu0 0.0
  %v557 = vand.u32 %v70, 4294901760
  %v558 = vsub.f32 %v70, %v557
  %v559 = vand.u32 %v558, 4294901760
  %560 = vmatpush1.msra.mxu0 %v559
  %561 = vmatprep.subr.mxu0 0.0
  %v562 = vand.u32 %v71, 4294901760
  %v563 = vsub.f32 %v71, %v562
  %v564 = vand.u32 %v563, 4294901760
  %565 = vmatpush1.msra.mxu0 %v564
  %566 = vmatprep.subr.mxu0 0.0
  %v567 = vand.u32 %v72, 4294901760
  %v568 = vsub.f32 %v72, %v567
  %v569 = vand.u32 %v568, 4294901760
  %570 = vmatpush1.msra.mxu0 %v569
  %571 = vmatprep.subr.mxu0 0.0
  %v572 = vand.u32 %v73, 4294901760
  %v573 = vsub.f32 %v73, %v572
  %v574 = vand.u32 %v573, 4294901760
  %575 = vmatpush1.msra.mxu0 %v574
  %576 = vmatprep.subr.mxu0 0.0
  %v577 = vand.u32 %v74, 4294901760
  %v578 = vsub.f32 %v74, %v577
  %v579 = vand.u32 %v578, 4294901760
  %580 = vmatpush1.msra.mxu0 %v579
  %581 = vmatprep.subr.mxu0 0.0
  %v582 = vand.u32 %v75, 4294901760
  %v583 = vsub.f32 %v75, %v582
  %v584 = vand.u32 %v583, 4294901760
  %585 = vmatpush1.msra.mxu0 %v584
  %586 = vmatprep.subr.mxu0 0.0
  %v587 = vand.u32 %v76, 4294901760
  %v588 = vsub.f32 %v76, %v587
  %v589 = vand.u32 %v588, 4294901760
  %590 = vmatpush1.msra.mxu0 %v589
  %591 = vmatprep.subr.mxu0 0.0
  %v592 = vand.u32 %v77, 4294901760
  %v593 = vsub.f32 %v77, %v592
  %v594 = vand.u32 %v593, 4294901760
  %595 = vmatpush1.msra.mxu0 %v594
  %596 = vmatprep.subr.mxu0 0.0
  %v597 = vand.u32 %v78, 4294901760
  %v598 = vsub.f32 %v78, %v597
  %v599 = vand.u32 %v598, 4294901760
  %600 = vmatpush1.msra.mxu0 %v599
  %601 = vmatprep.subr.mxu0 0.0
  %v602 = vand.u32 %v79, 4294901760
  %v603 = vsub.f32 %v79, %v602
  %v604 = vand.u32 %v603, 4294901760
  %605 = vmatpush1.msra.mxu0 %v604
  %606 = vmatprep.subr.mxu0 0.0
  %v607 = vand.u32 %v80, 4294901760
  %v608 = vsub.f32 %v80, %v607
  %v609 = vand.u32 %v608, 4294901760
  %610 = vmatpush1.msra.mxu0 %v609
  %611 = vmatprep.subr.mxu0 0.0
  %v612 = vand.u32 %v81, 4294901760
  %v613 = vsub.f32 %v81, %v612
  %v614 = vand.u32 %v613, 4294901760
  %615 = vmatpush1.msra.mxu0 %v614
  %616 = vmatprep.subr.mxu0 0.0
  %v617 = vand.u32 %v82, 4294901760
  %v618 = vsub.f32 %v82, %v617
  %v619 = vand.u32 %v618, 4294901760
  %620 = vmatpush1.msra.mxu0 %v619
  %621 = vmatprep.subr.mxu0 0.0
  %v622 = vand.u32 %v83, 4294901760
  %v623 = vsub.f32 %v83, %v622
  %v624 = vand.u32 %v623, 4294901760
  %625 = vmatpush1.msra.mxu0 %v624
  %626 = vmatprep.subr.mxu0 0.0
  %v627 = vand.u32 %v84, 4294901760
  %v628 = vsub.f32 %v84, %v627
  %v629 = vand.u32 %v628, 4294901760
  %630 = vmatpush1.msra.mxu0 %v629
  %631 = vmatprep.subr.mxu0 0.0
  %632 = vmatpush1.msra.mxu0 0.0
  %633 = vmatprep.subr.mxu0 0.0
  %634 = vmatpush1.msra.mxu0 0.0
  %635 = vmatprep.subr.mxu0 0.0
  %636 = vmatpush1.msra.mxu0 0.0
  %637 = vmatprep.subr.mxu0 0.0
  %638 = vmatpush1.msra.mxu0 0.0
  %639 = vmatprep.subr.mxu0 0.0
  %640 = vmatpush1.msra.mxu0 0.0
  %641 = vmatprep.subr.mxu0 0.0
  %642 = vmatpush1.msra.mxu0 0.0
  %643 = vmatprep.subr.mxu0 0.0
  %644 = vmatpush1.msra.mxu0 0.0
  %645 = vmatprep.subr.mxu0 0.0
  %646 = vmatpush1.msra.mxu0 0.0
  %647 = vmatprep.subr.mxu0 0.0
  %648 = vmatpush1.msra.mxu0 0.0
  %649 = vmatprep.subr.mxu0 0.0
  %650 = vmatpush1.msra.mxu0 0.0
  %651 = vmatprep.subr.mxu0 0.0
  %652 = vmatpush1.msra.mxu0 0.0
  %653 = vmatprep.subr.mxu0 0.0
  %654 = vmatpush1.msra.mxu0 0.0
  %655 = vmatprep.subr.mxu0 0.0
  %656 = vmatpush1.msra.mxu0 0.0
  %657 = vmatprep.subr.mxu0 0.0
  %658 = vmatpush1.msra.mxu0 0.0
  %659 = vmatprep.subr.mxu0 0.0
  %660 = vmatpush1.msra.mxu0 0.0
  %661 = vmatprep.subr.mxu0 0.0
  %662 = vmatpush1.msra.mxu0 0.0
  %663 = vmatprep.mubr.f32.mxu0 0.0
  %v664 = vand.u32 %v36, 4294901760
  %665 = vmatmul.mubr.f32.gmra.mrb[0].mxu0 %v664
  %v666 = vpop.f32.mrb[0].mxu0
  %v667 = vadd.f32 %v540, %v666
  %v668 = vpop.f32.mrb[0].mxu0
  %669 = vmatprep.mubr.f32.mxu0 0.0
  %v670 = vand.u32 %v37, 4294901760
  %671 = vmatmul.mubr.f32.gmra.mrb[0].mxu0 %v670
  %v672 = vpop.f32.mrb[0].mxu0
  %v673 = vadd.f32 %v548, %v672
  %v674 = vpop.f32.mrb[0].mxu0
  %675 = vdwg.mxu0
  %676 = vmatprep.subr.mxu0 0.0
  %v677 = vand.u32 %v69, 4294901760
  %678 = vmatpush1.msra.mxu0 %v677
  %679 = vmatprep.subr.mxu0 0.0
  %v680 = vand.u32 %v70, 4294901760
  %681 = vmatpush1.msra.mxu0 %v680
  %682 = vmatprep.subr.mxu0 0.0
  %v683 = vand.u32 %v71, 4294901760
  %684 = vmatpush1.msra.mxu0 %v683
  %685 = vmatprep.subr.mxu0 0.0
  %v686 = vand.u32 %v72, 4294901760
  %687 = vmatpush1.msra.mxu0 %v686
  %688 = vmatprep.subr.mxu0 0.0
  %v689 = vand.u32 %v73, 4294901760
  %690 = vmatpush1.msra.mxu0 %v689
  %691 = vmatprep.subr.mxu0 0.0
  %v692 = vand.u32 %v74, 4294901760
  %693 = vmatpush1.msra.mxu0 %v692
  %694 = vmatprep.subr.mxu0 0.0
  %v695 = vand.u32 %v75, 4294901760
  %696 = vmatpush1.msra.mxu0 %v695
  %697 = vmatprep.subr.mxu0 0.0
  %v698 = vand.u32 %v76, 4294901760
  %699 = vmatpush1.msra.mxu0 %v698
  %700 = vmatprep.subr.mxu0 0.0
  %v701 = vand.u32 %v77, 4294901760
  %702 = vmatpush1.msra.mxu0 %v701
  %703 = vmatprep.subr.mxu0 0.0
  %v704 = vand.u32 %v78, 4294901760
  %705 = vmatpush1.msra.mxu0 %v704
  %706 = vmatprep.subr.mxu0 0.0
  %v707 = vand.u32 %v79, 4294901760
  %708 = vmatpush1.msra.mxu0 %v707
  %709 = vmatprep.subr.mxu0 0.0
  %v710 = vand.u32 %v80, 4294901760
  %711 = vmatpush1.msra.mxu0 %v710
  %712 = vmatprep.subr.mxu0 0.0
  %v713 = vand.u32 %v81, 4294901760
  %714 = vmatpush1.msra.mxu0 %v713
  %715 = vmatprep.subr.mxu0 0.0
  %v716 = vand.u32 %v82, 4294901760
  %717 = vmatpush1.msra.mxu0 %v716
  %718 = vmatprep.subr.mxu0 0.0
  %v719 = vand.u32 %v83, 4294901760
  %720 = vmatpush1.msra.mxu0 %v719
  %721 = vmatprep.subr.mxu0 0.0
  %v722 = vand.u32 %v84, 4294901760
  %723 = vmatpush1.msra.mxu0 %v722
  %724 = vmatprep.subr.mxu0 0.0
  %725 = vmatpush1.msra.mxu0 0.0
  %726 = vmatprep.subr.mxu0 0.0
  %727 = vmatpush1.msra.mxu0 0.0
  %728 = vmatprep.subr.mxu0 0.0
  %729 = vmatpush1.msra.mxu0 0.0
  %730 = vmatprep.subr.mxu0 0.0
  %731 = vmatpush1.msra.mxu0 0.0
  %732 = vmatprep.subr.mxu0 0.0
  %733 = vmatpush1.msra.mxu0 0.0
  %734 = vmatprep.subr.mxu0 0.0
  %735 = vmatpush1.msra.mxu0 0.0
  %736 = vmatprep.subr.mxu0 0.0
  %737 = vmatpush1.msra.mxu0 0.0
  %738 = vmatprep.subr.mxu0 0.0
  %739 = vmatpush1.msra.mxu0 0.0
  %740 = vmatprep.subr.mxu0 0.0
  %741 = vmatpush1.msra.mxu0 0.0
  %742 = vmatprep.subr.mxu0 0.0
  %743 = vmatpush1.msra.mxu0 0.0
  %744 = vmatprep.subr.mxu0 0.0
  %745 = vmatpush1.msra.mxu0 0.0
  %746 = vmatprep.subr.mxu0 0.0
  %747 = vmatpush1.msra.mxu0 0.0
  %748 = vmatprep.subr.mxu0 0.0
  %749 = vmatpush1.msra.mxu0 0.0
  %750 = vmatprep.subr.mxu0 0.0
  %751 = vmatpush1.msra.mxu0 0.0
  %752 = vmatprep.subr.mxu0 0.0
  %753 = vmatpush1.msra.mxu0 0.0
  %754 = vmatprep.subr.mxu0 0.0
  %755 = vmatpush1.msra.mxu0 0.0
  %756 = vmatprep.mubr.f32.mxu0 0.0
  %v757 = vand.u32 %v36, 4294901760
  %758 = vmatmul.mubr.f32.gmra.mrb[0].mxu0 %v757
  %v759 = vpop.f32.mrb[0].mxu0
  %v760 = vadd.f32 %v667, %v759
  %v761 = vpop.f32.mrb[0].mxu0
  %762 = vmatprep.mubr.f32.mxu0 0.0
  %v763 = vand.u32 %v37, 4294901760
  %764 = vmatmul.mubr.f32.gmra.mrb[0].mxu0 %v763
  %v765 = vpop.f32.mrb[0].mxu0
  %v766 = vadd.f32 %v673, %v765
  %v767 = vpop.f32.mrb[0].mxu0
  %768 = vdwg.mxu0
  %769 = vmatprep.subr.mxu0 0.0
  %v770 = vand.u32 %v52, 4294901760
  %771 = vmatpush1.msra.mxu0 %v770
  %772 = vmatprep.subr.mxu0 0.0
  %v773 = vand.u32 %v53, 4294901760
  %774 = vmatpush1.msra.mxu0 %v773
  %775 = vmatprep.subr.mxu0 0.0
  %v776 = vand.u32 %v54, 4294901760
  %777 = vmatpush1.msra.mxu0 %v776
  %778 = vmatprep.subr.mxu0 0.0
  %v779 = vand.u32 %v55, 4294901760
  %780 = vmatpush1.msra.mxu0 %v779
  %781 = vmatprep.subr.mxu0 0.0
  %v782 = vand.u32 %v56, 4294901760
  %783 = vmatpush1.msra.mxu0 %v782
  %784 = vmatprep.subr.mxu0 0.0
  %v785 = vand.u32 %v57, 4294901760
  %786 = vmatpush1.msra.mxu0 %v785
  %787 = vmatprep.subr.mxu0 0.0
  %v788 = vand.u32 %v58, 4294901760
  %789 = vmatpush1.msra.mxu0 %v788
  %790 = vmatprep.subr.mxu0 0.0
  %v791 = vand.u32 %v59, 4294901760
  %792 = vmatpush1.msra.mxu0 %v791
  %793 = vmatprep.subr.mxu0 0.0
  %v794 = vand.u32 %v60, 4294901760
  %795 = vmatpush1.msra.mxu0 %v794
  %796 = vmatprep.subr.mxu0 0.0
  %v797 = vand.u32 %v61, 4294901760
  %798 = vmatpush1.msra.mxu0 %v797
  %799 = vmatprep.subr.mxu0 0.0
  %v800 = vand.u32 %v62, 4294901760
  %801 = vmatpush1.msra.mxu0 %v800
  %802 = vmatprep.subr.mxu0 0.0
  %v803 = vand.u32 %v63, 4294901760
  %804 = vmatpush1.msra.mxu0 %v803
  %805 = vmatprep.subr.mxu0 0.0
  %v806 = vand.u32 %v64, 4294901760
  %807 = vmatpush1.msra.mxu0 %v806
  %808 = vmatprep.subr.mxu0 0.0
  %v809 = vand.u32 %v65, 4294901760
  %810 = vmatpush1.msra.mxu0 %v809
  %811 = vmatprep.subr.mxu0 0.0
  %v812 = vand.u32 %v66, 4294901760
  %813 = vmatpush1.msra.mxu0 %v812
  %814 = vmatprep.subr.mxu0 0.0
  %v815 = vand.u32 %v67, 4294901760
  %816 = vmatpush1.msra.mxu0 %v815
  %817 = vmatprep.subr.mxu0 0.0
  %818 = vmatpush1.msra.mxu0 0.0
  %819 = vmatprep.subr.mxu0 0.0
  %820 = vmatpush1.msra.mxu0 0.0
  %821 = vmatprep.subr.mxu0 0.0
  %822 = vmatpush1.msra.mxu0 0.0
  %823 = vmatprep.subr.mxu0 0.0
  %824 = vmatpush1.msra.mxu0 0.0
  %825 = vmatprep.subr.mxu0 0.0
  %826 = vmatpush1.msra.mxu0 0.0
  %827 = vmatprep.subr.mxu0 0.0
  %828 = vmatpush1.msra.mxu0 0.0
  %829 = vmatprep.subr.mxu0 0.0
  %830 = vmatpush1.msra.mxu0 0.0
  %831 = vmatprep.subr.mxu0 0.0
  %832 = vmatpush1.msra.mxu0 0.0
  %833 = vmatprep.subr.mxu0 0.0
  %834 = vmatpush1.msra.mxu0 0.0
  %835 = vmatprep.subr.mxu0 0.0
  %836 = vmatpush1.msra.mxu0 0.0
  %837 = vmatprep.subr.mxu0 0.0
  %838 = vmatpush1.msra.mxu0 0.0
  %839 = vmatprep.subr.mxu0 0.0
  %840 = vmatpush1.msra.mxu0 0.0
  %841 = vmatprep.subr.mxu0 0.0
  %842 = vmatpush1.msra.mxu0 0.0
  %843 = vmatprep.subr.mxu0 0.0
  %844 = vmatpush1.msra.mxu0 0.0
  %845 = vmatprep.subr.mxu0 0.0
  %846 = vmatpush1.msra.mxu0 0.0
  %847 = vmatprep.subr.mxu0 0.0
  %848 = vmatpush1.msra.mxu0 0.0
  %849 = vmatprep.mubr.f32.mxu0 0.0
  %v850 = vand.u32 %v43, 4294901760
  %v851 = vsub.f32 %v43, %v850
  %v852 = vand.u32 %v851, 4294901760
  %v853 = vsub.f32 %v851, %v852
  %v854 = vand.u32 %v853, 4294901760
  %855 = vmatmul.mubr.f32.gmra.mrb[0].mxu0 %v854
  %v856 = vpop.f32.mrb[0].mxu0
  %v857 = vadd.f32 %v760, %v856
  %v858 = vpop.f32.mrb[0].mxu0
  %859 = vmatprep.mubr.f32.mxu0 0.0
  %v860 = vand.u32 %v44, 4294901760
  %v861 = vsub.f32 %v44, %v860
  %v862 = vand.u32 %v861, 4294901760
  %v863 = vsub.f32 %v861, %v862
  %v864 = vand.u32 %v863, 4294901760
  %865 = vmatmul.mubr.f32.gmra.mrb[0].mxu0 %v864
  %v866 = vpop.f32.mrb[0].mxu0
  %v867 = vadd.f32 %v766, %v866
  %v868 = vpop.f32.mrb[0].mxu0
  %869 = vdwg.mxu0
  %870 = vmatprep.subr.mxu0 0.0
  %v871 = vand.u32 %v52, 4294901760
  %v872 = vsub.f32 %v52, %v871
  %v873 = vand.u32 %v872, 4294901760
  %v874 = vsub.f32 %v872, %v873
  %v875 = vand.u32 %v874, 4294901760
  %876 = vmatpush1.msra.mxu0 %v875
  %877 = vmatprep.subr.mxu0 0.0
  %v878 = vand.u32 %v53, 4294901760
  %v879 = vsub.f32 %v53, %v878
  %v880 = vand.u32 %v879, 4294901760
  %v881 = vsub.f32 %v879, %v880
  %v882 = vand.u32 %v881, 4294901760
  %883 = vmatpush1.msra.mxu0 %v882
  %884 = vmatprep.subr.mxu0 0.0
  %v885 = vand.u32 %v54, 4294901760
  %v886 = vsub.f32 %v54, %v885
  %v887 = vand.u32 %v886, 4294901760
  %v888 = vsub.f32 %v886, %v887
  %v889 = vand.u32 %v888, 4294901760
  %890 = vmatpush1.msra.mxu0 %v889
  %891 = vmatprep.subr.mxu0 0.0
  %v892 = vand.u32 %v55, 4294901760
  %v893 = vsub.f32 %v55, %v892
  %v894 = vand.u32 %v893, 4294901760
  %v895 = vsub.f32 %v893, %v894
  %v896 = vand.u32 %v895, 4294901760
  %897 = vmatpush1.msra.mxu0 %v896
  %898 = vmatprep.subr.mxu0 0.0
  %v899 = vand.u32 %v56, 4294901760
  %v900 = vsub.f32 %v56, %v899
  %v901 = vand.u32 %v900, 4294901760
  %v902 = vsub.f32 %v900, %v901
  %v903 = vand.u32 %v902, 4294901760
  %904 = vmatpush1.msra.mxu0 %v903
  %905 = vmatprep.subr.mxu0 0.0
  %v906 = vand.u32 %v57, 4294901760
  %v907 = vsub.f32 %v57, %v906
  %v908 = vand.u32 %v907, 4294901760
  %v909 = vsub.f32 %v907, %v908
  %v910 = vand.u32 %v909, 4294901760
  %911 = vmatpush1.msra.mxu0 %v910
  %912 = vmatprep.subr.mxu0 0.0
  %v913 = vand.u32 %v58, 4294901760
  %v914 = vsub.f32 %v58, %v913
  %v915 = vand.u32 %v914, 4294901760
  %v916 = vsub.f32 %v914, %v915
  %v917 = vand.u32 %v916, 4294901760
  %918 = vmatpush1.msra.mxu0 %v917
  %919 = vmatprep.subr.mxu0 0.0
  %v920 = vand.u32 %v59, 4294901760
  %v921 = vsub.f32 %v59, %v920
  %v922 = vand.u32 %v921, 4294901760
  %v923 = vsub.f32 %v921, %v922
  %v924 = vand.u32 %v923, 4294901760
  %925 = vmatpush1.msra.mxu0 %v924
  %926 = vmatprep.subr.mxu0 0.0
  %v927 = vand.u32 %v60, 4294901760
  %v928 = vsub.f32 %v60, %v927
  %v929 = vand.u32 %v928, 4294901760
  %v930 = vsub.f32 %v928, %v929
  %v931 = vand.u32 %v930, 4294901760
  %932 = vmatpush1.msra.mxu0 %v931
  %933 = vmatprep.subr.mxu0 0.0
  %v934 = vand.u32 %v61, 4294901760
  %v935 = vsub.f32 %v61, %v934
  %v936 = vand.u32 %v935, 4294901760
  %v937 = vsub.f32 %v935, %v936
  %v938 = vand.u32 %v937, 4294901760
  %939 = vmatpush1.msra.mxu0 %v938
  %940 = vmatprep.subr.mxu0 0.0
  %v941 = vand.u32 %v62, 4294901760
  %v942 = vsub.f32 %v62, %v941
  %v943 = vand.u32 %v942, 4294901760
  %v944 = vsub.f32 %v942, %v943
  %v945 = vand.u32 %v944, 4294901760
  %946 = vmatpush1.msra.mxu0 %v945
  %947 = vmatprep.subr.mxu0 0.0
  %v948 = vand.u32 %v63, 4294901760
  %v949 = vsub.f32 %v63, %v948
  %v950 = vand.u32 %v949, 4294901760
  %v951 = vsub.f32 %v949, %v950
  %v952 = vand.u32 %v951, 4294901760
  %953 = vmatpush1.msra.mxu0 %v952
  %954 = vmatprep.subr.mxu0 0.0
  %v955 = vand.u32 %v64, 4294901760
  %v956 = vsub.f32 %v64, %v955
  %v957 = vand.u32 %v956, 4294901760
  %v958 = vsub.f32 %v956, %v957
  %v959 = vand.u32 %v958, 4294901760
  %960 = vmatpush1.msra.mxu0 %v959
  %961 = vmatprep.subr.mxu0 0.0
  %v962 = vand.u32 %v65, 4294901760
  %v963 = vsub.f32 %v65, %v962
  %v964 = vand.u32 %v963, 4294901760
  %v965 = vsub.f32 %v963, %v964
  %v966 = vand.u32 %v965, 4294901760
  %967 = vmatpush1.msra.mxu0 %v966
  %968 = vmatprep.subr.mxu0 0.0
  %v969 = vand.u32 %v66, 4294901760
  %v970 = vsub.f32 %v66, %v969
  %v971 = vand.u32 %v970, 4294901760
  %v972 = vsub.f32 %v970, %v971
  %v973 = vand.u32 %v972, 4294901760
  %974 = vmatpush1.msra.mxu0 %v973
  %975 = vmatprep.subr.mxu0 0.0
  %v976 = vand.u32 %v67, 4294901760
  %v977 = vsub.f32 %v67, %v976
  %v978 = vand.u32 %v977, 4294901760
  %v979 = vsub.f32 %v977, %v978
  %v980 = vand.u32 %v979, 4294901760
  %981 = vmatpush1.msra.mxu0 %v980
  %982 = vmatprep.subr.mxu0 0.0
  %983 = vmatpush1.msra.mxu0 0.0
  %984 = vmatprep.subr.mxu0 0.0
  %985 = vmatpush1.msra.mxu0 0.0
  %986 = vmatprep.subr.mxu0 0.0
  %987 = vmatpush1.msra.mxu0 0.0
  %988 = vmatprep.subr.mxu0 0.0
  %989 = vmatpush1.msra.mxu0 0.0
  %990 = vmatprep.subr.mxu0 0.0
  %991 = vmatpush1.msra.mxu0 0.0
  %992 = vmatprep.subr.mxu0 0.0
  %993 = vmatpush1.msra.mxu0 0.0
  %994 = vmatprep.subr.mxu0 0.0
  %995 = vmatpush1.msra.mxu0 0.0
  %996 = vmatprep.subr.mxu0 0.0
  %997 = vmatpush1.msra.mxu0 0.0
  %998 = vmatprep.subr.mxu0 0.0
  %999 = vmatpush1.msra.mxu0 0.0
  %1000 = vmatprep.subr.mxu0 0.0
  %1001 = vmatpush1.msra.mxu0 0.0
  %1002 = vmatprep.subr.mxu0 0.0
  %1003 = vmatpush1.msra.mxu0 0.0
  %1004 = vmatprep.subr.mxu0 0.0
  %1005 = vmatpush1.msra.mxu0 0.0
  %1006 = vmatprep.subr.mxu0 0.0
  %1007 = vmatpush1.msra.mxu0 0.0
  %1008 = vmatprep.subr.mxu0 0.0
  %1009 = vmatpush1.msra.mxu0 0.0
  %1010 = vmatprep.subr.mxu0 0.0
  %1011 = vmatpush1.msra.mxu0 0.0
  %1012 = vmatprep.subr.mxu0 0.0
  %1013 = vmatpush1.msra.mxu0 0.0
  %1014 = vmatprep.mubr.f32.mxu0 0.0
  %v1015 = vand.u32 %v43, 4294901760
  %1016 = vmatmul.mubr.f32.gmra.mrb[0].mxu0 %v1015
  %v1017 = vpop.f32.mrb[0].mxu0
  %v1018 = vadd.f32 %v857, %v1017
  %v1019 = vpop.f32.mrb[0].mxu0
  %1020 = vmatprep.mubr.f32.mxu0 0.0
  %v1021 = vand.u32 %v44, 4294901760
  %1022 = vmatmul.mubr.f32.gmra.mrb[0].mxu0 %v1021
  %v1023 = vpop.f32.mrb[0].mxu0
  %v1024 = vadd.f32 %v867, %v1023
  %v1025 = vpop.f32.mrb[0].mxu0
  %1026 = vdwg.mxu0
  %1027 = vmatprep.subr.mxu0 0.0
  %v1028 = vand.u32 %v52, 4294901760
  %v1029 = vsub.f32 %v52, %v1028
  %1030 = vmatpush1.msra.mxu0 %v1029
  %1031 = vmatprep.subr.mxu0 0.0
  %v1032 = vand.u32 %v53, 4294901760
  %v1033 = vsub.f32 %v53, %v1032
  %1034 = vmatpush1.msra.mxu0 %v1033
  %1035 = vmatprep.subr.mxu0 0.0
  %v1036 = vand.u32 %v54, 4294901760
  %v1037 = vsub.f32 %v54, %v1036
  %1038 = vmatpush1.msra.mxu0 %v1037
  %1039 = vmatprep.subr.mxu0 0.0
  %v1040 = vand.u32 %v55, 4294901760
  %v1041 = vsub.f32 %v55, %v1040
  %1042 = vmatpush1.msra.mxu0 %v1041
  %1043 = vmatprep.subr.mxu0 0.0
  %v1044 = vand.u32 %v56, 4294901760
  %v1045 = vsub.f32 %v56, %v1044
  %1046 = vmatpush1.msra.mxu0 %v1045
  %1047 = vmatprep.subr.mxu0 0.0
  %v1048 = vand.u32 %v57, 4294901760
  %v1049 = vsub.f32 %v57, %v1048
  %1050 = vmatpush1.msra.mxu0 %v1049
  %1051 = vmatprep.subr.mxu0 0.0
  %v1052 = vand.u32 %v58, 4294901760
  %v1053 = vsub.f32 %v58, %v1052
  %1054 = vmatpush1.msra.mxu0 %v1053
  %1055 = vmatprep.subr.mxu0 0.0
  %v1056 = vand.u32 %v59, 4294901760
  %v1057 = vsub.f32 %v59, %v1056
  %1058 = vmatpush1.msra.mxu0 %v1057
  %1059 = vmatprep.subr.mxu0 0.0
  %v1060 = vand.u32 %v60, 4294901760
  %v1061 = vsub.f32 %v60, %v1060
  %1062 = vmatpush1.msra.mxu0 %v1061
  %1063 = vmatprep.subr.mxu0 0.0
  %v1064 = vand.u32 %v61, 4294901760
  %v1065 = vsub.f32 %v61, %v1064
  %1066 = vmatpush1.msra.mxu0 %v1065
  %1067 = vmatprep.subr.mxu0 0.0
  %v1068 = vand.u32 %v62, 4294901760
  %v1069 = vsub.f32 %v62, %v1068
  %1070 = vmatpush1.msra.mxu0 %v1069
  %1071 = vmatprep.subr.mxu0 0.0
  %v1072 = vand.u32 %v63, 4294901760
  %v1073 = vsub.f32 %v63, %v1072
  %1074 = vmatpush1.msra.mxu0 %v1073
  %1075 = vmatprep.subr.mxu0 0.0
  %v1076 = vand.u32 %v64, 4294901760
  %v1077 = vsub.f32 %v64, %v1076
  %1078 = vmatpush1.msra.mxu0 %v1077
  %1079 = vmatprep.subr.mxu0 0.0
  %v1080 = vand.u32 %v65, 4294901760
  %v1081 = vsub.f32 %v65, %v1080
  %1082 = vmatpush1.msra.mxu0 %v1081
  %1083 = vmatprep.subr.mxu0 0.0
  %v1084 = vand.u32 %v66, 4294901760
  %v1085 = vsub.f32 %v66, %v1084
  %1086 = vmatpush1.msra.mxu0 %v1085
  %1087 = vmatprep.subr.mxu0 0.0
  %v1088 = vand.u32 %v67, 4294901760
  %v1089 = vsub.f32 %v67, %v1088
  %1090 = vmatpush1.msra.mxu0 %v1089
  %1091 = vmatprep.subr.mxu0 0.0
  %1092 = vmatpush1.msra.mxu0 0.0
  %1093 = vmatprep.subr.mxu0 0.0
  %1094 = vmatpush1.msra.mxu0 0.0
  %1095 = vmatprep.subr.mxu0 0.0
  %1096 = vmatpush1.msra.mxu0 0.0
  %1097 = vmatprep.subr.mxu0 0.0
  %1098 = vmatpush1.msra.mxu0 0.0
  %1099 = vmatprep.subr.mxu0 0.0
  %1100 = vmatpush1.msra.mxu0 0.0
  %1101 = vmatprep.subr.mxu0 0.0
  %1102 = vmatpush1.msra.mxu0 0.0
  %1103 = vmatprep.subr.mxu0 0.0
  %1104 = vmatpush1.msra.mxu0 0.0
  %1105 = vmatprep.subr.mxu0 0.0
  %1106 = vmatpush1.msra.mxu0 0.0
  %1107 = vmatprep.subr.mxu0 0.0
  %1108 = vmatpush1.msra.mxu0 0.0
  %1109 = vmatprep.subr.mxu0 0.0
  %1110 = vmatpush1.msra.mxu0 0.0
  %1111 = vmatprep.subr.mxu0 0.0
  %1112 = vmatpush1.msra.mxu0 0.0
  %1113 = vmatprep.subr.mxu0 0.0
  %1114 = vmatpush1.msra.mxu0 0.0
  %1115 = vmatprep.subr.mxu0 0.0
  %1116 = vmatpush1.msra.mxu0 0.0
  %1117 = vmatprep.subr.mxu0 0.0
  %1118 = vmatpush1.msra.mxu0 0.0
  %1119 = vmatprep.subr.mxu0 0.0
  %1120 = vmatpush1.msra.mxu0 0.0
  %1121 = vmatprep.subr.mxu0 0.0
  %1122 = vmatpush1.msra.mxu0 0.0
  %1123 = vmatprep.mubr.f32.mxu0 0.0
  %v1124 = vand.u32 %v43, 4294901760
  %v1125 = vsub.f32 %v43, %v1124
  %1126 = vmatmul.mubr.f32.gmra.mrb[0].mxu0 %v1125
  %v1127 = vpop.f32.mrb[0].mxu0
  %v1128 = vadd.f32 %v1018, %v1127
  %v1129 = vpop.f32.mrb[0].mxu0
  %1130 = vmatprep.mubr.f32.mxu0 0.0
  %v1131 = vand.u32 %v44, 4294901760
  %v1132 = vsub.f32 %v44, %v1131
  %1133 = vmatmul.mubr.f32.gmra.mrb[0].mxu0 %v1132
  %v1134 = vpop.f32.mrb[0].mxu0
  %v1135 = vadd.f32 %v1024, %v1134
  %v1136 = vpop.f32.mrb[0].mxu0
  %1137 = vdwg.mxu0
  %1138 = vmatprep.subr.mxu0 0.0
  %v1139 = vand.u32 %v52, 4294901760
  %1140 = vmatpush1.msra.mxu0 %v1139
  %1141 = vmatprep.subr.mxu0 0.0
  %v1142 = vand.u32 %v53, 4294901760
  %1143 = vmatpush1.msra.mxu0 %v1142
  %1144 = vmatprep.subr.mxu0 0.0
  %v1145 = vand.u32 %v54, 4294901760
  %1146 = vmatpush1.msra.mxu0 %v1145
  %1147 = vmatprep.subr.mxu0 0.0
  %v1148 = vand.u32 %v55, 4294901760
  %1149 = vmatpush1.msra.mxu0 %v1148
  %1150 = vmatprep.subr.mxu0 0.0
  %v1151 = vand.u32 %v56, 4294901760
  %1152 = vmatpush1.msra.mxu0 %v1151
  %1153 = vmatprep.subr.mxu0 0.0
  %v1154 = vand.u32 %v57, 4294901760
  %1155 = vmatpush1.msra.mxu0 %v1154
  %1156 = vmatprep.subr.mxu0 0.0
  %v1157 = vand.u32 %v58, 4294901760
  %1158 = vmatpush1.msra.mxu0 %v1157
  %1159 = vmatprep.subr.mxu0 0.0
  %v1160 = vand.u32 %v59, 4294901760
  %1161 = vmatpush1.msra.mxu0 %v1160
  %1162 = vmatprep.subr.mxu0 0.0
  %v1163 = vand.u32 %v60, 4294901760
  %1164 = vmatpush1.msra.mxu0 %v1163
  %1165 = vmatprep.subr.mxu0 0.0
  %v1166 = vand.u32 %v61, 4294901760
  %1167 = vmatpush1.msra.mxu0 %v1166
  %1168 = vmatprep.subr.mxu0 0.0
  %v1169 = vand.u32 %v62, 4294901760
  %1170 = vmatpush1.msra.mxu0 %v1169
  %1171 = vmatprep.subr.mxu0 0.0
  %v1172 = vand.u32 %v63, 4294901760
  %1173 = vmatpush1.msra.mxu0 %v1172
  %1174 = vmatprep.subr.mxu0 0.0
  %v1175 = vand.u32 %v64, 4294901760
  %1176 = vmatpush1.msra.mxu0 %v1175
  %1177 = vmatprep.subr.mxu0 0.0
  %v1178 = vand.u32 %v65, 4294901760
  %1179 = vmatpush1.msra.mxu0 %v1178
  %1180 = vmatprep.subr.mxu0 0.0
  %v1181 = vand.u32 %v66, 4294901760
  %1182 = vmatpush1.msra.mxu0 %v1181
  %1183 = vmatprep.subr.mxu0 0.0
  %v1184 = vand.u32 %v67, 4294901760
  %1185 = vmatpush1.msra.mxu0 %v1184
  %1186 = vmatprep.subr.mxu0 0.0
  %1187 = vmatpush1.msra.mxu0 0.0
  %1188 = vmatprep.subr.mxu0 0.0
  %1189 = vmatpush1.msra.mxu0 0.0
  %1190 = vmatprep.subr.mxu0 0.0
  %1191 = vmatpush1.msra.mxu0 0.0
  %1192 = vmatprep.subr.mxu0 0.0
  %1193 = vmatpush1.msra.mxu0 0.0
  %1194 = vmatprep.subr.mxu0 0.0
  %1195 = vmatpush1.msra.mxu0 0.0
  %1196 = vmatprep.subr.mxu0 0.0
  %1197 = vmatpush1.msra.mxu0 0.0
  %1198 = vmatprep.subr.mxu0 0.0
  %1199 = vmatpush1.msra.mxu0 0.0
  %1200 = vmatprep.subr.mxu0 0.0
  %1201 = vmatpush1.msra.mxu0 0.0
  %1202 = vmatprep.subr.mxu0 0.0
  %1203 = vmatpush1.msra.mxu0 0.0
  %1204 = vmatprep.subr.mxu0 0.0
  %1205 = vmatpush1.msra.mxu0 0.0
  %1206 = vmatprep.subr.mxu0 0.0
  %1207 = vmatpush1.msra.mxu0 0.0
  %1208 = vmatprep.subr.mxu0 0.0
  %1209 = vmatpush1.msra.mxu0 0.0
  %1210 = vmatprep.subr.mxu0 0.0
  %1211 = vmatpush1.msra.mxu0 0.0
  %1212 = vmatprep.subr.mxu0 0.0
  %1213 = vmatpush1.msra.mxu0 0.0
  %1214 = vmatprep.subr.mxu0 0.0
  %1215 = vmatpush1.msra.mxu0 0.0
  %1216 = vmatprep.subr.mxu0 0.0
  %1217 = vmatpush1.msra.mxu0 0.0
  %1218 = vmatprep.mubr.f32.mxu0 0.0
  %v1219 = vand.u32 %v43, 4294901760
  %v1220 = vsub.f32 %v43, %v1219
  %v1221 = vand.u32 %v1220, 4294901760
  %1222 = vmatmul.mubr.f32.gmra.mrb[0].mxu0 %v1221
  %v1223 = vpop.f32.mrb[0].mxu0
  %v1224 = vadd.f32 %v1128, %v1223
  %v1225 = vpop.f32.mrb[0].mxu0
  %1226 = vmatprep.mubr.f32.mxu0 0.0
  %v1227 = vand.u32 %v44, 4294901760
  %v1228 = vsub.f32 %v44, %v1227
  %v1229 = vand.u32 %v1228, 4294901760
  %1230 = vmatmul.mubr.f32.gmra.mrb[0].mxu0 %v1229
  %v1231 = vpop.f32.mrb[0].mxu0
  %v1232 = vadd.f32 %v1135, %v1231
  %v1233 = vpop.f32.mrb[0].mxu0
  %1234 = vdwg.mxu0
  %1235 = vmatprep.subr.mxu0 0.0
  %v1236 = vand.u32 %v52, 4294901760
  %v1237 = vsub.f32 %v52, %v1236
  %v1238 = vand.u32 %v1237, 4294901760
  %1239 = vmatpush1.msra.mxu0 %v1238
  %1240 = vmatprep.subr.mxu0 0.0
  %v1241 = vand.u32 %v53, 4294901760
  %v1242 = vsub.f32 %v53, %v1241
  %v1243 = vand.u32 %v1242, 4294901760
  %1244 = vmatpush1.msra.mxu0 %v1243
  %1245 = vmatprep.subr.mxu0 0.0
  %v1246 = vand.u32 %v54, 4294901760
  %v1247 = vsub.f32 %v54, %v1246
  %v1248 = vand.u32 %v1247, 4294901760
  %1249 = vmatpush1.msra.mxu0 %v1248
  %1250 = vmatprep.subr.mxu0 0.0
  %v1251 = vand.u32 %v55, 4294901760
  %v1252 = vsub.f32 %v55, %v1251
  %v1253 = vand.u32 %v1252, 4294901760
  %1254 = vmatpush1.msra.mxu0 %v1253
  %1255 = vmatprep.subr.mxu0 0.0
  %v1256 = vand.u32 %v56, 4294901760
  %v1257 = vsub.f32 %v56, %v1256
  %v1258 = vand.u32 %v1257, 4294901760
  %1259 = vmatpush1.msra.mxu0 %v1258
  %1260 = vmatprep.subr.mxu0 0.0
  %v1261 = vand.u32 %v57, 4294901760
  %v1262 = vsub.f32 %v57, %v1261
  %v1263 = vand.u32 %v1262, 4294901760
  %1264 = vmatpush1.msra.mxu0 %v1263
  %1265 = vmatprep.subr.mxu0 0.0
  %v1266 = vand.u32 %v58, 4294901760
  %v1267 = vsub.f32 %v58, %v1266
  %v1268 = vand.u32 %v1267, 4294901760
  %1269 = vmatpush1.msra.mxu0 %v1268
  %1270 = vmatprep.subr.mxu0 0.0
  %v1271 = vand.u32 %v59, 4294901760
  %v1272 = vsub.f32 %v59, %v1271
  %v1273 = vand.u32 %v1272, 4294901760
  %1274 = vmatpush1.msra.mxu0 %v1273
  %1275 = vmatprep.subr.mxu0 0.0
  %v1276 = vand.u32 %v60, 4294901760
  %v1277 = vsub.f32 %v60, %v1276
  %v1278 = vand.u32 %v1277, 4294901760
  %1279 = vmatpush1.msra.mxu0 %v1278
  %1280 = vmatprep.subr.mxu0 0.0
  %v1281 = vand.u32 %v61, 4294901760
  %v1282 = vsub.f32 %v61, %v1281
  %v1283 = vand.u32 %v1282, 4294901760
  %1284 = vmatpush1.msra.mxu0 %v1283
  %1285 = vmatprep.subr.mxu0 0.0
  %v1286 = vand.u32 %v62, 4294901760
  %v1287 = vsub.f32 %v62, %v1286
  %v1288 = vand.u32 %v1287, 4294901760
  %1289 = vmatpush1.msra.mxu0 %v1288
  %1290 = vmatprep.subr.mxu0 0.0
  %v1291 = vand.u32 %v63, 4294901760
  %v1292 = vsub.f32 %v63, %v1291
  %v1293 = vand.u32 %v1292, 4294901760
  %1294 = vmatpush1.msra.mxu0 %v1293
  %1295 = vmatprep.subr.mxu0 0.0
  %v1296 = vand.u32 %v64, 4294901760
  %v1297 = vsub.f32 %v64, %v1296
  %v1298 = vand.u32 %v1297, 4294901760
  %1299 = vmatpush1.msra.mxu0 %v1298
  %1300 = vmatprep.subr.mxu0 0.0
  %v1301 = vand.u32 %v65, 4294901760
  %v1302 = vsub.f32 %v65, %v1301
  %v1303 = vand.u32 %v1302, 4294901760
  %1304 = vmatpush1.msra.mxu0 %v1303
  %1305 = vmatprep.subr.mxu0 0.0
  %v1306 = vand.u32 %v66, 4294901760
  %v1307 = vsub.f32 %v66, %v1306
  %v1308 = vand.u32 %v1307, 4294901760
  %1309 = vmatpush1.msra.mxu0 %v1308
  %1310 = vmatprep.subr.mxu0 0.0
  %v1311 = vand.u32 %v67, 4294901760
  %v1312 = vsub.f32 %v67, %v1311
  %v1313 = vand.u32 %v1312, 4294901760
  %1314 = vmatpush1.msra.mxu0 %v1313
  %1315 = vmatprep.subr.mxu0 0.0
  %1316 = vmatpush1.msra.mxu0 0.0
  %1317 = vmatprep.subr.mxu0 0.0
  %1318 = vmatpush1.msra.mxu0 0.0
  %1319 = vmatprep.subr.mxu0 0.0
  %1320 = vmatpush1.msra.mxu0 0.0
  %1321 = vmatprep.subr.mxu0 0.0
  %1322 = vmatpush1.msra.mxu0 0.0
  %1323 = vmatprep.subr.mxu0 0.0
  %1324 = vmatpush1.msra.mxu0 0.0
  %1325 = vmatprep.subr.mxu0 0.0
  %1326 = vmatpush1.msra.mxu0 0.0
  %1327 = vmatprep.subr.mxu0 0.0
  %1328 = vmatpush1.msra.mxu0 0.0
  %1329 = vmatprep.subr.mxu0 0.0
  %1330 = vmatpush1.msra.mxu0 0.0
  %1331 = vmatprep.subr.mxu0 0.0
  %1332 = vmatpush1.msra.mxu0 0.0
  %1333 = vmatprep.subr.mxu0 0.0
  %1334 = vmatpush1.msra.mxu0 0.0
  %1335 = vmatprep.subr.mxu0 0.0
  %1336 = vmatpush1.msra.mxu0 0.0
  %1337 = vmatprep.subr.mxu0 0.0
  %1338 = vmatpush1.msra.mxu0 0.0
  %1339 = vmatprep.subr.mxu0 0.0
  %1340 = vmatpush1.msra.mxu0 0.0
  %1341 = vmatprep.subr.mxu0 0.0
  %1342 = vmatpush1.msra.mxu0 0.0
  %1343 = vmatprep.subr.mxu0 0.0
  %1344 = vmatpush1.msra.mxu0 0.0
  %1345 = vmatprep.subr.mxu0 0.0
  %1346 = vmatpush1.msra.mxu0 0.0
  %1347 = vmatprep.mubr.f32.mxu0 0.0
  %v1348 = vand.u32 %v43, 4294901760
  %1349 = vmatmul.mubr.f32.gmra.mrb[0].mxu0 %v1348
  %v1350 = vpop.f32.mrb[0].mxu0
  %v1351 = vadd.f32 %v1224, %v1350
  %v1352 = vpop.f32.mrb[0].mxu0
  %1353 = vmatprep.mubr.f32.mxu0 0.0
  %v1354 = vand.u32 %v44, 4294901760
  %1355 = vmatmul.mubr.f32.gmra.mrb[0].mxu0 %v1354
  %v1356 = vpop.f32.mrb[0].mxu0
  %v1357 = vadd.f32 %v1232, %v1356
  %v1358 = vpop.f32.mrb[0].mxu0
  %1359 = vdwg.mxu0
  %1360 = vmatprep.subr.mxu0 0.0
  %v1361 = vand.u32 %v52, 4294901760
  %1362 = vmatpush1.msra.mxu0 %v1361
  %1363 = vmatprep.subr.mxu0 0.0
  %v1364 = vand.u32 %v53, 4294901760
  %1365 = vmatpush1.msra.mxu0 %v1364
  %1366 = vmatprep.subr.mxu0 0.0
  %v1367 = vand.u32 %v54, 4294901760
  %1368 = vmatpush1.msra.mxu0 %v1367
  %1369 = vmatprep.subr.mxu0 0.0
  %v1370 = vand.u32 %v55, 4294901760
  %1371 = vmatpush1.msra.mxu0 %v1370
  %1372 = vmatprep.subr.mxu0 0.0
  %v1373 = vand.u32 %v56, 4294901760
  %1374 = vmatpush1.msra.mxu0 %v1373
  %1375 = vmatprep.subr.mxu0 0.0
  %v1376 = vand.u32 %v57, 4294901760
  %1377 = vmatpush1.msra.mxu0 %v1376
  %1378 = vmatprep.subr.mxu0 0.0
  %v1379 = vand.u32 %v58, 4294901760
  %1380 = vmatpush1.msra.mxu0 %v1379
  %1381 = vmatprep.subr.mxu0 0.0
  %v1382 = vand.u32 %v59, 4294901760
  %1383 = vmatpush1.msra.mxu0 %v1382
  %1384 = vmatprep.subr.mxu0 0.0
  %v1385 = vand.u32 %v60, 4294901760
  %1386 = vmatpush1.msra.mxu0 %v1385
  %1387 = vmatprep.subr.mxu0 0.0
  %v1388 = vand.u32 %v61, 4294901760
  %1389 = vmatpush1.msra.mxu0 %v1388
  %1390 = vmatprep.subr.mxu0 0.0
  %v1391 = vand.u32 %v62, 4294901760
  %1392 = vmatpush1.msra.mxu0 %v1391
  %1393 = vmatprep.subr.mxu0 0.0
  %v1394 = vand.u32 %v63, 4294901760
  %1395 = vmatpush1.msra.mxu0 %v1394
  %1396 = vmatprep.subr.mxu0 0.0
  %v1397 = vand.u32 %v64, 4294901760
  %1398 = vmatpush1.msra.mxu0 %v1397
  %1399 = vmatprep.subr.mxu0 0.0
  %v1400 = vand.u32 %v65, 4294901760
  %1401 = vmatpush1.msra.mxu0 %v1400
  %1402 = vmatprep.subr.mxu0 0.0
  %v1403 = vand.u32 %v66, 4294901760
  %1404 = vmatpush1.msra.mxu0 %v1403
  %1405 = vmatprep.subr.mxu0 0.0
  %v1406 = vand.u32 %v67, 4294901760
  %1407 = vmatpush1.msra.mxu0 %v1406
  %1408 = vmatprep.subr.mxu0 0.0
  %1409 = vmatpush1.msra.mxu0 0.0
  %1410 = vmatprep.subr.mxu0 0.0
  %1411 = vmatpush1.msra.mxu0 0.0
  %1412 = vmatprep.subr.mxu0 0.0
  %1413 = vmatpush1.msra.mxu0 0.0
  %1414 = vmatprep.subr.mxu0 0.0
  %1415 = vmatpush1.msra.mxu0 0.0
  %1416 = vmatprep.subr.mxu0 0.0
  %1417 = vmatpush1.msra.mxu0 0.0
  %1418 = vmatprep.subr.mxu0 0.0
  %1419 = vmatpush1.msra.mxu0 0.0
  %1420 = vmatprep.subr.mxu0 0.0
  %1421 = vmatpush1.msra.mxu0 0.0
  %1422 = vmatprep.subr.mxu0 0.0
  %1423 = vmatpush1.msra.mxu0 0.0
  %1424 = vmatprep.subr.mxu0 0.0
  %1425 = vmatpush1.msra.mxu0 0.0
  %1426 = vmatprep.subr.mxu0 0.0
  %1427 = vmatpush1.msra.mxu0 0.0
  %1428 = vmatprep.subr.mxu0 0.0
  %1429 = vmatpush1.msra.mxu0 0.0
  %1430 = vmatprep.subr.mxu0 0.0
  %1431 = vmatpush1.msra.mxu0 0.0
  %1432 = vmatprep.subr.mxu0 0.0
  %1433 = vmatpush1.msra.mxu0 0.0
  %1434 = vmatprep.subr.mxu0 0.0
  %1435 = vmatpush1.msra.mxu0 0.0
  %1436 = vmatprep.subr.mxu0 0.0
  %1437 = vmatpush1.msra.mxu0 0.0
  %1438 = vmatprep.subr.mxu0 0.0
  %1439 = vmatpush1.msra.mxu0 0.0
  %1440 = vmatprep.mubr.f32.mxu0 0.0
  %v1441 = vand.u32 %v43, 4294901760
  %1442 = vmatmul.mubr.f32.gmra.mrb[0].mxu0 %v1441
  %v1443 = vpop.f32.mrb[0].mxu0
  %v1444 = vadd.f32 %v1351, %v1443
  %v1445 = vpop.f32.mrb[0].mxu0
  %1446 = vmatprep.mubr.f32.mxu0 0.0
  %v1447 = vand.u32 %v44, 4294901760
  %1448 = vmatmul.mubr.f32.gmra.mrb[0].mxu0 %v1447
  %v1449 = vpop.f32.mrb[0].mxu0
  %v1450 = vadd.f32 %v1357, %v1449
  %v1451 = vpop.f32.mrb[0].mxu0
  %1452 = vdwg.mxu0
  %s1453 = scalar_lea.vmem %s1, 256
  %v1454 = vld [vmem:[%s1453] sm:$0xff]
  %v1455 = vld [vmem:[%s1453 + $0x8] sm:$0xff]
  %v1456 = vld [vmem:[%s1453 + $0x10] sm:$0xff]
  %v1457 = vld [vmem:[%s1453 + $0x18] sm:$0xff]
  %v1458 = vld [vmem:[%s1453 + $0x20] sm:$0xff]
  %v1459 = vld [vmem:[%s1453 + $0x28] sm:$0xff]
  %v1460 = vld [vmem:[%s1453 + $0x30] sm:$0xff]
  %v1461 = vld [vmem:[%s1453 + $0x38] sm:$0xff]
  %v1462 = vld [vmem:[%s1453 + $0x40] sm:$0xff]
  %v1463 = vld [vmem:[%s1453 + $0x48] sm:$0xff]
  %v1464 = vld [vmem:[%s1453 + $0x50] sm:$0xff]
  %v1465 = vld [vmem:[%s1453 + $0x58] sm:$0xff]
  %v1466 = vld [vmem:[%s1453 + $0x60] sm:$0xff]
  %v1467 = vld [vmem:[%s1453 + $0x68] sm:$0xff]
  %v1468 = vld [vmem:[%s1453 + $0x70] sm:$0xff]
  %v1469 = vld [vmem:[%s1453 + $0x78] sm:$0xff]
  %1470 = vmatprep.subr.mxu0 0.0
  %v1471 = vand.u32 %v1454, 4294901760
  %1472 = vmatpush1.msra.mxu0 %v1471
  %1473 = vmatprep.subr.mxu0 0.0
  %v1474 = vand.u32 %v1455, 4294901760
  %1475 = vmatpush1.msra.mxu0 %v1474
  %1476 = vmatprep.subr.mxu0 0.0
  %v1477 = vand.u32 %v1456, 4294901760
  %1478 = vmatpush1.msra.mxu0 %v1477
  %1479 = vmatprep.subr.mxu0 0.0
  %v1480 = vand.u32 %v1457, 4294901760
  %1481 = vmatpush1.msra.mxu0 %v1480
  %1482 = vmatprep.subr.mxu0 0.0
  %v1483 = vand.u32 %v1458, 4294901760
  %1484 = vmatpush1.msra.mxu0 %v1483
  %1485 = vmatprep.subr.mxu0 0.0
  %v1486 = vand.u32 %v1459, 4294901760
  %1487 = vmatpush1.msra.mxu0 %v1486
  %1488 = vmatprep.subr.mxu0 0.0
  %v1489 = vand.u32 %v1460, 4294901760
  %1490 = vmatpush1.msra.mxu0 %v1489
  %1491 = vmatprep.subr.mxu0 0.0
  %v1492 = vand.u32 %v1461, 4294901760
  %1493 = vmatpush1.msra.mxu0 %v1492
  %1494 = vmatprep.subr.mxu0 0.0
  %v1495 = vand.u32 %v1462, 4294901760
  %1496 = vmatpush1.msra.mxu0 %v1495
  %1497 = vmatprep.subr.mxu0 0.0
  %v1498 = vand.u32 %v1463, 4294901760
  %1499 = vmatpush1.msra.mxu0 %v1498
  %1500 = vmatprep.subr.mxu0 0.0
  %v1501 = vand.u32 %v1464, 4294901760
  %1502 = vmatpush1.msra.mxu0 %v1501
  %1503 = vmatprep.subr.mxu0 0.0
  %v1504 = vand.u32 %v1465, 4294901760
  %1505 = vmatpush1.msra.mxu0 %v1504
  %1506 = vmatprep.subr.mxu0 0.0
  %v1507 = vand.u32 %v1466, 4294901760
  %1508 = vmatpush1.msra.mxu0 %v1507
  %1509 = vmatprep.subr.mxu0 0.0
  %v1510 = vand.u32 %v1467, 4294901760
  %1511 = vmatpush1.msra.mxu0 %v1510
  %1512 = vmatprep.subr.mxu0 0.0
  %v1513 = vand.u32 %v1468, 4294901760
  %1514 = vmatpush1.msra.mxu0 %v1513
  %1515 = vmatprep.subr.mxu0 0.0
  %v1516 = vand.u32 %v1469, 4294901760
  %1517 = vmatpush1.msra.mxu0 %v1516
  %1518 = vmatprep.subr.mxu0 0.0
  %1519 = vmatpush1.msra.mxu0 0.0
  %1520 = vmatprep.subr.mxu0 0.0
  %1521 = vmatpush1.msra.mxu0 0.0
  %1522 = vmatprep.subr.mxu0 0.0
  %1523 = vmatpush1.msra.mxu0 0.0
  %1524 = vmatprep.subr.mxu0 0.0
  %1525 = vmatpush1.msra.mxu0 0.0
  %1526 = vmatprep.subr.mxu0 0.0
  %1527 = vmatpush1.msra.mxu0 0.0
  %1528 = vmatprep.subr.mxu0 0.0
  %1529 = vmatpush1.msra.mxu0 0.0
  %1530 = vmatprep.subr.mxu0 0.0
  %1531 = vmatpush1.msra.mxu0 0.0
  %1532 = vmatprep.subr.mxu0 0.0
  %1533 = vmatpush1.msra.mxu0 0.0
  %1534 = vmatprep.subr.mxu0 0.0
  %1535 = vmatpush1.msra.mxu0 0.0
  %1536 = vmatprep.subr.mxu0 0.0
  %1537 = vmatpush1.msra.mxu0 0.0
  %1538 = vmatprep.subr.mxu0 0.0
  %1539 = vmatpush1.msra.mxu0 0.0
  %1540 = vmatprep.subr.mxu0 0.0
  %1541 = vmatpush1.msra.mxu0 0.0
  %1542 = vmatprep.subr.mxu0 0.0
  %1543 = vmatpush1.msra.mxu0 0.0
  %1544 = vmatprep.subr.mxu0 0.0
  %1545 = vmatpush1.msra.mxu0 0.0
  %1546 = vmatprep.subr.mxu0 0.0
  %1547 = vmatpush1.msra.mxu0 0.0
  %1548 = vmatprep.subr.mxu0 0.0
  %1549 = vmatpush1.msra.mxu0 0.0
  %1550 = vmatprep.mubr.f32.mxu0 0.0
  %v1551 = vand.u32 %v50, 4294901760
  %v1552 = vsub.f32 %v50, %v1551
  %v1553 = vand.u32 %v1552, 4294901760
  %v1554 = vsub.f32 %v1552, %v1553
  %v1555 = vand.u32 %v1554, 4294901760
  %1556 = vmatmul.mubr.f32.gmra.mrb[0].mxu0 %v1555
  %v1557 = vpop.f32.mrb[0].mxu0
  %v1558 = vadd.f32 0.0, %v1557
  %v1559 = vpop.f32.mrb[0].mxu0
  %1560 = vmatprep.mubr.f32.mxu0 0.0
  %v1561 = vand.u32 %v51, 4294901760
  %v1562 = vsub.f32 %v51, %v1561
  %v1563 = vand.u32 %v1562, 4294901760
  %v1564 = vsub.f32 %v1562, %v1563
  %v1565 = vand.u32 %v1564, 4294901760
  %1566 = vmatmul.mubr.f32.gmra.mrb[0].mxu0 %v1565
  %v1567 = vpop.f32.mrb[0].mxu0
  %v1568 = vadd.f32 0.0, %v1567
  %v1569 = vpop.f32.mrb[0].mxu0
  %1570 = vdwg.mxu0
  %1571 = vmatprep.subr.mxu0 0.0
  %v1572 = vand.u32 %v1454, 4294901760
  %v1573 = vsub.f32 %v1454, %v1572
  %v1574 = vand.u32 %v1573, 4294901760
  %v1575 = vsub.f32 %v1573, %v1574
  %v1576 = vand.u32 %v1575, 4294901760
  %1577 = vmatpush1.msra.mxu0 %v1576
  %1578 = vmatprep.subr.mxu0 0.0
  %v1579 = vand.u32 %v1455, 4294901760
  %v1580 = vsub.f32 %v1455, %v1579
  %v1581 = vand.u32 %v1580, 4294901760
  %v1582 = vsub.f32 %v1580, %v1581
  %v1583 = vand.u32 %v1582, 4294901760
  %1584 = vmatpush1.msra.mxu0 %v1583
  %1585 = vmatprep.subr.mxu0 0.0
  %v1586 = vand.u32 %v1456, 4294901760
  %v1587 = vsub.f32 %v1456, %v1586
  %v1588 = vand.u32 %v1587, 4294901760
  %v1589 = vsub.f32 %v1587, %v1588
  %v1590 = vand.u32 %v1589, 4294901760
  %1591 = vmatpush1.msra.mxu0 %v1590
  %1592 = vmatprep.subr.mxu0 0.0
  %v1593 = vand.u32 %v1457, 4294901760
  %v1594 = vsub.f32 %v1457, %v1593
  %v1595 = vand.u32 %v1594, 4294901760
  %v1596 = vsub.f32 %v1594, %v1595
  %v1597 = vand.u32 %v1596, 4294901760
  %1598 = vmatpush1.msra.mxu0 %v1597
  %1599 = vmatprep.subr.mxu0 0.0
  %v1600 = vand.u32 %v1458, 4294901760
  %v1601 = vsub.f32 %v1458, %v1600
  %v1602 = vand.u32 %v1601, 4294901760
  %v1603 = vsub.f32 %v1601, %v1602
  %v1604 = vand.u32 %v1603, 4294901760
  %1605 = vmatpush1.msra.mxu0 %v1604
  %1606 = vmatprep.subr.mxu0 0.0
  %v1607 = vand.u32 %v1459, 4294901760
  %v1608 = vsub.f32 %v1459, %v1607
  %v1609 = vand.u32 %v1608, 4294901760
  %v1610 = vsub.f32 %v1608, %v1609
  %v1611 = vand.u32 %v1610, 4294901760
  %1612 = vmatpush1.msra.mxu0 %v1611
  %1613 = vmatprep.subr.mxu0 0.0
  %v1614 = vand.u32 %v1460, 4294901760
  %v1615 = vsub.f32 %v1460, %v1614
  %v1616 = vand.u32 %v1615, 4294901760
  %v1617 = vsub.f32 %v1615, %v1616
  %v1618 = vand.u32 %v1617, 4294901760
  %1619 = vmatpush1.msra.mxu0 %v1618
  %1620 = vmatprep.subr.mxu0 0.0
  %v1621 = vand.u32 %v1461, 4294901760
  %v1622 = vsub.f32 %v1461, %v1621
  %v1623 = vand.u32 %v1622, 4294901760
  %v1624 = vsub.f32 %v1622, %v1623
  %v1625 = vand.u32 %v1624, 4294901760
  %1626 = vmatpush1.msra.mxu0 %v1625
  %1627 = vmatprep.subr.mxu0 0.0
  %v1628 = vand.u32 %v1462, 4294901760
  %v1629 = vsub.f32 %v1462, %v1628
  %v1630 = vand.u32 %v1629, 4294901760
  %v1631 = vsub.f32 %v1629, %v1630
  %v1632 = vand.u32 %v1631, 4294901760
  %1633 = vmatpush1.msra.mxu0 %v1632
  %1634 = vmatprep.subr.mxu0 0.0
  %v1635 = vand.u32 %v1463, 4294901760
  %v1636 = vsub.f32 %v1463, %v1635
  %v1637 = vand.u32 %v1636, 4294901760
  %v1638 = vsub.f32 %v1636, %v1637
  %v1639 = vand.u32 %v1638, 4294901760
  %1640 = vmatpush1.msra.mxu0 %v1639
  %1641 = vmatprep.subr.mxu0 0.0
  %v1642 = vand.u32 %v1464, 4294901760
  %v1643 = vsub.f32 %v1464, %v1642
  %v1644 = vand.u32 %v1643, 4294901760
  %v1645 = vsub.f32 %v1643, %v1644
  %v1646 = vand.u32 %v1645, 4294901760
  %1647 = vmatpush1.msra.mxu0 %v1646
  %1648 = vmatprep.subr.mxu0 0.0
  %v1649 = vand.u32 %v1465, 4294901760
  %v1650 = vsub.f32 %v1465, %v1649
  %v1651 = vand.u32 %v1650, 4294901760
  %v1652 = vsub.f32 %v1650, %v1651
  %v1653 = vand.u32 %v1652, 4294901760
  %1654 = vmatpush1.msra.mxu0 %v1653
  %1655 = vmatprep.subr.mxu0 0.0
  %v1656 = vand.u32 %v1466, 4294901760
  %v1657 = vsub.f32 %v1466, %v1656
  %v1658 = vand.u32 %v1657, 4294901760
  %v1659 = vsub.f32 %v1657, %v1658
  %v1660 = vand.u32 %v1659, 4294901760
  %1661 = vmatpush1.msra.mxu0 %v1660
  %1662 = vmatprep.subr.mxu0 0.0
  %v1663 = vand.u32 %v1467, 4294901760
  %v1664 = vsub.f32 %v1467, %v1663
  %v1665 = vand.u32 %v1664, 4294901760
  %v1666 = vsub.f32 %v1664, %v1665
  %v1667 = vand.u32 %v1666, 4294901760
  %1668 = vmatpush1.msra.mxu0 %v1667
  %1669 = vmatprep.subr.mxu0 0.0
  %v1670 = vand.u32 %v1468, 4294901760
  %v1671 = vsub.f32 %v1468, %v1670
  %v1672 = vand.u32 %v1671, 4294901760
  %v1673 = vsub.f32 %v1671, %v1672
  %v1674 = vand.u32 %v1673, 4294901760
  %1675 = vmatpush1.msra.mxu0 %v1674
  %1676 = vmatprep.subr.mxu0 0.0
  %v1677 = vand.u32 %v1469, 4294901760
  %v1678 = vsub.f32 %v1469, %v1677
  %v1679 = vand.u32 %v1678, 4294901760
  %v1680 = vsub.f32 %v1678, %v1679
  %v1681 = vand.u32 %v1680, 4294901760
  %1682 = vmatpush1.msra.mxu0 %v1681
  %1683 = vmatprep.subr.mxu0 0.0
  %1684 = vmatpush1.msra.mxu0 0.0
  %1685 = vmatprep.subr.mxu0 0.0
  %1686 = vmatpush1.msra.mxu0 0.0
  %1687 = vmatprep.subr.mxu0 0.0
  %1688 = vmatpush1.msra.mxu0 0.0
  %1689 = vmatprep.subr.mxu0 0.0
  %1690 = vmatpush1.msra.mxu0 0.0
  %1691 = vmatprep.subr.mxu0 0.0
  %1692 = vmatpush1.msra.mxu0 0.0
  %1693 = vmatprep.subr.mxu0 0.0
  %1694 = vmatpush1.msra.mxu0 0.0
  %1695 = vmatprep.subr.mxu0 0.0
  %1696 = vmatpush1.msra.mxu0 0.0
  %1697 = vmatprep.subr.mxu0 0.0
  %1698 = vmatpush1.msra.mxu0 0.0
  %1699 = vmatprep.subr.mxu0 0.0
  %1700 = vmatpush1.msra.mxu0 0.0
  %1701 = vmatprep.subr.mxu0 0.0
  %1702 = vmatpush1.msra.mxu0 0.0
  %1703 = vmatprep.subr.mxu0 0.0
  %1704 = vmatpush1.msra.mxu0 0.0
  %1705 = vmatprep.subr.mxu0 0.0
  %1706 = vmatpush1.msra.mxu0 0.0
  %1707 = vmatprep.subr.mxu0 0.0
  %1708 = vmatpush1.msra.mxu0 0.0
  %1709 = vmatprep.subr.mxu0 0.0
  %1710 = vmatpush1.msra.mxu0 0.0
  %1711 = vmatprep.subr.mxu0 0.0
  %1712 = vmatpush1.msra.mxu0 0.0
  %1713 = vmatprep.subr.mxu0 0.0
  %1714 = vmatpush1.msra.mxu0 0.0
  %1715 = vmatprep.mubr.f32.mxu0 0.0
  %v1716 = vand.u32 %v50, 4294901760
  %1717 = vmatmul.mubr.f32.gmra.mrb[0].mxu0 %v1716
  %v1718 = vpop.f32.mrb[0].mxu0
  %v1719 = vadd.f32 %v1558, %v1718
  %v1720 = vpop.f32.mrb[0].mxu0
  %1721 = vmatprep.mubr.f32.mxu0 0.0
  %v1722 = vand.u32 %v51, 4294901760
  %1723 = vmatmul.mubr.f32.gmra.mrb[0].mxu0 %v1722
  %v1724 = vpop.f32.mrb[0].mxu0
  %v1725 = vadd.f32 %v1568, %v1724
  %v1726 = vpop.f32.mrb[0].mxu0
  %1727 = vdwg.mxu0
  %1728 = vmatprep.subr.mxu0 0.0
  %v1729 = vand.u32 %v1454, 4294901760
  %v1730 = vsub.f32 %v1454, %v1729
  %1731 = vmatpush1.msra.mxu0 %v1730
  %1732 = vmatprep.subr.mxu0 0.0
  %v1733 = vand.u32 %v1455, 4294901760
  %v1734 = vsub.f32 %v1455, %v1733
  %1735 = vmatpush1.msra.mxu0 %v1734
  %1736 = vmatprep.subr.mxu0 0.0
  %v1737 = vand.u32 %v1456, 4294901760
  %v1738 = vsub.f32 %v1456, %v1737
  %1739 = vmatpush1.msra.mxu0 %v1738
  %1740 = vmatprep.subr.mxu0 0.0
  %v1741 = vand.u32 %v1457, 4294901760
  %v1742 = vsub.f32 %v1457, %v1741
  %1743 = vmatpush1.msra.mxu0 %v1742
  %1744 = vmatprep.subr.mxu0 0.0
  %v1745 = vand.u32 %v1458, 4294901760
  %v1746 = vsub.f32 %v1458, %v1745
  %1747 = vmatpush1.msra.mxu0 %v1746
  %1748 = vmatprep.subr.mxu0 0.0
  %v1749 = vand.u32 %v1459, 4294901760
  %v1750 = vsub.f32 %v1459, %v1749
  %1751 = vmatpush1.msra.mxu0 %v1750
  %1752 = vmatprep.subr.mxu0 0.0
  %v1753 = vand.u32 %v1460, 4294901760
  %v1754 = vsub.f32 %v1460, %v1753
  %1755 = vmatpush1.msra.mxu0 %v1754
  %1756 = vmatprep.subr.mxu0 0.0
  %v1757 = vand.u32 %v1461, 4294901760
  %v1758 = vsub.f32 %v1461, %v1757
  %1759 = vmatpush1.msra.mxu0 %v1758
  %1760 = vmatprep.subr.mxu0 0.0
  %v1761 = vand.u32 %v1462, 4294901760
  %v1762 = vsub.f32 %v1462, %v1761
  %1763 = vmatpush1.msra.mxu0 %v1762
  %1764 = vmatprep.subr.mxu0 0.0
  %v1765 = vand.u32 %v1463, 4294901760
  %v1766 = vsub.f32 %v1463, %v1765
  %1767 = vmatpush1.msra.mxu0 %v1766
  %1768 = vmatprep.subr.mxu0 0.0
  %v1769 = vand.u32 %v1464, 4294901760
  %v1770 = vsub.f32 %v1464, %v1769
  %1771 = vmatpush1.msra.mxu0 %v1770
  %1772 = vmatprep.subr.mxu0 0.0
  %v1773 = vand.u32 %v1465, 4294901760
  %v1774 = vsub.f32 %v1465, %v1773
  %1775 = vmatpush1.msra.mxu0 %v1774
  %1776 = vmatprep.subr.mxu0 0.0
  %v1777 = vand.u32 %v1466, 4294901760
  %v1778 = vsub.f32 %v1466, %v1777
  %1779 = vmatpush1.msra.mxu0 %v1778
  %1780 = vmatprep.subr.mxu0 0.0
  %v1781 = vand.u32 %v1467, 4294901760
  %v1782 = vsub.f32 %v1467, %v1781
  %1783 = vmatpush1.msra.mxu0 %v1782
  %1784 = vmatprep.subr.mxu0 0.0
  %v1785 = vand.u32 %v1468, 4294901760
  %v1786 = vsub.f32 %v1468, %v1785
  %1787 = vmatpush1.msra.mxu0 %v1786
  %1788 = vmatprep.subr.mxu0 0.0
  %v1789 = vand.u32 %v1469, 4294901760
  %v1790 = vsub.f32 %v1469, %v1789
  %1791 = vmatpush1.msra.mxu0 %v1790
  %1792 = vmatprep.subr.mxu0 0.0
  %1793 = vmatpush1.msra.mxu0 0.0
  %1794 = vmatprep.subr.mxu0 0.0
  %1795 = vmatpush1.msra.mxu0 0.0
  %1796 = vmatprep.subr.mxu0 0.0
  %1797 = vmatpush1.msra.mxu0 0.0
  %1798 = vmatprep.subr.mxu0 0.0
  %1799 = vmatpush1.msra.mxu0 0.0
  %1800 = vmatprep.subr.mxu0 0.0
  %1801 = vmatpush1.msra.mxu0 0.0
  %1802 = vmatprep.subr.mxu0 0.0
  %1803 = vmatpush1.msra.mxu0 0.0
  %1804 = vmatprep.subr.mxu0 0.0
  %1805 = vmatpush1.msra.mxu0 0.0
  %1806 = vmatprep.subr.mxu0 0.0
  %1807 = vmatpush1.msra.mxu0 0.0
  %1808 = vmatprep.subr.mxu0 0.0
  %1809 = vmatpush1.msra.mxu0 0.0
  %1810 = vmatprep.subr.mxu0 0.0
  %1811 = vmatpush1.msra.mxu0 0.0
  %1812 = vmatprep.subr.mxu0 0.0
  %1813 = vmatpush1.msra.mxu0 0.0
  %1814 = vmatprep.subr.mxu0 0.0
  %1815 = vmatpush1.msra.mxu0 0.0
  %1816 = vmatprep.subr.mxu0 0.0
  %1817 = vmatpush1.msra.mxu0 0.0
  %1818 = vmatprep.subr.mxu0 0.0
  %1819 = vmatpush1.msra.mxu0 0.0
  %1820 = vmatprep.subr.mxu0 0.0
  %1821 = vmatpush1.msra.mxu0 0.0
  %1822 = vmatprep.subr.mxu0 0.0
  %1823 = vmatpush1.msra.mxu0 0.0
  %1824 = vmatprep.mubr.f32.mxu0 0.0
  %v1825 = vand.u32 %v50, 4294901760
  %v1826 = vsub.f32 %v50, %v1825
  %1827 = vmatmul.mubr.f32.gmra.mrb[0].mxu0 %v1826
  %v1828 = vpop.f32.mrb[0].mxu0
  %v1829 = vadd.f32 %v1719, %v1828
  %v1830 = vpop.f32.mrb[0].mxu0
  %1831 = vmatprep.mubr.f32.mxu0 0.0
  %v1832 = vand.u32 %v51, 4294901760
  %v1833 = vsub.f32 %v51, %v1832
  %1834 = vmatmul.mubr.f32.gmra.mrb[0].mxu0 %v1833
  %v1835 = vpop.f32.mrb[0].mxu0
  %v1836 = vadd.f32 %v1725, %v1835
  %v1837 = vpop.f32.mrb[0].mxu0
  %1838 = vdwg.mxu0
  %1839 = vmatprep.subr.mxu0 0.0
  %v1840 = vand.u32 %v1454, 4294901760
  %1841 = vmatpush1.msra.mxu0 %v1840
  %1842 = vmatprep.subr.mxu0 0.0
  %v1843 = vand.u32 %v1455, 4294901760
  %1844 = vmatpush1.msra.mxu0 %v1843
  %1845 = vmatprep.subr.mxu0 0.0
  %v1846 = vand.u32 %v1456, 4294901760
  %1847 = vmatpush1.msra.mxu0 %v1846
  %1848 = vmatprep.subr.mxu0 0.0
  %v1849 = vand.u32 %v1457, 4294901760
  %1850 = vmatpush1.msra.mxu0 %v1849
  %1851 = vmatprep.subr.mxu0 0.0
  %v1852 = vand.u32 %v1458, 4294901760
  %1853 = vmatpush1.msra.mxu0 %v1852
  %1854 = vmatprep.subr.mxu0 0.0
  %v1855 = vand.u32 %v1459, 4294901760
  %1856 = vmatpush1.msra.mxu0 %v1855
  %1857 = vmatprep.subr.mxu0 0.0
  %v1858 = vand.u32 %v1460, 4294901760
  %1859 = vmatpush1.msra.mxu0 %v1858
  %1860 = vmatprep.subr.mxu0 0.0
  %v1861 = vand.u32 %v1461, 4294901760
  %1862 = vmatpush1.msra.mxu0 %v1861
  %1863 = vmatprep.subr.mxu0 0.0
  %v1864 = vand.u32 %v1462, 4294901760
  %1865 = vmatpush1.msra.mxu0 %v1864
  %1866 = vmatprep.subr.mxu0 0.0
  %v1867 = vand.u32 %v1463, 4294901760
  %1868 = vmatpush1.msra.mxu0 %v1867
  %1869 = vmatprep.subr.mxu0 0.0
  %v1870 = vand.u32 %v1464, 4294901760
  %1871 = vmatpush1.msra.mxu0 %v1870
  %1872 = vmatprep.subr.mxu0 0.0
  %v1873 = vand.u32 %v1465, 4294901760
  %1874 = vmatpush1.msra.mxu0 %v1873
  %1875 = vmatprep.subr.mxu0 0.0
  %v1876 = vand.u32 %v1466, 4294901760
  %1877 = vmatpush1.msra.mxu0 %v1876
  %1878 = vmatprep.subr.mxu0 0.0
  %v1879 = vand.u32 %v1467, 4294901760
  %1880 = vmatpush1.msra.mxu0 %v1879
  %1881 = vmatprep.subr.mxu0 0.0
  %v1882 = vand.u32 %v1468, 4294901760
  %1883 = vmatpush1.msra.mxu0 %v1882
  %1884 = vmatprep.subr.mxu0 0.0
  %v1885 = vand.u32 %v1469, 4294901760
  %1886 = vmatpush1.msra.mxu0 %v1885
  %1887 = vmatprep.subr.mxu0 0.0
  %1888 = vmatpush1.msra.mxu0 0.0
  %1889 = vmatprep.subr.mxu0 0.0
  %1890 = vmatpush1.msra.mxu0 0.0
  %1891 = vmatprep.subr.mxu0 0.0
  %1892 = vmatpush1.msra.mxu0 0.0
  %1893 = vmatprep.subr.mxu0 0.0
  %1894 = vmatpush1.msra.mxu0 0.0
  %1895 = vmatprep.subr.mxu0 0.0
  %1896 = vmatpush1.msra.mxu0 0.0
  %1897 = vmatprep.subr.mxu0 0.0
  %1898 = vmatpush1.msra.mxu0 0.0
  %1899 = vmatprep.subr.mxu0 0.0
  %1900 = vmatpush1.msra.mxu0 0.0
  %1901 = vmatprep.subr.mxu0 0.0
  %1902 = vmatpush1.msra.mxu0 0.0
  %1903 = vmatprep.subr.mxu0 0.0
  %1904 = vmatpush1.msra.mxu0 0.0
  %1905 = vmatprep.subr.mxu0 0.0
  %1906 = vmatpush1.msra.mxu0 0.0
  %1907 = vmatprep.subr.mxu0 0.0
  %1908 = vmatpush1.msra.mxu0 0.0
  %1909 = vmatprep.subr.mxu0 0.0
  %1910 = vmatpush1.msra.mxu0 0.0
  %1911 = vmatprep.subr.mxu0 0.0
  %1912 = vmatpush1.msra.mxu0 0.0
  %1913 = vmatprep.subr.mxu0 0.0
  %1914 = vmatpush1.msra.mxu0 0.0
  %1915 = vmatprep.subr.mxu0 0.0
  %1916 = vmatpush1.msra.mxu0 0.0
  %1917 = vmatprep.subr.mxu0 0.0
  %1918 = vmatpush1.msra.mxu0 0.0
  %1919 = vmatprep.mubr.f32.mxu0 0.0
  %v1920 = vand.u32 %v50, 4294901760
  %v1921 = vsub.f32 %v50, %v1920
  %v1922 = vand.u32 %v1921, 4294901760
  %1923 = vmatmul.mubr.f32.gmra.mrb[0].mxu0 %v1922
  %v1924 = vpop.f32.mrb[0].mxu0
  %v1925 = vadd.f32 %v1829, %v1924
  %v1926 = vpop.f32.mrb[0].mxu0
  %1927 = vmatprep.mubr.f32.mxu0 0.0
  %v1928 = vand.u32 %v51, 4294901760
  %v1929 = vsub.f32 %v51, %v1928
  %v1930 = vand.u32 %v1929, 4294901760
  %1931 = vmatmul.mubr.f32.gmra.mrb[0].mxu0 %v1930
  %v1932 = vpop.f32.mrb[0].mxu0
  %v1933 = vadd.f32 %v1836, %v1932
  %v1934 = vpop.f32.mrb[0].mxu0
  %1935 = vdwg.mxu0
  %1936 = vmatprep.subr.mxu0 0.0
  %v1937 = vand.u32 %v1454, 4294901760
  %v1938 = vsub.f32 %v1454, %v1937
  %v1939 = vand.u32 %v1938, 4294901760
  %1940 = vmatpush1.msra.mxu0 %v1939
  %1941 = vmatprep.subr.mxu0 0.0
  %v1942 = vand.u32 %v1455, 4294901760
  %v1943 = vsub.f32 %v1455, %v1942
  %v1944 = vand.u32 %v1943, 4294901760
  %1945 = vmatpush1.msra.mxu0 %v1944
  %1946 = vmatprep.subr.mxu0 0.0
  %v1947 = vand.u32 %v1456, 4294901760
  %v1948 = vsub.f32 %v1456, %v1947
  %v1949 = vand.u32 %v1948, 4294901760
  %1950 = vmatpush1.msra.mxu0 %v1949
  %1951 = vmatprep.subr.mxu0 0.0
  %v1952 = vand.u32 %v1457, 4294901760
  %v1953 = vsub.f32 %v1457, %v1952
  %v1954 = vand.u32 %v1953, 4294901760
  %1955 = vmatpush1.msra.mxu0 %v1954
  %1956 = vmatprep.subr.mxu0 0.0
  %v1957 = vand.u32 %v1458, 4294901760
  %v1958 = vsub.f32 %v1458, %v1957
  %v1959 = vand.u32 %v1958, 4294901760
  %1960 = vmatpush1.msra.mxu0 %v1959
  %1961 = vmatprep.subr.mxu0 0.0
  %v1962 = vand.u32 %v1459, 4294901760
  %v1963 = vsub.f32 %v1459, %v1962
  %v1964 = vand.u32 %v1963, 4294901760
  %1965 = vmatpush1.msra.mxu0 %v1964
  %1966 = vmatprep.subr.mxu0 0.0
  %v1967 = vand.u32 %v1460, 4294901760
  %v1968 = vsub.f32 %v1460, %v1967
  %v1969 = vand.u32 %v1968, 4294901760
  %1970 = vmatpush1.msra.mxu0 %v1969
  %1971 = vmatprep.subr.mxu0 0.0
  %v1972 = vand.u32 %v1461, 4294901760
  %v1973 = vsub.f32 %v1461, %v1972
  %v1974 = vand.u32 %v1973, 4294901760
  %1975 = vmatpush1.msra.mxu0 %v1974
  %1976 = vmatprep.subr.mxu0 0.0
  %v1977 = vand.u32 %v1462, 4294901760
  %v1978 = vsub.f32 %v1462, %v1977
  %v1979 = vand.u32 %v1978, 4294901760
  %1980 = vmatpush1.msra.mxu0 %v1979
  %1981 = vmatprep.subr.mxu0 0.0
  %v1982 = vand.u32 %v1463, 4294901760
  %v1983 = vsub.f32 %v1463, %v1982
  %v1984 = vand.u32 %v1983, 4294901760
  %1985 = vmatpush1.msra.mxu0 %v1984
  %1986 = vmatprep.subr.mxu0 0.0
  %v1987 = vand.u32 %v1464, 4294901760
  %v1988 = vsub.f32 %v1464, %v1987
  %v1989 = vand.u32 %v1988, 4294901760
  %1990 = vmatpush1.msra.mxu0 %v1989
  %1991 = vmatprep.subr.mxu0 0.0
  %v1992 = vand.u32 %v1465, 4294901760
  %v1993 = vsub.f32 %v1465, %v1992
  %v1994 = vand.u32 %v1993, 4294901760
  %1995 = vmatpush1.msra.mxu0 %v1994
  %1996 = vmatprep.subr.mxu0 0.0
  %v1997 = vand.u32 %v1466, 4294901760
  %v1998 = vsub.f32 %v1466, %v1997
  %v1999 = vand.u32 %v1998, 4294901760
  %2000 = vmatpush1.msra.mxu0 %v1999
  %2001 = vmatprep.subr.mxu0 0.0
  %v2002 = vand.u32 %v1467, 4294901760
  %v2003 = vsub.f32 %v1467, %v2002
  %v2004 = vand.u32 %v2003, 4294901760
  %2005 = vmatpush1.msra.mxu0 %v2004
  %2006 = vmatprep.subr.mxu0 0.0
  %v2007 = vand.u32 %v1468, 4294901760
  %v2008 = vsub.f32 %v1468, %v2007
  %v2009 = vand.u32 %v2008, 4294901760
  %2010 = vmatpush1.msra.mxu0 %v2009
  %2011 = vmatprep.subr.mxu0 0.0
  %v2012 = vand.u32 %v1469, 4294901760
  %v2013 = vsub.f32 %v1469, %v2012
  %v2014 = vand.u32 %v2013, 4294901760
  %2015 = vmatpush1.msra.mxu0 %v2014
  %2016 = vmatprep.subr.mxu0 0.0
  %2017 = vmatpush1.msra.mxu0 0.0
  %2018 = vmatprep.subr.mxu0 0.0
  %2019 = vmatpush1.msra.mxu0 0.0
  %2020 = vmatprep.subr.mxu0 0.0
  %2021 = vmatpush1.msra.mxu0 0.0
  %2022 = vmatprep.subr.mxu0 0.0
  %2023 = vmatpush1.msra.mxu0 0.0
  %2024 = vmatprep.subr.mxu0 0.0
  %2025 = vmatpush1.msra.mxu0 0.0
  %2026 = vmatprep.subr.mxu0 0.0
  %2027 = vmatpush1.msra.mxu0 0.0
  %2028 = vmatprep.subr.mxu0 0.0
  %2029 = vmatpush1.msra.mxu0 0.0
  %2030 = vmatprep.subr.mxu0 0.0
  %2031 = vmatpush1.msra.mxu0 0.0
  %2032 = vmatprep.subr.mxu0 0.0
  %2033 = vmatpush1.msra.mxu0 0.0
  %2034 = vmatprep.subr.mxu0 0.0
  %2035 = vmatpush1.msra.mxu0 0.0
  %2036 = vmatprep.subr.mxu0 0.0
  %2037 = vmatpush1.msra.mxu0 0.0
  %2038 = vmatprep.subr.mxu0 0.0
  %2039 = vmatpush1.msra.mxu0 0.0
  %2040 = vmatprep.subr.mxu0 0.0
  %2041 = vmatpush1.msra.mxu0 0.0
  %2042 = vmatprep.subr.mxu0 0.0
  %2043 = vmatpush1.msra.mxu0 0.0
  %2044 = vmatprep.subr.mxu0 0.0
  %2045 = vmatpush1.msra.mxu0 0.0
  %2046 = vmatprep.subr.mxu0 0.0
  %2047 = vmatpush1.msra.mxu0 0.0
  %2048 = vmatprep.mubr.f32.mxu0 0.0
  %v2049 = vand.u32 %v50, 4294901760
  %2050 = vmatmul.mubr.f32.gmra.mrb[0].mxu0 %v2049
  %v2051 = vpop.f32.mrb[0].mxu0
  %v2052 = vadd.f32 %v1925, %v2051
  %v2053 = vpop.f32.mrb[0].mxu0
  %2054 = vmatprep.mubr.f32.mxu0 0.0
  %v2055 = vand.u32 %v51, 4294901760
  %2056 = vmatmul.mubr.f32.gmra.mrb[0].mxu0 %v2055
  %v2057 = vpop.f32.mrb[0].mxu0
  %v2058 = vadd.f32 %v1933, %v2057
  %v2059 = vpop.f32.mrb[0].mxu0
  %2060 = vdwg.mxu0
  %2061 = vmatprep.subr.mxu0 0.0
  %v2062 = vand.u32 %v1454, 4294901760
  %2063 = vmatpush1.msra.mxu0 %v2062
  %2064 = vmatprep.subr.mxu0 0.0
  %v2065 = vand.u32 %v1455, 4294901760
  %2066 = vmatpush1.msra.mxu0 %v2065
  %2067 = vmatprep.subr.mxu0 0.0
  %v2068 = vand.u32 %v1456, 4294901760
  %2069 = vmatpush1.msra.mxu0 %v2068
  %2070 = vmatprep.subr.mxu0 0.0
  %v2071 = vand.u32 %v1457, 4294901760
  %2072 = vmatpush1.msra.mxu0 %v2071
  %2073 = vmatprep.subr.mxu0 0.0
  %v2074 = vand.u32 %v1458, 4294901760
  %2075 = vmatpush1.msra.mxu0 %v2074
  %2076 = vmatprep.subr.mxu0 0.0
  %v2077 = vand.u32 %v1459, 4294901760
  %2078 = vmatpush1.msra.mxu0 %v2077
  %2079 = vmatprep.subr.mxu0 0.0
  %v2080 = vand.u32 %v1460, 4294901760
  %2081 = vmatpush1.msra.mxu0 %v2080
  %2082 = vmatprep.subr.mxu0 0.0
  %v2083 = vand.u32 %v1461, 4294901760
  %2084 = vmatpush1.msra.mxu0 %v2083
  %2085 = vmatprep.subr.mxu0 0.0
  %v2086 = vand.u32 %v1462, 4294901760
  %2087 = vmatpush1.msra.mxu0 %v2086
  %2088 = vmatprep.subr.mxu0 0.0
  %v2089 = vand.u32 %v1463, 4294901760
  %2090 = vmatpush1.msra.mxu0 %v2089
  %2091 = vmatprep.subr.mxu0 0.0
  %v2092 = vand.u32 %v1464, 4294901760
  %2093 = vmatpush1.msra.mxu0 %v2092
  %2094 = vmatprep.subr.mxu0 0.0
  %v2095 = vand.u32 %v1465, 4294901760
  %2096 = vmatpush1.msra.mxu0 %v2095
  %2097 = vmatprep.subr.mxu0 0.0
  %v2098 = vand.u32 %v1466, 4294901760
  %2099 = vmatpush1.msra.mxu0 %v2098
  %2100 = vmatprep.subr.mxu0 0.0
  %v2101 = vand.u32 %v1467, 4294901760
  %2102 = vmatpush1.msra.mxu0 %v2101
  %2103 = vmatprep.subr.mxu0 0.0
  %v2104 = vand.u32 %v1468, 4294901760
  %2105 = vmatpush1.msra.mxu0 %v2104
  %2106 = vmatprep.subr.mxu0 0.0
  %v2107 = vand.u32 %v1469, 4294901760
  %2108 = vmatpush1.msra.mxu0 %v2107
  %2109 = vmatprep.subr.mxu0 0.0
  %2110 = vmatpush1.msra.mxu0 0.0
  %2111 = vmatprep.subr.mxu0 0.0
  %2112 = vmatpush1.msra.mxu0 0.0
  %2113 = vmatprep.subr.mxu0 0.0
  %2114 = vmatpush1.msra.mxu0 0.0
  %2115 = vmatprep.subr.mxu0 0.0
  %2116 = vmatpush1.msra.mxu0 0.0
  %2117 = vmatprep.subr.mxu0 0.0
  %2118 = vmatpush1.msra.mxu0 0.0
  %2119 = vmatprep.subr.mxu0 0.0
  %2120 = vmatpush1.msra.mxu0 0.0
  %2121 = vmatprep.subr.mxu0 0.0
  %2122 = vmatpush1.msra.mxu0 0.0
  %2123 = vmatprep.subr.mxu0 0.0
  %2124 = vmatpush1.msra.mxu0 0.0
  %2125 = vmatprep.subr.mxu0 0.0
  %2126 = vmatpush1.msra.mxu0 0.0
  %2127 = vmatprep.subr.mxu0 0.0
  %2128 = vmatpush1.msra.mxu0 0.0
  %2129 = vmatprep.subr.mxu0 0.0
  %2130 = vmatpush1.msra.mxu0 0.0
  %2131 = vmatprep.subr.mxu0 0.0
  %2132 = vmatpush1.msra.mxu0 0.0
  %2133 = vmatprep.subr.mxu0 0.0
  %2134 = vmatpush1.msra.mxu0 0.0
  %2135 = vmatprep.subr.mxu0 0.0
  %2136 = vmatpush1.msra.mxu0 0.0
  %2137 = vmatprep.subr.mxu0 0.0
  %2138 = vmatpush1.msra.mxu0 0.0
  %2139 = vmatprep.subr.mxu0 0.0
  %2140 = vmatpush1.msra.mxu0 0.0
  %2141 = vmatprep.mubr.f32.mxu0 0.0
  %v2142 = vand.u32 %v50, 4294901760
  %2143 = vmatmul.mubr.f32.gmra.mrb[0].mxu0 %v2142
  %v2144 = vpop.f32.mrb[0].mxu0
  %v2145 = vadd.f32 %v2052, %v2144
  %v2146 = vpop.f32.mrb[0].mxu0
  %2147 = vmatprep.mubr.f32.mxu0 0.0
  %v2148 = vand.u32 %v51, 4294901760
  %2149 = vmatmul.mubr.f32.gmra.mrb[0].mxu0 %v2148
  %v2150 = vpop.f32.mrb[0].mxu0
  %v2151 = vadd.f32 %v2058, %v2150
  %v2152 = vpop.f32.mrb[0].mxu0
  %2153 = vdwg.mxu0
  %v2154 = vadd.f32 %v1444, %v2145
  %v2155 = vadd.f32 %v1450, %v2151
  %v2156 = vadd.f32 %v2154, %v2155
  %v2157 = vrot.slane %v2156, 4
  %v2158 = vadd.f32 %v2156, %v2157
  %v2159 = vrot.slane %v2158, 2
  %v2160 = vadd.f32 %v2158, %v2159
  %v2161 = vrot.slane %v2160, 1
  %v2162 = vadd.f32 %v2160, %v2161
  %v2163 = vmul.f32 %v2154, %v2154
  %v2164 = vmul.f32 %v2155, %v2155
  %v2165 = vadd.f32 %v2163, %v2164
  %v2166 = vrot.slane %v2165, 4
  %v2167 = vadd.f32 %v2165, %v2166
  %v2168 = vrot.slane %v2167, 2
  %v2169 = vadd.f32 %v2167, %v2168
  %v2170 = vrot.slane %v2169, 1
  %v2171 = vadd.f32 %v2169, %v2170
  %vm2172 = vcmp.eq.s32.totalorder %v30, 0
  %v2173 = vsel %vm2172, %v2162, %v2171
  %v2174 = vld [vmem:[%s7] sm:$0xff]
  %v2175 = vld [vmem:[%s7 + $0x8] sm:$0xff]
  %v2176 = vld [vmem:[%s7 + $0x10] sm:$0xff]
  %v2177 = vld [vmem:[%s7 + $0x18] sm:$0xff]
  %v2178 = vld [vmem:[%s7 + $0x20] sm:$0xff]
  %v2179 = vld [vmem:[%s7 + $0x28] sm:$0xff]
  %v2180 = vld [vmem:[%s7 + $0x30] sm:$0xff]
  %v2181 = vld [vmem:[%s7 + $0x38] sm:$0xff]
  %v2182 = vld [vmem:[%s7 + $0x40] sm:$0xff]
  %v2183 = vld [vmem:[%s7 + $0x48] sm:$0xff]
  %v2184 = vld [vmem:[%s7 + $0x50] sm:$0xff]
  %v2185 = vld [vmem:[%s7 + $0x58] sm:$0xff]
  %v2186 = vld [vmem:[%s7 + $0x60] sm:$0xff]
  %v2187 = vld [vmem:[%s7 + $0x68] sm:$0xff]
  %v2188 = vld [vmem:[%s7 + $0x70] sm:$0xff]
  %v2189 = vld [vmem:[%s7 + $0x78] sm:$0xff]
  %2190 = vmatprep.subr.mxu0 0.0
  %v2191 = vand.u32 %v2174, 4294901760
  %2192 = vmatpush1.msra.mxu0 %v2191
  %2193 = vmatprep.subr.mxu0 0.0
  %v2194 = vand.u32 %v2175, 4294901760
  %2195 = vmatpush1.msra.mxu0 %v2194
  %2196 = vmatprep.subr.mxu0 0.0
  %v2197 = vand.u32 %v2176, 4294901760
  %2198 = vmatpush1.msra.mxu0 %v2197
  %2199 = vmatprep.subr.mxu0 0.0
  %v2200 = vand.u32 %v2177, 4294901760
  %2201 = vmatpush1.msra.mxu0 %v2200
  %2202 = vmatprep.subr.mxu0 0.0
  %v2203 = vand.u32 %v2178, 4294901760
  %2204 = vmatpush1.msra.mxu0 %v2203
  %2205 = vmatprep.subr.mxu0 0.0
  %v2206 = vand.u32 %v2179, 4294901760
  %2207 = vmatpush1.msra.mxu0 %v2206
  %2208 = vmatprep.subr.mxu0 0.0
  %v2209 = vand.u32 %v2180, 4294901760
  %2210 = vmatpush1.msra.mxu0 %v2209
  %2211 = vmatprep.subr.mxu0 0.0
  %v2212 = vand.u32 %v2181, 4294901760
  %2213 = vmatpush1.msra.mxu0 %v2212
  %2214 = vmatprep.subr.mxu0 0.0
  %v2215 = vand.u32 %v2182, 4294901760
  %2216 = vmatpush1.msra.mxu0 %v2215
  %2217 = vmatprep.subr.mxu0 0.0
  %v2218 = vand.u32 %v2183, 4294901760
  %2219 = vmatpush1.msra.mxu0 %v2218
  %2220 = vmatprep.subr.mxu0 0.0
  %v2221 = vand.u32 %v2184, 4294901760
  %2222 = vmatpush1.msra.mxu0 %v2221
  %2223 = vmatprep.subr.mxu0 0.0
  %v2224 = vand.u32 %v2185, 4294901760
  %2225 = vmatpush1.msra.mxu0 %v2224
  %2226 = vmatprep.subr.mxu0 0.0
  %v2227 = vand.u32 %v2186, 4294901760
  %2228 = vmatpush1.msra.mxu0 %v2227
  %2229 = vmatprep.subr.mxu0 0.0
  %v2230 = vand.u32 %v2187, 4294901760
  %2231 = vmatpush1.msra.mxu0 %v2230
  %2232 = vmatprep.subr.mxu0 0.0
  %v2233 = vand.u32 %v2188, 4294901760
  %2234 = vmatpush1.msra.mxu0 %v2233
  %2235 = vmatprep.subr.mxu0 0.0
  %v2236 = vand.u32 %v2189, 4294901760
  %2237 = vmatpush1.msra.mxu0 %v2236
  %2238 = vmatprep.subr.mxu0 0.0
  %2239 = vmatpush1.msra.mxu0 0.0
  %2240 = vmatprep.subr.mxu0 0.0
  %2241 = vmatpush1.msra.mxu0 0.0
  %2242 = vmatprep.subr.mxu0 0.0
  %2243 = vmatpush1.msra.mxu0 0.0
  %2244 = vmatprep.subr.mxu0 0.0
  %2245 = vmatpush1.msra.mxu0 0.0
  %2246 = vmatprep.subr.mxu0 0.0
  %2247 = vmatpush1.msra.mxu0 0.0
  %2248 = vmatprep.subr.mxu0 0.0
  %2249 = vmatpush1.msra.mxu0 0.0
  %2250 = vmatprep.subr.mxu0 0.0
  %2251 = vmatpush1.msra.mxu0 0.0
  %2252 = vmatprep.subr.mxu0 0.0
  %2253 = vmatpush1.msra.mxu0 0.0
  %2254 = vmatprep.subr.mxu0 0.0
  %2255 = vmatpush1.msra.mxu0 0.0
  %2256 = vmatprep.subr.mxu0 0.0
  %2257 = vmatpush1.msra.mxu0 0.0
  %2258 = vmatprep.subr.mxu0 0.0
  %2259 = vmatpush1.msra.mxu0 0.0
  %2260 = vmatprep.subr.mxu0 0.0
  %2261 = vmatpush1.msra.mxu0 0.0
  %2262 = vmatprep.subr.mxu0 0.0
  %2263 = vmatpush1.msra.mxu0 0.0
  %2264 = vmatprep.subr.mxu0 0.0
  %2265 = vmatpush1.msra.mxu0 0.0
  %2266 = vmatprep.subr.mxu0 0.0
  %2267 = vmatpush1.msra.mxu0 0.0
  %2268 = vmatprep.subr.mxu0 0.0
  %2269 = vmatpush1.msra.mxu0 0.0
  %2270 = vmatprep.mubr.f32.mxu0 0.0
  %v2271 = vand.u32 %v2173, 4294901760
  %v2272 = vsub.f32 %v2173, %v2271
  %v2273 = vand.u32 %v2272, 4294901760
  %v2274 = vsub.f32 %v2272, %v2273
  %v2275 = vand.u32 %v2274, 4294901760
  %2276 = vmatmul.mubr.f32.gmra.mrb[0].mxu0 %v2275
  %v2277 = vpop.f32.mrb[0].mxu0
  %v2278 = vadd.f32 0.0, %v2277
  %v2279 = vpop.f32.mrb[0].mxu0
  %2280 = vdwg.mxu0
  %2281 = vmatprep.subr.mxu0 0.0
  %v2282 = vand.u32 %v2174, 4294901760
  %v2283 = vsub.f32 %v2174, %v2282
  %v2284 = vand.u32 %v2283, 4294901760
  %v2285 = vsub.f32 %v2283, %v2284
  %v2286 = vand.u32 %v2285, 4294901760
  %2287 = vmatpush1.msra.mxu0 %v2286
  %2288 = vmatprep.subr.mxu0 0.0
  %v2289 = vand.u32 %v2175, 4294901760
  %v2290 = vsub.f32 %v2175, %v2289
  %v2291 = vand.u32 %v2290, 4294901760
  %v2292 = vsub.f32 %v2290, %v2291
  %v2293 = vand.u32 %v2292, 4294901760
  %2294 = vmatpush1.msra.mxu0 %v2293
  %2295 = vmatprep.subr.mxu0 0.0
  %v2296 = vand.u32 %v2176, 4294901760
  %v2297 = vsub.f32 %v2176, %v2296
  %v2298 = vand.u32 %v2297, 4294901760
  %v2299 = vsub.f32 %v2297, %v2298
  %v2300 = vand.u32 %v2299, 4294901760
  %2301 = vmatpush1.msra.mxu0 %v2300
  %2302 = vmatprep.subr.mxu0 0.0
  %v2303 = vand.u32 %v2177, 4294901760
  %v2304 = vsub.f32 %v2177, %v2303
  %v2305 = vand.u32 %v2304, 4294901760
  %v2306 = vsub.f32 %v2304, %v2305
  %v2307 = vand.u32 %v2306, 4294901760
  %2308 = vmatpush1.msra.mxu0 %v2307
  %2309 = vmatprep.subr.mxu0 0.0
  %v2310 = vand.u32 %v2178, 4294901760
  %v2311 = vsub.f32 %v2178, %v2310
  %v2312 = vand.u32 %v2311, 4294901760
  %v2313 = vsub.f32 %v2311, %v2312
  %v2314 = vand.u32 %v2313, 4294901760
  %2315 = vmatpush1.msra.mxu0 %v2314
  %2316 = vmatprep.subr.mxu0 0.0
  %v2317 = vand.u32 %v2179, 4294901760
  %v2318 = vsub.f32 %v2179, %v2317
  %v2319 = vand.u32 %v2318, 4294901760
  %v2320 = vsub.f32 %v2318, %v2319
  %v2321 = vand.u32 %v2320, 4294901760
  %2322 = vmatpush1.msra.mxu0 %v2321
  %2323 = vmatprep.subr.mxu0 0.0
  %v2324 = vand.u32 %v2180, 4294901760
  %v2325 = vsub.f32 %v2180, %v2324
  %v2326 = vand.u32 %v2325, 4294901760
  %v2327 = vsub.f32 %v2325, %v2326
  %v2328 = vand.u32 %v2327, 4294901760
  %2329 = vmatpush1.msra.mxu0 %v2328
  %2330 = vmatprep.subr.mxu0 0.0
  %v2331 = vand.u32 %v2181, 4294901760
  %v2332 = vsub.f32 %v2181, %v2331
  %v2333 = vand.u32 %v2332, 4294901760
  %v2334 = vsub.f32 %v2332, %v2333
  %v2335 = vand.u32 %v2334, 4294901760
  %2336 = vmatpush1.msra.mxu0 %v2335
  %2337 = vmatprep.subr.mxu0 0.0
  %v2338 = vand.u32 %v2182, 4294901760
  %v2339 = vsub.f32 %v2182, %v2338
  %v2340 = vand.u32 %v2339, 4294901760
  %v2341 = vsub.f32 %v2339, %v2340
  %v2342 = vand.u32 %v2341, 4294901760
  %2343 = vmatpush1.msra.mxu0 %v2342
  %2344 = vmatprep.subr.mxu0 0.0
  %v2345 = vand.u32 %v2183, 4294901760
  %v2346 = vsub.f32 %v2183, %v2345
  %v2347 = vand.u32 %v2346, 4294901760
  %v2348 = vsub.f32 %v2346, %v2347
  %v2349 = vand.u32 %v2348, 4294901760
  %2350 = vmatpush1.msra.mxu0 %v2349
  %2351 = vmatprep.subr.mxu0 0.0
  %v2352 = vand.u32 %v2184, 4294901760
  %v2353 = vsub.f32 %v2184, %v2352
  %v2354 = vand.u32 %v2353, 4294901760
  %v2355 = vsub.f32 %v2353, %v2354
  %v2356 = vand.u32 %v2355, 4294901760
  %2357 = vmatpush1.msra.mxu0 %v2356
  %2358 = vmatprep.subr.mxu0 0.0
  %v2359 = vand.u32 %v2185, 4294901760
  %v2360 = vsub.f32 %v2185, %v2359
  %v2361 = vand.u32 %v2360, 4294901760
  %v2362 = vsub.f32 %v2360, %v2361
  %v2363 = vand.u32 %v2362, 4294901760
  %2364 = vmatpush1.msra.mxu0 %v2363
  %2365 = vmatprep.subr.mxu0 0.0
  %v2366 = vand.u32 %v2186, 4294901760
  %v2367 = vsub.f32 %v2186, %v2366
  %v2368 = vand.u32 %v2367, 4294901760
  %v2369 = vsub.f32 %v2367, %v2368
  %v2370 = vand.u32 %v2369, 4294901760
  %2371 = vmatpush1.msra.mxu0 %v2370
  %2372 = vmatprep.subr.mxu0 0.0
  %v2373 = vand.u32 %v2187, 4294901760
  %v2374 = vsub.f32 %v2187, %v2373
  %v2375 = vand.u32 %v2374, 4294901760
  %v2376 = vsub.f32 %v2374, %v2375
  %v2377 = vand.u32 %v2376, 4294901760
  %2378 = vmatpush1.msra.mxu0 %v2377
  %2379 = vmatprep.subr.mxu0 0.0
  %v2380 = vand.u32 %v2188, 4294901760
  %v2381 = vsub.f32 %v2188, %v2380
  %v2382 = vand.u32 %v2381, 4294901760
  %v2383 = vsub.f32 %v2381, %v2382
  %v2384 = vand.u32 %v2383, 4294901760
  %2385 = vmatpush1.msra.mxu0 %v2384
  %2386 = vmatprep.subr.mxu0 0.0
  %v2387 = vand.u32 %v2189, 4294901760
  %v2388 = vsub.f32 %v2189, %v2387
  %v2389 = vand.u32 %v2388, 4294901760
  %v2390 = vsub.f32 %v2388, %v2389
  %v2391 = vand.u32 %v2390, 4294901760
  %2392 = vmatpush1.msra.mxu0 %v2391
  %2393 = vmatprep.subr.mxu0 0.0
  %2394 = vmatpush1.msra.mxu0 0.0
  %2395 = vmatprep.subr.mxu0 0.0
  %2396 = vmatpush1.msra.mxu0 0.0
  %2397 = vmatprep.subr.mxu0 0.0
  %2398 = vmatpush1.msra.mxu0 0.0
  %2399 = vmatprep.subr.mxu0 0.0
  %2400 = vmatpush1.msra.mxu0 0.0
  %2401 = vmatprep.subr.mxu0 0.0
  %2402 = vmatpush1.msra.mxu0 0.0
  %2403 = vmatprep.subr.mxu0 0.0
  %2404 = vmatpush1.msra.mxu0 0.0
  %2405 = vmatprep.subr.mxu0 0.0
  %2406 = vmatpush1.msra.mxu0 0.0
  %2407 = vmatprep.subr.mxu0 0.0
  %2408 = vmatpush1.msra.mxu0 0.0
  %2409 = vmatprep.subr.mxu0 0.0
  %2410 = vmatpush1.msra.mxu0 0.0
  %2411 = vmatprep.subr.mxu0 0.0
  %2412 = vmatpush1.msra.mxu0 0.0
  %2413 = vmatprep.subr.mxu0 0.0
  %2414 = vmatpush1.msra.mxu0 0.0
  %2415 = vmatprep.subr.mxu0 0.0
  %2416 = vmatpush1.msra.mxu0 0.0
  %2417 = vmatprep.subr.mxu0 0.0
  %2418 = vmatpush1.msra.mxu0 0.0
  %2419 = vmatprep.subr.mxu0 0.0
  %2420 = vmatpush1.msra.mxu0 0.0
  %2421 = vmatprep.subr.mxu0 0.0
  %2422 = vmatpush1.msra.mxu0 0.0
  %2423 = vmatprep.subr.mxu0 0.0
  %2424 = vmatpush1.msra.mxu0 0.0
  %2425 = vmatprep.mubr.f32.mxu0 0.0
  %v2426 = vand.u32 %v2173, 4294901760
  %2427 = vmatmul.mubr.f32.gmra.mrb[0].mxu0 %v2426
  %v2428 = vpop.f32.mrb[0].mxu0
  %v2429 = vadd.f32 %v2278, %v2428
  %v2430 = vpop.f32.mrb[0].mxu0
  %2431 = vdwg.mxu0
  %2432 = vmatprep.subr.mxu0 0.0
  %v2433 = vand.u32 %v2174, 4294901760
  %v2434 = vsub.f32 %v2174, %v2433
  %2435 = vmatpush1.msra.mxu0 %v2434
  %2436 = vmatprep.subr.mxu0 0.0
  %v2437 = vand.u32 %v2175, 4294901760
  %v2438 = vsub.f32 %v2175, %v2437
  %2439 = vmatpush1.msra.mxu0 %v2438
  %2440 = vmatprep.subr.mxu0 0.0
  %v2441 = vand.u32 %v2176, 4294901760
  %v2442 = vsub.f32 %v2176, %v2441
  %2443 = vmatpush1.msra.mxu0 %v2442
  %2444 = vmatprep.subr.mxu0 0.0
  %v2445 = vand.u32 %v2177, 4294901760
  %v2446 = vsub.f32 %v2177, %v2445
  %2447 = vmatpush1.msra.mxu0 %v2446
  %2448 = vmatprep.subr.mxu0 0.0
  %v2449 = vand.u32 %v2178, 4294901760
  %v2450 = vsub.f32 %v2178, %v2449
  %2451 = vmatpush1.msra.mxu0 %v2450
  %2452 = vmatprep.subr.mxu0 0.0
  %v2453 = vand.u32 %v2179, 4294901760
  %v2454 = vsub.f32 %v2179, %v2453
  %2455 = vmatpush1.msra.mxu0 %v2454
  %2456 = vmatprep.subr.mxu0 0.0
  %v2457 = vand.u32 %v2180, 4294901760
  %v2458 = vsub.f32 %v2180, %v2457
  %2459 = vmatpush1.msra.mxu0 %v2458
  %2460 = vmatprep.subr.mxu0 0.0
  %v2461 = vand.u32 %v2181, 4294901760
  %v2462 = vsub.f32 %v2181, %v2461
  %2463 = vmatpush1.msra.mxu0 %v2462
  %2464 = vmatprep.subr.mxu0 0.0
  %v2465 = vand.u32 %v2182, 4294901760
  %v2466 = vsub.f32 %v2182, %v2465
  %2467 = vmatpush1.msra.mxu0 %v2466
  %2468 = vmatprep.subr.mxu0 0.0
  %v2469 = vand.u32 %v2183, 4294901760
  %v2470 = vsub.f32 %v2183, %v2469
  %2471 = vmatpush1.msra.mxu0 %v2470
  %2472 = vmatprep.subr.mxu0 0.0
  %v2473 = vand.u32 %v2184, 4294901760
  %v2474 = vsub.f32 %v2184, %v2473
  %2475 = vmatpush1.msra.mxu0 %v2474
  %2476 = vmatprep.subr.mxu0 0.0
  %v2477 = vand.u32 %v2185, 4294901760
  %v2478 = vsub.f32 %v2185, %v2477
  %2479 = vmatpush1.msra.mxu0 %v2478
  %2480 = vmatprep.subr.mxu0 0.0
  %v2481 = vand.u32 %v2186, 4294901760
  %v2482 = vsub.f32 %v2186, %v2481
  %2483 = vmatpush1.msra.mxu0 %v2482
  %2484 = vmatprep.subr.mxu0 0.0
  %v2485 = vand.u32 %v2187, 4294901760
  %v2486 = vsub.f32 %v2187, %v2485
  %2487 = vmatpush1.msra.mxu0 %v2486
  %2488 = vmatprep.subr.mxu0 0.0
  %v2489 = vand.u32 %v2188, 4294901760
  %v2490 = vsub.f32 %v2188, %v2489
  %2491 = vmatpush1.msra.mxu0 %v2490
  %2492 = vmatprep.subr.mxu0 0.0
  %v2493 = vand.u32 %v2189, 4294901760
  %v2494 = vsub.f32 %v2189, %v2493
  %2495 = vmatpush1.msra.mxu0 %v2494
  %2496 = vmatprep.subr.mxu0 0.0
  %2497 = vmatpush1.msra.mxu0 0.0
  %2498 = vmatprep.subr.mxu0 0.0
  %2499 = vmatpush1.msra.mxu0 0.0
  %2500 = vmatprep.subr.mxu0 0.0
  %2501 = vmatpush1.msra.mxu0 0.0
  %2502 = vmatprep.subr.mxu0 0.0
  %2503 = vmatpush1.msra.mxu0 0.0
  %2504 = vmatprep.subr.mxu0 0.0
  %2505 = vmatpush1.msra.mxu0 0.0
  %2506 = vmatprep.subr.mxu0 0.0
  %2507 = vmatpush1.msra.mxu0 0.0
  %2508 = vmatprep.subr.mxu0 0.0
  %2509 = vmatpush1.msra.mxu0 0.0
  %2510 = vmatprep.subr.mxu0 0.0
  %2511 = vmatpush1.msra.mxu0 0.0
  %2512 = vmatprep.subr.mxu0 0.0
  %2513 = vmatpush1.msra.mxu0 0.0
  %2514 = vmatprep.subr.mxu0 0.0
  %2515 = vmatpush1.msra.mxu0 0.0
  %2516 = vmatprep.subr.mxu0 0.0
  %2517 = vmatpush1.msra.mxu0 0.0
  %2518 = vmatprep.subr.mxu0 0.0
  %2519 = vmatpush1.msra.mxu0 0.0
  %2520 = vmatprep.subr.mxu0 0.0
  %2521 = vmatpush1.msra.mxu0 0.0
  %2522 = vmatprep.subr.mxu0 0.0
  %2523 = vmatpush1.msra.mxu0 0.0
  %2524 = vmatprep.subr.mxu0 0.0
  %2525 = vmatpush1.msra.mxu0 0.0
  %2526 = vmatprep.subr.mxu0 0.0
  %2527 = vmatpush1.msra.mxu0 0.0
  %2528 = vmatprep.mubr.f32.mxu0 0.0
  %v2529 = vand.u32 %v2173, 4294901760
  %v2530 = vsub.f32 %v2173, %v2529
  %2531 = vmatmul.mubr.f32.gmra.mrb[0].mxu0 %v2530
  %v2532 = vpop.f32.mrb[0].mxu0
  %v2533 = vadd.f32 %v2429, %v2532
  %v2534 = vpop.f32.mrb[0].mxu0
  %2535 = vdwg.mxu0
  %2536 = vmatprep.subr.mxu0 0.0
  %v2537 = vand.u32 %v2174, 4294901760
  %2538 = vmatpush1.msra.mxu0 %v2537
  %2539 = vmatprep.subr.mxu0 0.0
  %v2540 = vand.u32 %v2175, 4294901760
  %2541 = vmatpush1.msra.mxu0 %v2540
  %2542 = vmatprep.subr.mxu0 0.0
  %v2543 = vand.u32 %v2176, 4294901760
  %2544 = vmatpush1.msra.mxu0 %v2543
  %2545 = vmatprep.subr.mxu0 0.0
  %v2546 = vand.u32 %v2177, 4294901760
  %2547 = vmatpush1.msra.mxu0 %v2546
  %2548 = vmatprep.subr.mxu0 0.0
  %v2549 = vand.u32 %v2178, 4294901760
  %2550 = vmatpush1.msra.mxu0 %v2549
  %2551 = vmatprep.subr.mxu0 0.0
  %v2552 = vand.u32 %v2179, 4294901760
  %2553 = vmatpush1.msra.mxu0 %v2552
  %2554 = vmatprep.subr.mxu0 0.0
  %v2555 = vand.u32 %v2180, 4294901760
  %2556 = vmatpush1.msra.mxu0 %v2555
  %2557 = vmatprep.subr.mxu0 0.0
  %v2558 = vand.u32 %v2181, 4294901760
  %2559 = vmatpush1.msra.mxu0 %v2558
  %2560 = vmatprep.subr.mxu0 0.0
  %v2561 = vand.u32 %v2182, 4294901760
  %2562 = vmatpush1.msra.mxu0 %v2561
  %2563 = vmatprep.subr.mxu0 0.0
  %v2564 = vand.u32 %v2183, 4294901760
  %2565 = vmatpush1.msra.mxu0 %v2564
  %2566 = vmatprep.subr.mxu0 0.0
  %v2567 = vand.u32 %v2184, 4294901760
  %2568 = vmatpush1.msra.mxu0 %v2567
  %2569 = vmatprep.subr.mxu0 0.0
  %v2570 = vand.u32 %v2185, 4294901760
  %2571 = vmatpush1.msra.mxu0 %v2570
  %2572 = vmatprep.subr.mxu0 0.0
  %v2573 = vand.u32 %v2186, 4294901760
  %2574 = vmatpush1.msra.mxu0 %v2573
  %2575 = vmatprep.subr.mxu0 0.0
  %v2576 = vand.u32 %v2187, 4294901760
  %2577 = vmatpush1.msra.mxu0 %v2576
  %2578 = vmatprep.subr.mxu0 0.0
  %v2579 = vand.u32 %v2188, 4294901760
  %2580 = vmatpush1.msra.mxu0 %v2579
  %2581 = vmatprep.subr.mxu0 0.0
  %v2582 = vand.u32 %v2189, 4294901760
  %2583 = vmatpush1.msra.mxu0 %v2582
  %2584 = vmatprep.subr.mxu0 0.0
  %2585 = vmatpush1.msra.mxu0 0.0
  %2586 = vmatprep.subr.mxu0 0.0
  %2587 = vmatpush1.msra.mxu0 0.0
  %2588 = vmatprep.subr.mxu0 0.0
  %2589 = vmatpush1.msra.mxu0 0.0
  %2590 = vmatprep.subr.mxu0 0.0
  %2591 = vmatpush1.msra.mxu0 0.0
  %2592 = vmatprep.subr.mxu0 0.0
  %2593 = vmatpush1.msra.mxu0 0.0
  %2594 = vmatprep.subr.mxu0 0.0
  %2595 = vmatpush1.msra.mxu0 0.0
  %2596 = vmatprep.subr.mxu0 0.0
  %2597 = vmatpush1.msra.mxu0 0.0
  %2598 = vmatprep.subr.mxu0 0.0
  %2599 = vmatpush1.msra.mxu0 0.0
  %2600 = vmatprep.subr.mxu0 0.0
  %2601 = vmatpush1.msra.mxu0 0.0
  %2602 = vmatprep.subr.mxu0 0.0
  %2603 = vmatpush1.msra.mxu0 0.0
  %2604 = vmatprep.subr.mxu0 0.0
  %2605 = vmatpush1.msra.mxu0 0.0
  %2606 = vmatprep.subr.mxu0 0.0
  %2607 = vmatpush1.msra.mxu0 0.0
  %2608 = vmatprep.subr.mxu0 0.0
  %2609 = vmatpush1.msra.mxu0 0.0
  %2610 = vmatprep.subr.mxu0 0.0
  %2611 = vmatpush1.msra.mxu0 0.0
  %2612 = vmatprep.subr.mxu0 0.0
  %2613 = vmatpush1.msra.mxu0 0.0
  %2614 = vmatprep.subr.mxu0 0.0
  %2615 = vmatpush1.msra.mxu0 0.0
  %2616 = vmatprep.mubr.f32.mxu0 0.0
  %v2617 = vand.u32 %v2173, 4294901760
  %v2618 = vsub.f32 %v2173, %v2617
  %v2619 = vand.u32 %v2618, 4294901760
  %2620 = vmatmul.mubr.f32.gmra.mrb[0].mxu0 %v2619
  %v2621 = vpop.f32.mrb[0].mxu0
  %v2622 = vadd.f32 %v2533, %v2621
  %v2623 = vpop.f32.mrb[0].mxu0
  %2624 = vdwg.mxu0
  %2625 = vmatprep.subr.mxu0 0.0
  %v2626 = vand.u32 %v2174, 4294901760
  %v2627 = vsub.f32 %v2174, %v2626
  %v2628 = vand.u32 %v2627, 4294901760
  %2629 = vmatpush1.msra.mxu0 %v2628
  %2630 = vmatprep.subr.mxu0 0.0
  %v2631 = vand.u32 %v2175, 4294901760
  %v2632 = vsub.f32 %v2175, %v2631
  %v2633 = vand.u32 %v2632, 4294901760
  %2634 = vmatpush1.msra.mxu0 %v2633
  %2635 = vmatprep.subr.mxu0 0.0
  %v2636 = vand.u32 %v2176, 4294901760
  %v2637 = vsub.f32 %v2176, %v2636
  %v2638 = vand.u32 %v2637, 4294901760
  %2639 = vmatpush1.msra.mxu0 %v2638
  %2640 = vmatprep.subr.mxu0 0.0
  %v2641 = vand.u32 %v2177, 4294901760
  %v2642 = vsub.f32 %v2177, %v2641
  %v2643 = vand.u32 %v2642, 4294901760
  %2644 = vmatpush1.msra.mxu0 %v2643
  %2645 = vmatprep.subr.mxu0 0.0
  %v2646 = vand.u32 %v2178, 4294901760
  %v2647 = vsub.f32 %v2178, %v2646
  %v2648 = vand.u32 %v2647, 4294901760
  %2649 = vmatpush1.msra.mxu0 %v2648
  %2650 = vmatprep.subr.mxu0 0.0
  %v2651 = vand.u32 %v2179, 4294901760
  %v2652 = vsub.f32 %v2179, %v2651
  %v2653 = vand.u32 %v2652, 4294901760
  %2654 = vmatpush1.msra.mxu0 %v2653
  %2655 = vmatprep.subr.mxu0 0.0
  %v2656 = vand.u32 %v2180, 4294901760
  %v2657 = vsub.f32 %v2180, %v2656
  %v2658 = vand.u32 %v2657, 4294901760
  %2659 = vmatpush1.msra.mxu0 %v2658
  %2660 = vmatprep.subr.mxu0 0.0
  %v2661 = vand.u32 %v2181, 4294901760
  %v2662 = vsub.f32 %v2181, %v2661
  %v2663 = vand.u32 %v2662, 4294901760
  %2664 = vmatpush1.msra.mxu0 %v2663
  %2665 = vmatprep.subr.mxu0 0.0
  %v2666 = vand.u32 %v2182, 4294901760
  %v2667 = vsub.f32 %v2182, %v2666
  %v2668 = vand.u32 %v2667, 4294901760
  %2669 = vmatpush1.msra.mxu0 %v2668
  %2670 = vmatprep.subr.mxu0 0.0
  %v2671 = vand.u32 %v2183, 4294901760
  %v2672 = vsub.f32 %v2183, %v2671
  %v2673 = vand.u32 %v2672, 4294901760
  %2674 = vmatpush1.msra.mxu0 %v2673
  %2675 = vmatprep.subr.mxu0 0.0
  %v2676 = vand.u32 %v2184, 4294901760
  %v2677 = vsub.f32 %v2184, %v2676
  %v2678 = vand.u32 %v2677, 4294901760
  %2679 = vmatpush1.msra.mxu0 %v2678
  %2680 = vmatprep.subr.mxu0 0.0
  %v2681 = vand.u32 %v2185, 4294901760
  %v2682 = vsub.f32 %v2185, %v2681
  %v2683 = vand.u32 %v2682, 4294901760
  %2684 = vmatpush1.msra.mxu0 %v2683
  %2685 = vmatprep.subr.mxu0 0.0
  %v2686 = vand.u32 %v2186, 4294901760
  %v2687 = vsub.f32 %v2186, %v2686
  %v2688 = vand.u32 %v2687, 4294901760
  %2689 = vmatpush1.msra.mxu0 %v2688
  %2690 = vmatprep.subr.mxu0 0.0
  %v2691 = vand.u32 %v2187, 4294901760
  %v2692 = vsub.f32 %v2187, %v2691
  %v2693 = vand.u32 %v2692, 4294901760
  %2694 = vmatpush1.msra.mxu0 %v2693
  %2695 = vmatprep.subr.mxu0 0.0
  %v2696 = vand.u32 %v2188, 4294901760
  %v2697 = vsub.f32 %v2188, %v2696
  %v2698 = vand.u32 %v2697, 4294901760
  %2699 = vmatpush1.msra.mxu0 %v2698
  %2700 = vmatprep.subr.mxu0 0.0
  %v2701 = vand.u32 %v2189, 4294901760
  %v2702 = vsub.f32 %v2189, %v2701
  %v2703 = vand.u32 %v2702, 4294901760
  %2704 = vmatpush1.msra.mxu0 %v2703
  %2705 = vmatprep.subr.mxu0 0.0
  %2706 = vmatpush1.msra.mxu0 0.0
  %2707 = vmatprep.subr.mxu0 0.0
  %2708 = vmatpush1.msra.mxu0 0.0
  %2709 = vmatprep.subr.mxu0 0.0
  %2710 = vmatpush1.msra.mxu0 0.0
  %2711 = vmatprep.subr.mxu0 0.0
  %2712 = vmatpush1.msra.mxu0 0.0
  %2713 = vmatprep.subr.mxu0 0.0
  %2714 = vmatpush1.msra.mxu0 0.0
  %2715 = vmatprep.subr.mxu0 0.0
  %2716 = vmatpush1.msra.mxu0 0.0
  %2717 = vmatprep.subr.mxu0 0.0
  %2718 = vmatpush1.msra.mxu0 0.0
  %2719 = vmatprep.subr.mxu0 0.0
  %2720 = vmatpush1.msra.mxu0 0.0
  %2721 = vmatprep.subr.mxu0 0.0
  %2722 = vmatpush1.msra.mxu0 0.0
  %2723 = vmatprep.subr.mxu0 0.0
  %2724 = vmatpush1.msra.mxu0 0.0
  %2725 = vmatprep.subr.mxu0 0.0
  %2726 = vmatpush1.msra.mxu0 0.0
  %2727 = vmatprep.subr.mxu0 0.0
  %2728 = vmatpush1.msra.mxu0 0.0
  %2729 = vmatprep.subr.mxu0 0.0
  %2730 = vmatpush1.msra.mxu0 0.0
  %2731 = vmatprep.subr.mxu0 0.0
  %2732 = vmatpush1.msra.mxu0 0.0
  %2733 = vmatprep.subr.mxu0 0.0
  %2734 = vmatpush1.msra.mxu0 0.0
  %2735 = vmatprep.subr.mxu0 0.0
  %2736 = vmatpush1.msra.mxu0 0.0
  %2737 = vmatprep.mubr.f32.mxu0 0.0
  %v2738 = vand.u32 %v2173, 4294901760
  %2739 = vmatmul.mubr.f32.gmra.mrb[0].mxu0 %v2738
  %v2740 = vpop.f32.mrb[0].mxu0
  %v2741 = vadd.f32 %v2622, %v2740
  %v2742 = vpop.f32.mrb[0].mxu0
  %2743 = vdwg.mxu0
  %2744 = vmatprep.subr.mxu0 0.0
  %v2745 = vand.u32 %v2174, 4294901760
  %2746 = vmatpush1.msra.mxu0 %v2745
  %2747 = vmatprep.subr.mxu0 0.0
  %v2748 = vand.u32 %v2175, 4294901760
  %2749 = vmatpush1.msra.mxu0 %v2748
  %2750 = vmatprep.subr.mxu0 0.0
  %v2751 = vand.u32 %v2176, 4294901760
  %2752 = vmatpush1.msra.mxu0 %v2751
  %2753 = vmatprep.subr.mxu0 0.0
  %v2754 = vand.u32 %v2177, 4294901760
  %2755 = vmatpush1.msra.mxu0 %v2754
  %2756 = vmatprep.subr.mxu0 0.0
  %v2757 = vand.u32 %v2178, 4294901760
  %2758 = vmatpush1.msra.mxu0 %v2757
  %2759 = vmatprep.subr.mxu0 0.0
  %v2760 = vand.u32 %v2179, 4294901760
  %2761 = vmatpush1.msra.mxu0 %v2760
  %2762 = vmatprep.subr.mxu0 0.0
  %v2763 = vand.u32 %v2180, 4294901760
  %2764 = vmatpush1.msra.mxu0 %v2763
  %2765 = vmatprep.subr.mxu0 0.0
  %v2766 = vand.u32 %v2181, 4294901760
  %2767 = vmatpush1.msra.mxu0 %v2766
  %2768 = vmatprep.subr.mxu0 0.0
  %v2769 = vand.u32 %v2182, 4294901760
  %2770 = vmatpush1.msra.mxu0 %v2769
  %2771 = vmatprep.subr.mxu0 0.0
  %v2772 = vand.u32 %v2183, 4294901760
  %2773 = vmatpush1.msra.mxu0 %v2772
  %2774 = vmatprep.subr.mxu0 0.0
  %v2775 = vand.u32 %v2184, 4294901760
  %2776 = vmatpush1.msra.mxu0 %v2775
  %2777 = vmatprep.subr.mxu0 0.0
  %v2778 = vand.u32 %v2185, 4294901760
  %2779 = vmatpush1.msra.mxu0 %v2778
  %2780 = vmatprep.subr.mxu0 0.0
  %v2781 = vand.u32 %v2186, 4294901760
  %2782 = vmatpush1.msra.mxu0 %v2781
  %2783 = vmatprep.subr.mxu0 0.0
  %v2784 = vand.u32 %v2187, 4294901760
  %2785 = vmatpush1.msra.mxu0 %v2784
  %2786 = vmatprep.subr.mxu0 0.0
  %v2787 = vand.u32 %v2188, 4294901760
  %2788 = vmatpush1.msra.mxu0 %v2787
  %2789 = vmatprep.subr.mxu0 0.0
  %v2790 = vand.u32 %v2189, 4294901760
  %2791 = vmatpush1.msra.mxu0 %v2790
  %2792 = vmatprep.subr.mxu0 0.0
  %2793 = vmatpush1.msra.mxu0 0.0
  %2794 = vmatprep.subr.mxu0 0.0
  %2795 = vmatpush1.msra.mxu0 0.0
  %2796 = vmatprep.subr.mxu0 0.0
  %2797 = vmatpush1.msra.mxu0 0.0
  %2798 = vmatprep.subr.mxu0 0.0
  %2799 = vmatpush1.msra.mxu0 0.0
  %2800 = vmatprep.subr.mxu0 0.0
  %2801 = vmatpush1.msra.mxu0 0.0
  %2802 = vmatprep.subr.mxu0 0.0
  %2803 = vmatpush1.msra.mxu0 0.0
  %2804 = vmatprep.subr.mxu0 0.0
  %2805 = vmatpush1.msra.mxu0 0.0
  %2806 = vmatprep.subr.mxu0 0.0
  %2807 = vmatpush1.msra.mxu0 0.0
  %2808 = vmatprep.subr.mxu0 0.0
  %2809 = vmatpush1.msra.mxu0 0.0
  %2810 = vmatprep.subr.mxu0 0.0
  %2811 = vmatpush1.msra.mxu0 0.0
  %2812 = vmatprep.subr.mxu0 0.0
  %2813 = vmatpush1.msra.mxu0 0.0
  %2814 = vmatprep.subr.mxu0 0.0
  %2815 = vmatpush1.msra.mxu0 0.0
  %2816 = vmatprep.subr.mxu0 0.0
  %2817 = vmatpush1.msra.mxu0 0.0
  %2818 = vmatprep.subr.mxu0 0.0
  %2819 = vmatpush1.msra.mxu0 0.0
  %2820 = vmatprep.subr.mxu0 0.0
  %2821 = vmatpush1.msra.mxu0 0.0
  %2822 = vmatprep.subr.mxu0 0.0
  %2823 = vmatpush1.msra.mxu0 0.0
  %2824 = vmatprep.mubr.f32.mxu0 0.0
  %v2825 = vand.u32 %v2173, 4294901760
  %2826 = vmatmul.mubr.f32.gmra.mrb[0].mxu0 %v2825
  %v2827 = vpop.f32.mrb[0].mxu0
  %v2828 = vadd.f32 %v2741, %v2827
  %v2829 = vpop.f32.mrb[0].mxu0
  %2830 = vdwg.mxu0
  %v2831 = vmul.f32 %v2828, %v2828
  %v2833 = vrot.slane %v2831, 7
  %v2835 = vsub.f32 %v2828, %v2833
  %v2836 = vmax.f32 %v2835, 0.0
  %v2837 = vld [vmem:[%s3] sm:$0x1]
  %v2838 = vadd.f32 %v2836, 1e-05
  %v2839 = vrsqrt.pop %v2838
  %v2842 = vunpack.c.l.s4 1966171168
  %v2843 = vunpack.c.0.s8 %v2842
  %v2844 = vlaneseq
  %v2845 = vshrl.u32 %v2844, 7
  %v2846 = vsub.s32 %v2843, %v2845
  %v2847 = vrot.slane %v2839, %v2846
  %v2848 = vcombine.high %v2847, %v2847
  %v2850 = vunpack.c.l.s4 1966171168
  %v2851 = vunpack.c.0.s8 %v2850
  %v2852 = vlaneseq
  %v2853 = vshrl.u32 %v2852, 7
  %v2854 = vsub.s32 %v2851, %v2853
  %v2855 = vrot.slane %v2848, %v2854
  %v2857 = vmul.f32 %v2837, %v2855
  %v2858 = vld [vmem:[%s4] sm:$0x1]
  %v2859 = vmul.f32 %v2828, %v2857
  %v2860 = vsub.f32 %v2858, %v2859
  %v2862 = vlaneseq
  %v2863 = vshrl.u32 %v2862, 7
  %v2864 = vsub.s32 0, %v2863
  %v2865 = vrot.slane %v2857, %v2864
  %v2867 = vmul.f32 %v2154, %v2865
  %v2868 = vmul.f32 %v2155, %v2865
  %v2870 = vlaneseq
  %v2871 = vshrl.u32 %v2870, 7
  %v2872 = vsub.s32 0, %v2871
  %v2873 = vrot.slane %v2860, %v2872
  %v2875 = vadd.f32 %v2867, %v2873
  %v2876 = vadd.f32 %v2868, %v2873
  %v2877 = vmax.f32 %v2875, 0.0
  %v2878 = vmax.f32 %v2876, 0.0
  %v2879 = vrot.slane %v2877, 7
  %v2880 = vrot.slane %v2878, 7
  %v2881 = vsel %vm40, %v2879, %v2880
  %v2882 = vsel %vm40, %v2880, %v2879
  %v2883 = vsel %vm32, %v2882, 0.0
  %v2884 = vsel %vm33, %v2881, 0.0
  %v2885 = vrot.slane %v2877, 1
  %v2886 = vrot.slane %v2878, 1
  %v2887 = vsel %vm47, %v2885, %v2886
  %v2888 = vsel %vm47, %v2886, %v2885
  %v2889 = vsel %vm34, %v2887, 0.0
  %v2890 = vsel %vm35, %v2888, 0.0
  %v2891 = vld [vmem:[%s2] sm:$0xff]
  %v2892 = vld [vmem:[%s2 + $0x8] sm:$0xff]
  %v2893 = vld [vmem:[%s2 + $0x10] sm:$0xff]
  %v2894 = vld [vmem:[%s2 + $0x18] sm:$0xff]
  %v2895 = vld [vmem:[%s2 + $0x20] sm:$0xff]
  %v2896 = vld [vmem:[%s2 + $0x28] sm:$0xff]
  %v2897 = vld [vmem:[%s2 + $0x30] sm:$0xff]
  %v2898 = vld [vmem:[%s2 + $0x38] sm:$0xff]
  %v2899 = vld [vmem:[%s2 + $0x40] sm:$0xff]
  %v2900 = vld [vmem:[%s2 + $0x48] sm:$0xff]
  %v2901 = vld [vmem:[%s2 + $0x50] sm:$0xff]
  %v2902 = vld [vmem:[%s2 + $0x58] sm:$0xff]
  %v2903 = vld [vmem:[%s2 + $0x60] sm:$0xff]
  %v2904 = vld [vmem:[%s2 + $0x68] sm:$0xff]
  %v2905 = vld [vmem:[%s2 + $0x70] sm:$0xff]
  %v2906 = vld [vmem:[%s2 + $0x78] sm:$0xff]
  %s2907 = scalar_lea.vmem %s2, 128
  %v2908 = vld [vmem:[%s2907] sm:$0xff]
  %v2909 = vld [vmem:[%s2907 + $0x8] sm:$0xff]
  %v2910 = vld [vmem:[%s2907 + $0x10] sm:$0xff]
  %v2911 = vld [vmem:[%s2907 + $0x18] sm:$0xff]
  %v2912 = vld [vmem:[%s2907 + $0x20] sm:$0xff]
  %v2913 = vld [vmem:[%s2907 + $0x28] sm:$0xff]
  %v2914 = vld [vmem:[%s2907 + $0x30] sm:$0xff]
  %v2915 = vld [vmem:[%s2907 + $0x38] sm:$0xff]
  %v2916 = vld [vmem:[%s2907 + $0x40] sm:$0xff]
  %v2917 = vld [vmem:[%s2907 + $0x48] sm:$0xff]
  %v2918 = vld [vmem:[%s2907 + $0x50] sm:$0xff]
  %v2919 = vld [vmem:[%s2907 + $0x58] sm:$0xff]
  %v2920 = vld [vmem:[%s2907 + $0x60] sm:$0xff]
  %v2921 = vld [vmem:[%s2907 + $0x68] sm:$0xff]
  %v2922 = vld [vmem:[%s2907 + $0x70] sm:$0xff]
  %v2923 = vld [vmem:[%s2907 + $0x78] sm:$0xff]
  %2924 = vmatprep.subr.mxu0 0.0
  %v2925 = vand.u32 %v2908, 4294901760
  %2926 = vmatpush1.msra.mxu0 %v2925
  %2927 = vmatprep.subr.mxu0 0.0
  %v2928 = vand.u32 %v2909, 4294901760
  %2929 = vmatpush1.msra.mxu0 %v2928
  %2930 = vmatprep.subr.mxu0 0.0
  %v2931 = vand.u32 %v2910, 4294901760
  %2932 = vmatpush1.msra.mxu0 %v2931
  %2933 = vmatprep.subr.mxu0 0.0
  %v2934 = vand.u32 %v2911, 4294901760
  %2935 = vmatpush1.msra.mxu0 %v2934
  %2936 = vmatprep.subr.mxu0 0.0
  %v2937 = vand.u32 %v2912, 4294901760
  %2938 = vmatpush1.msra.mxu0 %v2937
  %2939 = vmatprep.subr.mxu0 0.0
  %v2940 = vand.u32 %v2913, 4294901760
  %2941 = vmatpush1.msra.mxu0 %v2940
  %2942 = vmatprep.subr.mxu0 0.0
  %v2943 = vand.u32 %v2914, 4294901760
  %2944 = vmatpush1.msra.mxu0 %v2943
  %2945 = vmatprep.subr.mxu0 0.0
  %v2946 = vand.u32 %v2915, 4294901760
  %2947 = vmatpush1.msra.mxu0 %v2946
  %2948 = vmatprep.subr.mxu0 0.0
  %v2949 = vand.u32 %v2916, 4294901760
  %2950 = vmatpush1.msra.mxu0 %v2949
  %2951 = vmatprep.subr.mxu0 0.0
  %v2952 = vand.u32 %v2917, 4294901760
  %2953 = vmatpush1.msra.mxu0 %v2952
  %2954 = vmatprep.subr.mxu0 0.0
  %v2955 = vand.u32 %v2918, 4294901760
  %2956 = vmatpush1.msra.mxu0 %v2955
  %2957 = vmatprep.subr.mxu0 0.0
  %v2958 = vand.u32 %v2919, 4294901760
  %2959 = vmatpush1.msra.mxu0 %v2958
  %2960 = vmatprep.subr.mxu0 0.0
  %v2961 = vand.u32 %v2920, 4294901760
  %2962 = vmatpush1.msra.mxu0 %v2961
  %2963 = vmatprep.subr.mxu0 0.0
  %v2964 = vand.u32 %v2921, 4294901760
  %2965 = vmatpush1.msra.mxu0 %v2964
  %2966 = vmatprep.subr.mxu0 0.0
  %v2967 = vand.u32 %v2922, 4294901760
  %2968 = vmatpush1.msra.mxu0 %v2967
  %2969 = vmatprep.subr.mxu0 0.0
  %v2970 = vand.u32 %v2923, 4294901760
  %2971 = vmatpush1.msra.mxu0 %v2970
  %2972 = vmatprep.subr.mxu0 0.0
  %2973 = vmatpush1.msra.mxu0 0.0
  %2974 = vmatprep.subr.mxu0 0.0
  %2975 = vmatpush1.msra.mxu0 0.0
  %2976 = vmatprep.subr.mxu0 0.0
  %2977 = vmatpush1.msra.mxu0 0.0
  %2978 = vmatprep.subr.mxu0 0.0
  %2979 = vmatpush1.msra.mxu0 0.0
  %2980 = vmatprep.subr.mxu0 0.0
  %2981 = vmatpush1.msra.mxu0 0.0
  %2982 = vmatprep.subr.mxu0 0.0
  %2983 = vmatpush1.msra.mxu0 0.0
  %2984 = vmatprep.subr.mxu0 0.0
  %2985 = vmatpush1.msra.mxu0 0.0
  %2986 = vmatprep.subr.mxu0 0.0
  %2987 = vmatpush1.msra.mxu0 0.0
  %2988 = vmatprep.subr.mxu0 0.0
  %2989 = vmatpush1.msra.mxu0 0.0
  %2990 = vmatprep.subr.mxu0 0.0
  %2991 = vmatpush1.msra.mxu0 0.0
  %2992 = vmatprep.subr.mxu0 0.0
  %2993 = vmatpush1.msra.mxu0 0.0
  %2994 = vmatprep.subr.mxu0 0.0
  %2995 = vmatpush1.msra.mxu0 0.0
  %2996 = vmatprep.subr.mxu0 0.0
  %2997 = vmatpush1.msra.mxu0 0.0
  %2998 = vmatprep.subr.mxu0 0.0
  %2999 = vmatpush1.msra.mxu0 0.0
  %3000 = vmatprep.subr.mxu0 0.0
  %3001 = vmatpush1.msra.mxu0 0.0
  %3002 = vmatprep.subr.mxu0 0.0
  %3003 = vmatpush1.msra.mxu0 0.0
  %3004 = vmatprep.mubr.f32.mxu0 0.0
  %v3005 = vand.u32 %v2877, 4294901760
  %v3006 = vsub.f32 %v2877, %v3005
  %v3007 = vand.u32 %v3006, 4294901760
  %v3008 = vsub.f32 %v3006, %v3007
  %v3009 = vand.u32 %v3008, 4294901760
  %3010 = vmatmul.mubr.f32.gmra.mrb[0].mxu0 %v3009
  %v3011 = vpop.f32.mrb[0].mxu0
  %v3012 = vadd.f32 0.0, %v3011
  %v3013 = vpop.f32.mrb[0].mxu0
  %3014 = vmatprep.mubr.f32.mxu0 0.0
  %v3015 = vand.u32 %v2878, 4294901760
  %v3016 = vsub.f32 %v2878, %v3015
  %v3017 = vand.u32 %v3016, 4294901760
  %v3018 = vsub.f32 %v3016, %v3017
  %v3019 = vand.u32 %v3018, 4294901760
  %3020 = vmatmul.mubr.f32.gmra.mrb[0].mxu0 %v3019
  %v3021 = vpop.f32.mrb[0].mxu0
  %v3022 = vadd.f32 0.0, %v3021
  %v3023 = vpop.f32.mrb[0].mxu0
  %3024 = vdwg.mxu0
  %3025 = vmatprep.subr.mxu0 0.0
  %v3026 = vand.u32 %v2908, 4294901760
  %v3027 = vsub.f32 %v2908, %v3026
  %v3028 = vand.u32 %v3027, 4294901760
  %v3029 = vsub.f32 %v3027, %v3028
  %v3030 = vand.u32 %v3029, 4294901760
  %3031 = vmatpush1.msra.mxu0 %v3030
  %3032 = vmatprep.subr.mxu0 0.0
  %v3033 = vand.u32 %v2909, 4294901760
  %v3034 = vsub.f32 %v2909, %v3033
  %v3035 = vand.u32 %v3034, 4294901760
  %v3036 = vsub.f32 %v3034, %v3035
  %v3037 = vand.u32 %v3036, 4294901760
  %3038 = vmatpush1.msra.mxu0 %v3037
  %3039 = vmatprep.subr.mxu0 0.0
  %v3040 = vand.u32 %v2910, 4294901760
  %v3041 = vsub.f32 %v2910, %v3040
  %v3042 = vand.u32 %v3041, 4294901760
  %v3043 = vsub.f32 %v3041, %v3042
  %v3044 = vand.u32 %v3043, 4294901760
  %3045 = vmatpush1.msra.mxu0 %v3044
  %3046 = vmatprep.subr.mxu0 0.0
  %v3047 = vand.u32 %v2911, 4294901760
  %v3048 = vsub.f32 %v2911, %v3047
  %v3049 = vand.u32 %v3048, 4294901760
  %v3050 = vsub.f32 %v3048, %v3049
  %v3051 = vand.u32 %v3050, 4294901760
  %3052 = vmatpush1.msra.mxu0 %v3051
  %3053 = vmatprep.subr.mxu0 0.0
  %v3054 = vand.u32 %v2912, 4294901760
  %v3055 = vsub.f32 %v2912, %v3054
  %v3056 = vand.u32 %v3055, 4294901760
  %v3057 = vsub.f32 %v3055, %v3056
  %v3058 = vand.u32 %v3057, 4294901760
  %3059 = vmatpush1.msra.mxu0 %v3058
  %3060 = vmatprep.subr.mxu0 0.0
  %v3061 = vand.u32 %v2913, 4294901760
  %v3062 = vsub.f32 %v2913, %v3061
  %v3063 = vand.u32 %v3062, 4294901760
  %v3064 = vsub.f32 %v3062, %v3063
  %v3065 = vand.u32 %v3064, 4294901760
  %3066 = vmatpush1.msra.mxu0 %v3065
  %3067 = vmatprep.subr.mxu0 0.0
  %v3068 = vand.u32 %v2914, 4294901760
  %v3069 = vsub.f32 %v2914, %v3068
  %v3070 = vand.u32 %v3069, 4294901760
  %v3071 = vsub.f32 %v3069, %v3070
  %v3072 = vand.u32 %v3071, 4294901760
  %3073 = vmatpush1.msra.mxu0 %v3072
  %3074 = vmatprep.subr.mxu0 0.0
  %v3075 = vand.u32 %v2915, 4294901760
  %v3076 = vsub.f32 %v2915, %v3075
  %v3077 = vand.u32 %v3076, 4294901760
  %v3078 = vsub.f32 %v3076, %v3077
  %v3079 = vand.u32 %v3078, 4294901760
  %3080 = vmatpush1.msra.mxu0 %v3079
  %3081 = vmatprep.subr.mxu0 0.0
  %v3082 = vand.u32 %v2916, 4294901760
  %v3083 = vsub.f32 %v2916, %v3082
  %v3084 = vand.u32 %v3083, 4294901760
  %v3085 = vsub.f32 %v3083, %v3084
  %v3086 = vand.u32 %v3085, 4294901760
  %3087 = vmatpush1.msra.mxu0 %v3086
  %3088 = vmatprep.subr.mxu0 0.0
  %v3089 = vand.u32 %v2917, 4294901760
  %v3090 = vsub.f32 %v2917, %v3089
  %v3091 = vand.u32 %v3090, 4294901760
  %v3092 = vsub.f32 %v3090, %v3091
  %v3093 = vand.u32 %v3092, 4294901760
  %3094 = vmatpush1.msra.mxu0 %v3093
  %3095 = vmatprep.subr.mxu0 0.0
  %v3096 = vand.u32 %v2918, 4294901760
  %v3097 = vsub.f32 %v2918, %v3096
  %v3098 = vand.u32 %v3097, 4294901760
  %v3099 = vsub.f32 %v3097, %v3098
  %v3100 = vand.u32 %v3099, 4294901760
  %3101 = vmatpush1.msra.mxu0 %v3100
  %3102 = vmatprep.subr.mxu0 0.0
  %v3103 = vand.u32 %v2919, 4294901760
  %v3104 = vsub.f32 %v2919, %v3103
  %v3105 = vand.u32 %v3104, 4294901760
  %v3106 = vsub.f32 %v3104, %v3105
  %v3107 = vand.u32 %v3106, 4294901760
  %3108 = vmatpush1.msra.mxu0 %v3107
  %3109 = vmatprep.subr.mxu0 0.0
  %v3110 = vand.u32 %v2920, 4294901760
  %v3111 = vsub.f32 %v2920, %v3110
  %v3112 = vand.u32 %v3111, 4294901760
  %v3113 = vsub.f32 %v3111, %v3112
  %v3114 = vand.u32 %v3113, 4294901760
  %3115 = vmatpush1.msra.mxu0 %v3114
  %3116 = vmatprep.subr.mxu0 0.0
  %v3117 = vand.u32 %v2921, 4294901760
  %v3118 = vsub.f32 %v2921, %v3117
  %v3119 = vand.u32 %v3118, 4294901760
  %v3120 = vsub.f32 %v3118, %v3119
  %v3121 = vand.u32 %v3120, 4294901760
  %3122 = vmatpush1.msra.mxu0 %v3121
  %3123 = vmatprep.subr.mxu0 0.0
  %v3124 = vand.u32 %v2922, 4294901760
  %v3125 = vsub.f32 %v2922, %v3124
  %v3126 = vand.u32 %v3125, 4294901760
  %v3127 = vsub.f32 %v3125, %v3126
  %v3128 = vand.u32 %v3127, 4294901760
  %3129 = vmatpush1.msra.mxu0 %v3128
  %3130 = vmatprep.subr.mxu0 0.0
  %v3131 = vand.u32 %v2923, 4294901760
  %v3132 = vsub.f32 %v2923, %v3131
  %v3133 = vand.u32 %v3132, 4294901760
  %v3134 = vsub.f32 %v3132, %v3133
  %v3135 = vand.u32 %v3134, 4294901760
  %3136 = vmatpush1.msra.mxu0 %v3135
  %3137 = vmatprep.subr.mxu0 0.0
  %3138 = vmatpush1.msra.mxu0 0.0
  %3139 = vmatprep.subr.mxu0 0.0
  %3140 = vmatpush1.msra.mxu0 0.0
  %3141 = vmatprep.subr.mxu0 0.0
  %3142 = vmatpush1.msra.mxu0 0.0
  %3143 = vmatprep.subr.mxu0 0.0
  %3144 = vmatpush1.msra.mxu0 0.0
  %3145 = vmatprep.subr.mxu0 0.0
  %3146 = vmatpush1.msra.mxu0 0.0
  %3147 = vmatprep.subr.mxu0 0.0
  %3148 = vmatpush1.msra.mxu0 0.0
  %3149 = vmatprep.subr.mxu0 0.0
  %3150 = vmatpush1.msra.mxu0 0.0
  %3151 = vmatprep.subr.mxu0 0.0
  %3152 = vmatpush1.msra.mxu0 0.0
  %3153 = vmatprep.subr.mxu0 0.0
  %3154 = vmatpush1.msra.mxu0 0.0
  %3155 = vmatprep.subr.mxu0 0.0
  %3156 = vmatpush1.msra.mxu0 0.0
  %3157 = vmatprep.subr.mxu0 0.0
  %3158 = vmatpush1.msra.mxu0 0.0
  %3159 = vmatprep.subr.mxu0 0.0
  %3160 = vmatpush1.msra.mxu0 0.0
  %3161 = vmatprep.subr.mxu0 0.0
  %3162 = vmatpush1.msra.mxu0 0.0
  %3163 = vmatprep.subr.mxu0 0.0
  %3164 = vmatpush1.msra.mxu0 0.0
  %3165 = vmatprep.subr.mxu0 0.0
  %3166 = vmatpush1.msra.mxu0 0.0
  %3167 = vmatprep.subr.mxu0 0.0
  %3168 = vmatpush1.msra.mxu0 0.0
  %3169 = vmatprep.mubr.f32.mxu0 0.0
  %v3170 = vand.u32 %v2877, 4294901760
  %3171 = vmatmul.mubr.f32.gmra.mrb[0].mxu0 %v3170
  %v3172 = vpop.f32.mrb[0].mxu0
  %v3173 = vadd.f32 %v3012, %v3172
  %v3174 = vpop.f32.mrb[0].mxu0
  %3175 = vmatprep.mubr.f32.mxu0 0.0
  %v3176 = vand.u32 %v2878, 4294901760
  %3177 = vmatmul.mubr.f32.gmra.mrb[0].mxu0 %v3176
  %v3178 = vpop.f32.mrb[0].mxu0
  %v3179 = vadd.f32 %v3022, %v3178
  %v3180 = vpop.f32.mrb[0].mxu0
  %3181 = vdwg.mxu0
  %3182 = vmatprep.subr.mxu0 0.0
  %v3183 = vand.u32 %v2908, 4294901760
  %v3184 = vsub.f32 %v2908, %v3183
  %3185 = vmatpush1.msra.mxu0 %v3184
  %3186 = vmatprep.subr.mxu0 0.0
  %v3187 = vand.u32 %v2909, 4294901760
  %v3188 = vsub.f32 %v2909, %v3187
  %3189 = vmatpush1.msra.mxu0 %v3188
  %3190 = vmatprep.subr.mxu0 0.0
  %v3191 = vand.u32 %v2910, 4294901760
  %v3192 = vsub.f32 %v2910, %v3191
  %3193 = vmatpush1.msra.mxu0 %v3192
  %3194 = vmatprep.subr.mxu0 0.0
  %v3195 = vand.u32 %v2911, 4294901760
  %v3196 = vsub.f32 %v2911, %v3195
  %3197 = vmatpush1.msra.mxu0 %v3196
  %3198 = vmatprep.subr.mxu0 0.0
  %v3199 = vand.u32 %v2912, 4294901760
  %v3200 = vsub.f32 %v2912, %v3199
  %3201 = vmatpush1.msra.mxu0 %v3200
  %3202 = vmatprep.subr.mxu0 0.0
  %v3203 = vand.u32 %v2913, 4294901760
  %v3204 = vsub.f32 %v2913, %v3203
  %3205 = vmatpush1.msra.mxu0 %v3204
  %3206 = vmatprep.subr.mxu0 0.0
  %v3207 = vand.u32 %v2914, 4294901760
  %v3208 = vsub.f32 %v2914, %v3207
  %3209 = vmatpush1.msra.mxu0 %v3208
  %3210 = vmatprep.subr.mxu0 0.0
  %v3211 = vand.u32 %v2915, 4294901760
  %v3212 = vsub.f32 %v2915, %v3211
  %3213 = vmatpush1.msra.mxu0 %v3212
  %3214 = vmatprep.subr.mxu0 0.0
  %v3215 = vand.u32 %v2916, 4294901760
  %v3216 = vsub.f32 %v2916, %v3215
  %3217 = vmatpush1.msra.mxu0 %v3216
  %3218 = vmatprep.subr.mxu0 0.0
  %v3219 = vand.u32 %v2917, 4294901760
  %v3220 = vsub.f32 %v2917, %v3219
  %3221 = vmatpush1.msra.mxu0 %v3220
  %3222 = vmatprep.subr.mxu0 0.0
  %v3223 = vand.u32 %v2918, 4294901760
  %v3224 = vsub.f32 %v2918, %v3223
  %3225 = vmatpush1.msra.mxu0 %v3224
  %3226 = vmatprep.subr.mxu0 0.0
  %v3227 = vand.u32 %v2919, 4294901760
  %v3228 = vsub.f32 %v2919, %v3227
  %3229 = vmatpush1.msra.mxu0 %v3228
  %3230 = vmatprep.subr.mxu0 0.0
  %v3231 = vand.u32 %v2920, 4294901760
  %v3232 = vsub.f32 %v2920, %v3231
  %3233 = vmatpush1.msra.mxu0 %v3232
  %3234 = vmatprep.subr.mxu0 0.0
  %v3235 = vand.u32 %v2921, 4294901760
  %v3236 = vsub.f32 %v2921, %v3235
  %3237 = vmatpush1.msra.mxu0 %v3236
  %3238 = vmatprep.subr.mxu0 0.0
  %v3239 = vand.u32 %v2922, 4294901760
  %v3240 = vsub.f32 %v2922, %v3239
  %3241 = vmatpush1.msra.mxu0 %v3240
  %3242 = vmatprep.subr.mxu0 0.0
  %v3243 = vand.u32 %v2923, 4294901760
  %v3244 = vsub.f32 %v2923, %v3243
  %3245 = vmatpush1.msra.mxu0 %v3244
  %3246 = vmatprep.subr.mxu0 0.0
  %3247 = vmatpush1.msra.mxu0 0.0
  %3248 = vmatprep.subr.mxu0 0.0
  %3249 = vmatpush1.msra.mxu0 0.0
  %3250 = vmatprep.subr.mxu0 0.0
  %3251 = vmatpush1.msra.mxu0 0.0
  %3252 = vmatprep.subr.mxu0 0.0
  %3253 = vmatpush1.msra.mxu0 0.0
  %3254 = vmatprep.subr.mxu0 0.0
  %3255 = vmatpush1.msra.mxu0 0.0
  %3256 = vmatprep.subr.mxu0 0.0
  %3257 = vmatpush1.msra.mxu0 0.0
  %3258 = vmatprep.subr.mxu0 0.0
  %3259 = vmatpush1.msra.mxu0 0.0
  %3260 = vmatprep.subr.mxu0 0.0
  %3261 = vmatpush1.msra.mxu0 0.0
  %3262 = vmatprep.subr.mxu0 0.0
  %3263 = vmatpush1.msra.mxu0 0.0
  %3264 = vmatprep.subr.mxu0 0.0
  %3265 = vmatpush1.msra.mxu0 0.0
  %3266 = vmatprep.subr.mxu0 0.0
  %3267 = vmatpush1.msra.mxu0 0.0
  %3268 = vmatprep.subr.mxu0 0.0
  %3269 = vmatpush1.msra.mxu0 0.0
  %3270 = vmatprep.subr.mxu0 0.0
  %3271 = vmatpush1.msra.mxu0 0.0
  %3272 = vmatprep.subr.mxu0 0.0
  %3273 = vmatpush1.msra.mxu0 0.0
  %3274 = vmatprep.subr.mxu0 0.0
  %3275 = vmatpush1.msra.mxu0 0.0
  %3276 = vmatprep.subr.mxu0 0.0
  %3277 = vmatpush1.msra.mxu0 0.0
  %3278 = vmatprep.mubr.f32.mxu0 0.0
  %v3279 = vand.u32 %v2877, 4294901760
  %v3280 = vsub.f32 %v2877, %v3279
  %3281 = vmatmul.mubr.f32.gmra.mrb[0].mxu0 %v3280
  %v3282 = vpop.f32.mrb[0].mxu0
  %v3283 = vadd.f32 %v3173, %v3282
  %v3284 = vpop.f32.mrb[0].mxu0
  %3285 = vmatprep.mubr.f32.mxu0 0.0
  %v3286 = vand.u32 %v2878, 4294901760
  %v3287 = vsub.f32 %v2878, %v3286
  %3288 = vmatmul.mubr.f32.gmra.mrb[0].mxu0 %v3287
  %v3289 = vpop.f32.mrb[0].mxu0
  %v3290 = vadd.f32 %v3179, %v3289
  %v3291 = vpop.f32.mrb[0].mxu0
  %3292 = vdwg.mxu0
  %3293 = vmatprep.subr.mxu0 0.0
  %v3294 = vand.u32 %v2908, 4294901760
  %3295 = vmatpush1.msra.mxu0 %v3294
  %3296 = vmatprep.subr.mxu0 0.0
  %v3297 = vand.u32 %v2909, 4294901760
  %3298 = vmatpush1.msra.mxu0 %v3297
  %3299 = vmatprep.subr.mxu0 0.0
  %v3300 = vand.u32 %v2910, 4294901760
  %3301 = vmatpush1.msra.mxu0 %v3300
  %3302 = vmatprep.subr.mxu0 0.0
  %v3303 = vand.u32 %v2911, 4294901760
  %3304 = vmatpush1.msra.mxu0 %v3303
  %3305 = vmatprep.subr.mxu0 0.0
  %v3306 = vand.u32 %v2912, 4294901760
  %3307 = vmatpush1.msra.mxu0 %v3306
  %3308 = vmatprep.subr.mxu0 0.0
  %v3309 = vand.u32 %v2913, 4294901760
  %3310 = vmatpush1.msra.mxu0 %v3309
  %3311 = vmatprep.subr.mxu0 0.0
  %v3312 = vand.u32 %v2914, 4294901760
  %3313 = vmatpush1.msra.mxu0 %v3312
  %3314 = vmatprep.subr.mxu0 0.0
  %v3315 = vand.u32 %v2915, 4294901760
  %3316 = vmatpush1.msra.mxu0 %v3315
  %3317 = vmatprep.subr.mxu0 0.0
  %v3318 = vand.u32 %v2916, 4294901760
  %3319 = vmatpush1.msra.mxu0 %v3318
  %3320 = vmatprep.subr.mxu0 0.0
  %v3321 = vand.u32 %v2917, 4294901760
  %3322 = vmatpush1.msra.mxu0 %v3321
  %3323 = vmatprep.subr.mxu0 0.0
  %v3324 = vand.u32 %v2918, 4294901760
  %3325 = vmatpush1.msra.mxu0 %v3324
  %3326 = vmatprep.subr.mxu0 0.0
  %v3327 = vand.u32 %v2919, 4294901760
  %3328 = vmatpush1.msra.mxu0 %v3327
  %3329 = vmatprep.subr.mxu0 0.0
  %v3330 = vand.u32 %v2920, 4294901760
  %3331 = vmatpush1.msra.mxu0 %v3330
  %3332 = vmatprep.subr.mxu0 0.0
  %v3333 = vand.u32 %v2921, 4294901760
  %3334 = vmatpush1.msra.mxu0 %v3333
  %3335 = vmatprep.subr.mxu0 0.0
  %v3336 = vand.u32 %v2922, 4294901760
  %3337 = vmatpush1.msra.mxu0 %v3336
  %3338 = vmatprep.subr.mxu0 0.0
  %v3339 = vand.u32 %v2923, 4294901760
  %3340 = vmatpush1.msra.mxu0 %v3339
  %3341 = vmatprep.subr.mxu0 0.0
  %3342 = vmatpush1.msra.mxu0 0.0
  %3343 = vmatprep.subr.mxu0 0.0
  %3344 = vmatpush1.msra.mxu0 0.0
  %3345 = vmatprep.subr.mxu0 0.0
  %3346 = vmatpush1.msra.mxu0 0.0
  %3347 = vmatprep.subr.mxu0 0.0
  %3348 = vmatpush1.msra.mxu0 0.0
  %3349 = vmatprep.subr.mxu0 0.0
  %3350 = vmatpush1.msra.mxu0 0.0
  %3351 = vmatprep.subr.mxu0 0.0
  %3352 = vmatpush1.msra.mxu0 0.0
  %3353 = vmatprep.subr.mxu0 0.0
  %3354 = vmatpush1.msra.mxu0 0.0
  %3355 = vmatprep.subr.mxu0 0.0
  %3356 = vmatpush1.msra.mxu0 0.0
  %3357 = vmatprep.subr.mxu0 0.0
  %3358 = vmatpush1.msra.mxu0 0.0
  %3359 = vmatprep.subr.mxu0 0.0
  %3360 = vmatpush1.msra.mxu0 0.0
  %3361 = vmatprep.subr.mxu0 0.0
  %3362 = vmatpush1.msra.mxu0 0.0
  %3363 = vmatprep.subr.mxu0 0.0
  %3364 = vmatpush1.msra.mxu0 0.0
  %3365 = vmatprep.subr.mxu0 0.0
  %3366 = vmatpush1.msra.mxu0 0.0
  %3367 = vmatprep.subr.mxu0 0.0
  %3368 = vmatpush1.msra.mxu0 0.0
  %3369 = vmatprep.subr.mxu0 0.0
  %3370 = vmatpush1.msra.mxu0 0.0
  %3371 = vmatprep.subr.mxu0 0.0
  %3372 = vmatpush1.msra.mxu0 0.0
  %3373 = vmatprep.mubr.f32.mxu0 0.0
  %v3374 = vand.u32 %v2877, 4294901760
  %v3375 = vsub.f32 %v2877, %v3374
  %v3376 = vand.u32 %v3375, 4294901760
  %3377 = vmatmul.mubr.f32.gmra.mrb[0].mxu0 %v3376
  %v3378 = vpop.f32.mrb[0].mxu0
  %v3379 = vadd.f32 %v3283, %v3378
  %v3380 = vpop.f32.mrb[0].mxu0
  %3381 = vmatprep.mubr.f32.mxu0 0.0
  %v3382 = vand.u32 %v2878, 4294901760
  %v3383 = vsub.f32 %v2878, %v3382
  %v3384 = vand.u32 %v3383, 4294901760
  %3385 = vmatmul.mubr.f32.gmra.mrb[0].mxu0 %v3384
  %v3386 = vpop.f32.mrb[0].mxu0
  %v3387 = vadd.f32 %v3290, %v3386
  %v3388 = vpop.f32.mrb[0].mxu0
  %3389 = vdwg.mxu0
  %3390 = vmatprep.subr.mxu0 0.0
  %v3391 = vand.u32 %v2908, 4294901760
  %v3392 = vsub.f32 %v2908, %v3391
  %v3393 = vand.u32 %v3392, 4294901760
  %3394 = vmatpush1.msra.mxu0 %v3393
  %3395 = vmatprep.subr.mxu0 0.0
  %v3396 = vand.u32 %v2909, 4294901760
  %v3397 = vsub.f32 %v2909, %v3396
  %v3398 = vand.u32 %v3397, 4294901760
  %3399 = vmatpush1.msra.mxu0 %v3398
  %3400 = vmatprep.subr.mxu0 0.0
  %v3401 = vand.u32 %v2910, 4294901760
  %v3402 = vsub.f32 %v2910, %v3401
  %v3403 = vand.u32 %v3402, 4294901760
  %3404 = vmatpush1.msra.mxu0 %v3403
  %3405 = vmatprep.subr.mxu0 0.0
  %v3406 = vand.u32 %v2911, 4294901760
  %v3407 = vsub.f32 %v2911, %v3406
  %v3408 = vand.u32 %v3407, 4294901760
  %3409 = vmatpush1.msra.mxu0 %v3408
  %3410 = vmatprep.subr.mxu0 0.0
  %v3411 = vand.u32 %v2912, 4294901760
  %v3412 = vsub.f32 %v2912, %v3411
  %v3413 = vand.u32 %v3412, 4294901760
  %3414 = vmatpush1.msra.mxu0 %v3413
  %3415 = vmatprep.subr.mxu0 0.0
  %v3416 = vand.u32 %v2913, 4294901760
  %v3417 = vsub.f32 %v2913, %v3416
  %v3418 = vand.u32 %v3417, 4294901760
  %3419 = vmatpush1.msra.mxu0 %v3418
  %3420 = vmatprep.subr.mxu0 0.0
  %v3421 = vand.u32 %v2914, 4294901760
  %v3422 = vsub.f32 %v2914, %v3421
  %v3423 = vand.u32 %v3422, 4294901760
  %3424 = vmatpush1.msra.mxu0 %v3423
  %3425 = vmatprep.subr.mxu0 0.0
  %v3426 = vand.u32 %v2915, 4294901760
  %v3427 = vsub.f32 %v2915, %v3426
  %v3428 = vand.u32 %v3427, 4294901760
  %3429 = vmatpush1.msra.mxu0 %v3428
  %3430 = vmatprep.subr.mxu0 0.0
  %v3431 = vand.u32 %v2916, 4294901760
  %v3432 = vsub.f32 %v2916, %v3431
  %v3433 = vand.u32 %v3432, 4294901760
  %3434 = vmatpush1.msra.mxu0 %v3433
  %3435 = vmatprep.subr.mxu0 0.0
  %v3436 = vand.u32 %v2917, 4294901760
  %v3437 = vsub.f32 %v2917, %v3436
  %v3438 = vand.u32 %v3437, 4294901760
  %3439 = vmatpush1.msra.mxu0 %v3438
  %3440 = vmatprep.subr.mxu0 0.0
  %v3441 = vand.u32 %v2918, 4294901760
  %v3442 = vsub.f32 %v2918, %v3441
  %v3443 = vand.u32 %v3442, 4294901760
  %3444 = vmatpush1.msra.mxu0 %v3443
  %3445 = vmatprep.subr.mxu0 0.0
  %v3446 = vand.u32 %v2919, 4294901760
  %v3447 = vsub.f32 %v2919, %v3446
  %v3448 = vand.u32 %v3447, 4294901760
  %3449 = vmatpush1.msra.mxu0 %v3448
  %3450 = vmatprep.subr.mxu0 0.0
  %v3451 = vand.u32 %v2920, 4294901760
  %v3452 = vsub.f32 %v2920, %v3451
  %v3453 = vand.u32 %v3452, 4294901760
  %3454 = vmatpush1.msra.mxu0 %v3453
  %3455 = vmatprep.subr.mxu0 0.0
  %v3456 = vand.u32 %v2921, 4294901760
  %v3457 = vsub.f32 %v2921, %v3456
  %v3458 = vand.u32 %v3457, 4294901760
  %3459 = vmatpush1.msra.mxu0 %v3458
  %3460 = vmatprep.subr.mxu0 0.0
  %v3461 = vand.u32 %v2922, 4294901760
  %v3462 = vsub.f32 %v2922, %v3461
  %v3463 = vand.u32 %v3462, 4294901760
  %3464 = vmatpush1.msra.mxu0 %v3463
  %3465 = vmatprep.subr.mxu0 0.0
  %v3466 = vand.u32 %v2923, 4294901760
  %v3467 = vsub.f32 %v2923, %v3466
  %v3468 = vand.u32 %v3467, 4294901760
  %3469 = vmatpush1.msra.mxu0 %v3468
  %3470 = vmatprep.subr.mxu0 0.0
  %3471 = vmatpush1.msra.mxu0 0.0
  %3472 = vmatprep.subr.mxu0 0.0
  %3473 = vmatpush1.msra.mxu0 0.0
  %3474 = vmatprep.subr.mxu0 0.0
  %3475 = vmatpush1.msra.mxu0 0.0
  %3476 = vmatprep.subr.mxu0 0.0
  %3477 = vmatpush1.msra.mxu0 0.0
  %3478 = vmatprep.subr.mxu0 0.0
  %3479 = vmatpush1.msra.mxu0 0.0
  %3480 = vmatprep.subr.mxu0 0.0
  %3481 = vmatpush1.msra.mxu0 0.0
  %3482 = vmatprep.subr.mxu0 0.0
  %3483 = vmatpush1.msra.mxu0 0.0
  %3484 = vmatprep.subr.mxu0 0.0
  %3485 = vmatpush1.msra.mxu0 0.0
  %3486 = vmatprep.subr.mxu0 0.0
  %3487 = vmatpush1.msra.mxu0 0.0
  %3488 = vmatprep.subr.mxu0 0.0
  %3489 = vmatpush1.msra.mxu0 0.0
  %3490 = vmatprep.subr.mxu0 0.0
  %3491 = vmatpush1.msra.mxu0 0.0
  %3492 = vmatprep.subr.mxu0 0.0
  %3493 = vmatpush1.msra.mxu0 0.0
  %3494 = vmatprep.subr.mxu0 0.0
  %3495 = vmatpush1.msra.mxu0 0.0
  %3496 = vmatprep.subr.mxu0 0.0
  %3497 = vmatpush1.msra.mxu0 0.0
  %3498 = vmatprep.subr.mxu0 0.0
  %3499 = vmatpush1.msra.mxu0 0.0
  %3500 = vmatprep.subr.mxu0 0.0
  %3501 = vmatpush1.msra.mxu0 0.0
  %3502 = vmatprep.mubr.f32.mxu0 0.0
  %v3503 = vand.u32 %v2877, 4294901760
  %3504 = vmatmul.mubr.f32.gmra.mrb[0].mxu0 %v3503
  %v3505 = vpop.f32.mrb[0].mxu0
  %v3506 = vadd.f32 %v3379, %v3505
  %v3507 = vpop.f32.mrb[0].mxu0
  %3508 = vmatprep.mubr.f32.mxu0 0.0
  %v3509 = vand.u32 %v2878, 4294901760
  %3510 = vmatmul.mubr.f32.gmra.mrb[0].mxu0 %v3509
  %v3511 = vpop.f32.mrb[0].mxu0
  %v3512 = vadd.f32 %v3387, %v3511
  %v3513 = vpop.f32.mrb[0].mxu0
  %3514 = vdwg.mxu0
  %3515 = vmatprep.subr.mxu0 0.0
  %v3516 = vand.u32 %v2908, 4294901760
  %3517 = vmatpush1.msra.mxu0 %v3516
  %3518 = vmatprep.subr.mxu0 0.0
  %v3519 = vand.u32 %v2909, 4294901760
  %3520 = vmatpush1.msra.mxu0 %v3519
  %3521 = vmatprep.subr.mxu0 0.0
  %v3522 = vand.u32 %v2910, 4294901760
  %3523 = vmatpush1.msra.mxu0 %v3522
  %3524 = vmatprep.subr.mxu0 0.0
  %v3525 = vand.u32 %v2911, 4294901760
  %3526 = vmatpush1.msra.mxu0 %v3525
  %3527 = vmatprep.subr.mxu0 0.0
  %v3528 = vand.u32 %v2912, 4294901760
  %3529 = vmatpush1.msra.mxu0 %v3528
  %3530 = vmatprep.subr.mxu0 0.0
  %v3531 = vand.u32 %v2913, 4294901760
  %3532 = vmatpush1.msra.mxu0 %v3531
  %3533 = vmatprep.subr.mxu0 0.0
  %v3534 = vand.u32 %v2914, 4294901760
  %3535 = vmatpush1.msra.mxu0 %v3534
  %3536 = vmatprep.subr.mxu0 0.0
  %v3537 = vand.u32 %v2915, 4294901760
  %3538 = vmatpush1.msra.mxu0 %v3537
  %3539 = vmatprep.subr.mxu0 0.0
  %v3540 = vand.u32 %v2916, 4294901760
  %3541 = vmatpush1.msra.mxu0 %v3540
  %3542 = vmatprep.subr.mxu0 0.0
  %v3543 = vand.u32 %v2917, 4294901760
  %3544 = vmatpush1.msra.mxu0 %v3543
  %3545 = vmatprep.subr.mxu0 0.0
  %v3546 = vand.u32 %v2918, 4294901760
  %3547 = vmatpush1.msra.mxu0 %v3546
  %3548 = vmatprep.subr.mxu0 0.0
  %v3549 = vand.u32 %v2919, 4294901760
  %3550 = vmatpush1.msra.mxu0 %v3549
  %3551 = vmatprep.subr.mxu0 0.0
  %v3552 = vand.u32 %v2920, 4294901760
  %3553 = vmatpush1.msra.mxu0 %v3552
  %3554 = vmatprep.subr.mxu0 0.0
  %v3555 = vand.u32 %v2921, 4294901760
  %3556 = vmatpush1.msra.mxu0 %v3555
  %3557 = vmatprep.subr.mxu0 0.0
  %v3558 = vand.u32 %v2922, 4294901760
  %3559 = vmatpush1.msra.mxu0 %v3558
  %3560 = vmatprep.subr.mxu0 0.0
  %v3561 = vand.u32 %v2923, 4294901760
  %3562 = vmatpush1.msra.mxu0 %v3561
  %3563 = vmatprep.subr.mxu0 0.0
  %3564 = vmatpush1.msra.mxu0 0.0
  %3565 = vmatprep.subr.mxu0 0.0
  %3566 = vmatpush1.msra.mxu0 0.0
  %3567 = vmatprep.subr.mxu0 0.0
  %3568 = vmatpush1.msra.mxu0 0.0
  %3569 = vmatprep.subr.mxu0 0.0
  %3570 = vmatpush1.msra.mxu0 0.0
  %3571 = vmatprep.subr.mxu0 0.0
  %3572 = vmatpush1.msra.mxu0 0.0
  %3573 = vmatprep.subr.mxu0 0.0
  %3574 = vmatpush1.msra.mxu0 0.0
  %3575 = vmatprep.subr.mxu0 0.0
  %3576 = vmatpush1.msra.mxu0 0.0
  %3577 = vmatprep.subr.mxu0 0.0
  %3578 = vmatpush1.msra.mxu0 0.0
  %3579 = vmatprep.subr.mxu0 0.0
  %3580 = vmatpush1.msra.mxu0 0.0
  %3581 = vmatprep.subr.mxu0 0.0
  %3582 = vmatpush1.msra.mxu0 0.0
  %3583 = vmatprep.subr.mxu0 0.0
  %3584 = vmatpush1.msra.mxu0 0.0
  %3585 = vmatprep.subr.mxu0 0.0
  %3586 = vmatpush1.msra.mxu0 0.0
  %3587 = vmatprep.subr.mxu0 0.0
  %3588 = vmatpush1.msra.mxu0 0.0
  %3589 = vmatprep.subr.mxu0 0.0
  %3590 = vmatpush1.msra.mxu0 0.0
  %3591 = vmatprep.subr.mxu0 0.0
  %3592 = vmatpush1.msra.mxu0 0.0
  %3593 = vmatprep.subr.mxu0 0.0
  %3594 = vmatpush1.msra.mxu0 0.0
  %3595 = vmatprep.mubr.f32.mxu0 0.0
  %v3596 = vand.u32 %v2877, 4294901760
  %3597 = vmatmul.mubr.f32.gmra.mrb[0].mxu0 %v3596
  %v3598 = vpop.f32.mrb[0].mxu0
  %v3599 = vadd.f32 %v3506, %v3598
  %v3600 = vpop.f32.mrb[0].mxu0
  %3601 = vmatprep.mubr.f32.mxu0 0.0
  %v3602 = vand.u32 %v2878, 4294901760
  %3603 = vmatmul.mubr.f32.gmra.mrb[0].mxu0 %v3602
  %v3604 = vpop.f32.mrb[0].mxu0
  %v3605 = vadd.f32 %v3512, %v3604
  %v3606 = vpop.f32.mrb[0].mxu0
  %3607 = vdwg.mxu0
  %3608 = vmatprep.subr.mxu0 0.0
  %v3609 = vand.u32 %v2891, 4294901760
  %3610 = vmatpush1.msra.mxu0 %v3609
  %3611 = vmatprep.subr.mxu0 0.0
  %v3612 = vand.u32 %v2892, 4294901760
  %3613 = vmatpush1.msra.mxu0 %v3612
  %3614 = vmatprep.subr.mxu0 0.0
  %v3615 = vand.u32 %v2893, 4294901760
  %3616 = vmatpush1.msra.mxu0 %v3615
  %3617 = vmatprep.subr.mxu0 0.0
  %v3618 = vand.u32 %v2894, 4294901760
  %3619 = vmatpush1.msra.mxu0 %v3618
  %3620 = vmatprep.subr.mxu0 0.0
  %v3621 = vand.u32 %v2895, 4294901760
  %3622 = vmatpush1.msra.mxu0 %v3621
  %3623 = vmatprep.subr.mxu0 0.0
  %v3624 = vand.u32 %v2896, 4294901760
  %3625 = vmatpush1.msra.mxu0 %v3624
  %3626 = vmatprep.subr.mxu0 0.0
  %v3627 = vand.u32 %v2897, 4294901760
  %3628 = vmatpush1.msra.mxu0 %v3627
  %3629 = vmatprep.subr.mxu0 0.0
  %v3630 = vand.u32 %v2898, 4294901760
  %3631 = vmatpush1.msra.mxu0 %v3630
  %3632 = vmatprep.subr.mxu0 0.0
  %v3633 = vand.u32 %v2899, 4294901760
  %3634 = vmatpush1.msra.mxu0 %v3633
  %3635 = vmatprep.subr.mxu0 0.0
  %v3636 = vand.u32 %v2900, 4294901760
  %3637 = vmatpush1.msra.mxu0 %v3636
  %3638 = vmatprep.subr.mxu0 0.0
  %v3639 = vand.u32 %v2901, 4294901760
  %3640 = vmatpush1.msra.mxu0 %v3639
  %3641 = vmatprep.subr.mxu0 0.0
  %v3642 = vand.u32 %v2902, 4294901760
  %3643 = vmatpush1.msra.mxu0 %v3642
  %3644 = vmatprep.subr.mxu0 0.0
  %v3645 = vand.u32 %v2903, 4294901760
  %3646 = vmatpush1.msra.mxu0 %v3645
  %3647 = vmatprep.subr.mxu0 0.0
  %v3648 = vand.u32 %v2904, 4294901760
  %3649 = vmatpush1.msra.mxu0 %v3648
  %3650 = vmatprep.subr.mxu0 0.0
  %v3651 = vand.u32 %v2905, 4294901760
  %3652 = vmatpush1.msra.mxu0 %v3651
  %3653 = vmatprep.subr.mxu0 0.0
  %v3654 = vand.u32 %v2906, 4294901760
  %3655 = vmatpush1.msra.mxu0 %v3654
  %3656 = vmatprep.subr.mxu0 0.0
  %3657 = vmatpush1.msra.mxu0 0.0
  %3658 = vmatprep.subr.mxu0 0.0
  %3659 = vmatpush1.msra.mxu0 0.0
  %3660 = vmatprep.subr.mxu0 0.0
  %3661 = vmatpush1.msra.mxu0 0.0
  %3662 = vmatprep.subr.mxu0 0.0
  %3663 = vmatpush1.msra.mxu0 0.0
  %3664 = vmatprep.subr.mxu0 0.0
  %3665 = vmatpush1.msra.mxu0 0.0
  %3666 = vmatprep.subr.mxu0 0.0
  %3667 = vmatpush1.msra.mxu0 0.0
  %3668 = vmatprep.subr.mxu0 0.0
  %3669 = vmatpush1.msra.mxu0 0.0
  %3670 = vmatprep.subr.mxu0 0.0
  %3671 = vmatpush1.msra.mxu0 0.0
  %3672 = vmatprep.subr.mxu0 0.0
  %3673 = vmatpush1.msra.mxu0 0.0
  %3674 = vmatprep.subr.mxu0 0.0
  %3675 = vmatpush1.msra.mxu0 0.0
  %3676 = vmatprep.subr.mxu0 0.0
  %3677 = vmatpush1.msra.mxu0 0.0
  %3678 = vmatprep.subr.mxu0 0.0
  %3679 = vmatpush1.msra.mxu0 0.0
  %3680 = vmatprep.subr.mxu0 0.0
  %3681 = vmatpush1.msra.mxu0 0.0
  %3682 = vmatprep.subr.mxu0 0.0
  %3683 = vmatpush1.msra.mxu0 0.0
  %3684 = vmatprep.subr.mxu0 0.0
  %3685 = vmatpush1.msra.mxu0 0.0
  %3686 = vmatprep.subr.mxu0 0.0
  %3687 = vmatpush1.msra.mxu0 0.0
  %3688 = vmatprep.mubr.f32.mxu0 0.0
  %v3689 = vand.u32 %v2883, 4294901760
  %v3690 = vsub.f32 %v2883, %v3689
  %v3691 = vand.u32 %v3690, 4294901760
  %v3692 = vsub.f32 %v3690, %v3691
  %v3693 = vand.u32 %v3692, 4294901760
  %3694 = vmatmul.mubr.f32.gmra.mrb[0].mxu0 %v3693
  %v3695 = vpop.f32.mrb[0].mxu0
  %v3696 = vadd.f32 %v3599, %v3695
  %v3697 = vpop.f32.mrb[0].mxu0
  %3698 = vmatprep.mubr.f32.mxu0 0.0
  %v3699 = vand.u32 %v2884, 4294901760
  %v3700 = vsub.f32 %v2884, %v3699
  %v3701 = vand.u32 %v3700, 4294901760
  %v3702 = vsub.f32 %v3700, %v3701
  %v3703 = vand.u32 %v3702, 4294901760
  %3704 = vmatmul.mubr.f32.gmra.mrb[0].mxu0 %v3703
  %v3705 = vpop.f32.mrb[0].mxu0
  %v3706 = vadd.f32 %v3605, %v3705
  %v3707 = vpop.f32.mrb[0].mxu0
  %3708 = vdwg.mxu0
  %3709 = vmatprep.subr.mxu0 0.0
  %v3710 = vand.u32 %v2891, 4294901760
  %v3711 = vsub.f32 %v2891, %v3710
  %v3712 = vand.u32 %v3711, 4294901760
  %v3713 = vsub.f32 %v3711, %v3712
  %v3714 = vand.u32 %v3713, 4294901760
  %3715 = vmatpush1.msra.mxu0 %v3714
  %3716 = vmatprep.subr.mxu0 0.0
  %v3717 = vand.u32 %v2892, 4294901760
  %v3718 = vsub.f32 %v2892, %v3717
  %v3719 = vand.u32 %v3718, 4294901760
  %v3720 = vsub.f32 %v3718, %v3719
  %v3721 = vand.u32 %v3720, 4294901760
  %3722 = vmatpush1.msra.mxu0 %v3721
  %3723 = vmatprep.subr.mxu0 0.0
  %v3724 = vand.u32 %v2893, 4294901760
  %v3725 = vsub.f32 %v2893, %v3724
  %v3726 = vand.u32 %v3725, 4294901760
  %v3727 = vsub.f32 %v3725, %v3726
  %v3728 = vand.u32 %v3727, 4294901760
  %3729 = vmatpush1.msra.mxu0 %v3728
  %3730 = vmatprep.subr.mxu0 0.0
  %v3731 = vand.u32 %v2894, 4294901760
  %v3732 = vsub.f32 %v2894, %v3731
  %v3733 = vand.u32 %v3732, 4294901760
  %v3734 = vsub.f32 %v3732, %v3733
  %v3735 = vand.u32 %v3734, 4294901760
  %3736 = vmatpush1.msra.mxu0 %v3735
  %3737 = vmatprep.subr.mxu0 0.0
  %v3738 = vand.u32 %v2895, 4294901760
  %v3739 = vsub.f32 %v2895, %v3738
  %v3740 = vand.u32 %v3739, 4294901760
  %v3741 = vsub.f32 %v3739, %v3740
  %v3742 = vand.u32 %v3741, 4294901760
  %3743 = vmatpush1.msra.mxu0 %v3742
  %3744 = vmatprep.subr.mxu0 0.0
  %v3745 = vand.u32 %v2896, 4294901760
  %v3746 = vsub.f32 %v2896, %v3745
  %v3747 = vand.u32 %v3746, 4294901760
  %v3748 = vsub.f32 %v3746, %v3747
  %v3749 = vand.u32 %v3748, 4294901760
  %3750 = vmatpush1.msra.mxu0 %v3749
  %3751 = vmatprep.subr.mxu0 0.0
  %v3752 = vand.u32 %v2897, 4294901760
  %v3753 = vsub.f32 %v2897, %v3752
  %v3754 = vand.u32 %v3753, 4294901760
  %v3755 = vsub.f32 %v3753, %v3754
  %v3756 = vand.u32 %v3755, 4294901760
  %3757 = vmatpush1.msra.mxu0 %v3756
  %3758 = vmatprep.subr.mxu0 0.0
  %v3759 = vand.u32 %v2898, 4294901760
  %v3760 = vsub.f32 %v2898, %v3759
  %v3761 = vand.u32 %v3760, 4294901760
  %v3762 = vsub.f32 %v3760, %v3761
  %v3763 = vand.u32 %v3762, 4294901760
  %3764 = vmatpush1.msra.mxu0 %v3763
  %3765 = vmatprep.subr.mxu0 0.0
  %v3766 = vand.u32 %v2899, 4294901760
  %v3767 = vsub.f32 %v2899, %v3766
  %v3768 = vand.u32 %v3767, 4294901760
  %v3769 = vsub.f32 %v3767, %v3768
  %v3770 = vand.u32 %v3769, 4294901760
  %3771 = vmatpush1.msra.mxu0 %v3770
  %3772 = vmatprep.subr.mxu0 0.0
  %v3773 = vand.u32 %v2900, 4294901760
  %v3774 = vsub.f32 %v2900, %v3773
  %v3775 = vand.u32 %v3774, 4294901760
  %v3776 = vsub.f32 %v3774, %v3775
  %v3777 = vand.u32 %v3776, 4294901760
  %3778 = vmatpush1.msra.mxu0 %v3777
  %3779 = vmatprep.subr.mxu0 0.0
  %v3780 = vand.u32 %v2901, 4294901760
  %v3781 = vsub.f32 %v2901, %v3780
  %v3782 = vand.u32 %v3781, 4294901760
  %v3783 = vsub.f32 %v3781, %v3782
  %v3784 = vand.u32 %v3783, 4294901760
  %3785 = vmatpush1.msra.mxu0 %v3784
  %3786 = vmatprep.subr.mxu0 0.0
  %v3787 = vand.u32 %v2902, 4294901760
  %v3788 = vsub.f32 %v2902, %v3787
  %v3789 = vand.u32 %v3788, 4294901760
  %v3790 = vsub.f32 %v3788, %v3789
  %v3791 = vand.u32 %v3790, 4294901760
  %3792 = vmatpush1.msra.mxu0 %v3791
  %3793 = vmatprep.subr.mxu0 0.0
  %v3794 = vand.u32 %v2903, 4294901760
  %v3795 = vsub.f32 %v2903, %v3794
  %v3796 = vand.u32 %v3795, 4294901760
  %v3797 = vsub.f32 %v3795, %v3796
  %v3798 = vand.u32 %v3797, 4294901760
  %3799 = vmatpush1.msra.mxu0 %v3798
  %3800 = vmatprep.subr.mxu0 0.0
  %v3801 = vand.u32 %v2904, 4294901760
  %v3802 = vsub.f32 %v2904, %v3801
  %v3803 = vand.u32 %v3802, 4294901760
  %v3804 = vsub.f32 %v3802, %v3803
  %v3805 = vand.u32 %v3804, 4294901760
  %3806 = vmatpush1.msra.mxu0 %v3805
  %3807 = vmatprep.subr.mxu0 0.0
  %v3808 = vand.u32 %v2905, 4294901760
  %v3809 = vsub.f32 %v2905, %v3808
  %v3810 = vand.u32 %v3809, 4294901760
  %v3811 = vsub.f32 %v3809, %v3810
  %v3812 = vand.u32 %v3811, 4294901760
  %3813 = vmatpush1.msra.mxu0 %v3812
  %3814 = vmatprep.subr.mxu0 0.0
  %v3815 = vand.u32 %v2906, 4294901760
  %v3816 = vsub.f32 %v2906, %v3815
  %v3817 = vand.u32 %v3816, 4294901760
  %v3818 = vsub.f32 %v3816, %v3817
  %v3819 = vand.u32 %v3818, 4294901760
  %3820 = vmatpush1.msra.mxu0 %v3819
  %3821 = vmatprep.subr.mxu0 0.0
  %3822 = vmatpush1.msra.mxu0 0.0
  %3823 = vmatprep.subr.mxu0 0.0
  %3824 = vmatpush1.msra.mxu0 0.0
  %3825 = vmatprep.subr.mxu0 0.0
  %3826 = vmatpush1.msra.mxu0 0.0
  %3827 = vmatprep.subr.mxu0 0.0
  %3828 = vmatpush1.msra.mxu0 0.0
  %3829 = vmatprep.subr.mxu0 0.0
  %3830 = vmatpush1.msra.mxu0 0.0
  %3831 = vmatprep.subr.mxu0 0.0
  %3832 = vmatpush1.msra.mxu0 0.0
  %3833 = vmatprep.subr.mxu0 0.0
  %3834 = vmatpush1.msra.mxu0 0.0
  %3835 = vmatprep.subr.mxu0 0.0
  %3836 = vmatpush1.msra.mxu0 0.0
  %3837 = vmatprep.subr.mxu0 0.0
  %3838 = vmatpush1.msra.mxu0 0.0
  %3839 = vmatprep.subr.mxu0 0.0
  %3840 = vmatpush1.msra.mxu0 0.0
  %3841 = vmatprep.subr.mxu0 0.0
  %3842 = vmatpush1.msra.mxu0 0.0
  %3843 = vmatprep.subr.mxu0 0.0
  %3844 = vmatpush1.msra.mxu0 0.0
  %3845 = vmatprep.subr.mxu0 0.0
  %3846 = vmatpush1.msra.mxu0 0.0
  %3847 = vmatprep.subr.mxu0 0.0
  %3848 = vmatpush1.msra.mxu0 0.0
  %3849 = vmatprep.subr.mxu0 0.0
  %3850 = vmatpush1.msra.mxu0 0.0
  %3851 = vmatprep.subr.mxu0 0.0
  %3852 = vmatpush1.msra.mxu0 0.0
  %3853 = vmatprep.mubr.f32.mxu0 0.0
  %v3854 = vand.u32 %v2883, 4294901760
  %3855 = vmatmul.mubr.f32.gmra.mrb[0].mxu0 %v3854
  %v3856 = vpop.f32.mrb[0].mxu0
  %v3857 = vadd.f32 %v3696, %v3856
  %v3858 = vpop.f32.mrb[0].mxu0
  %3859 = vmatprep.mubr.f32.mxu0 0.0
  %v3860 = vand.u32 %v2884, 4294901760
  %3861 = vmatmul.mubr.f32.gmra.mrb[0].mxu0 %v3860
  %v3862 = vpop.f32.mrb[0].mxu0
  %v3863 = vadd.f32 %v3706, %v3862
  %v3864 = vpop.f32.mrb[0].mxu0
  %3865 = vdwg.mxu0
  %3866 = vmatprep.subr.mxu0 0.0
  %v3867 = vand.u32 %v2891, 4294901760
  %v3868 = vsub.f32 %v2891, %v3867
  %3869 = vmatpush1.msra.mxu0 %v3868
  %3870 = vmatprep.subr.mxu0 0.0
  %v3871 = vand.u32 %v2892, 4294901760
  %v3872 = vsub.f32 %v2892, %v3871
  %3873 = vmatpush1.msra.mxu0 %v3872
  %3874 = vmatprep.subr.mxu0 0.0
  %v3875 = vand.u32 %v2893, 4294901760
  %v3876 = vsub.f32 %v2893, %v3875
  %3877 = vmatpush1.msra.mxu0 %v3876
  %3878 = vmatprep.subr.mxu0 0.0
  %v3879 = vand.u32 %v2894, 4294901760
  %v3880 = vsub.f32 %v2894, %v3879
  %3881 = vmatpush1.msra.mxu0 %v3880
  %3882 = vmatprep.subr.mxu0 0.0
  %v3883 = vand.u32 %v2895, 4294901760
  %v3884 = vsub.f32 %v2895, %v3883
  %3885 = vmatpush1.msra.mxu0 %v3884
  %3886 = vmatprep.subr.mxu0 0.0
  %v3887 = vand.u32 %v2896, 4294901760
  %v3888 = vsub.f32 %v2896, %v3887
  %3889 = vmatpush1.msra.mxu0 %v3888
  %3890 = vmatprep.subr.mxu0 0.0
  %v3891 = vand.u32 %v2897, 4294901760
  %v3892 = vsub.f32 %v2897, %v3891
  %3893 = vmatpush1.msra.mxu0 %v3892
  %3894 = vmatprep.subr.mxu0 0.0
  %v3895 = vand.u32 %v2898, 4294901760
  %v3896 = vsub.f32 %v2898, %v3895
  %3897 = vmatpush1.msra.mxu0 %v3896
  %3898 = vmatprep.subr.mxu0 0.0
  %v3899 = vand.u32 %v2899, 4294901760
  %v3900 = vsub.f32 %v2899, %v3899
  %3901 = vmatpush1.msra.mxu0 %v3900
  %3902 = vmatprep.subr.mxu0 0.0
  %v3903 = vand.u32 %v2900, 4294901760
  %v3904 = vsub.f32 %v2900, %v3903
  %3905 = vmatpush1.msra.mxu0 %v3904
  %3906 = vmatprep.subr.mxu0 0.0
  %v3907 = vand.u32 %v2901, 4294901760
  %v3908 = vsub.f32 %v2901, %v3907
  %3909 = vmatpush1.msra.mxu0 %v3908
  %3910 = vmatprep.subr.mxu0 0.0
  %v3911 = vand.u32 %v2902, 4294901760
  %v3912 = vsub.f32 %v2902, %v3911
  %3913 = vmatpush1.msra.mxu0 %v3912
  %3914 = vmatprep.subr.mxu0 0.0
  %v3915 = vand.u32 %v2903, 4294901760
  %v3916 = vsub.f32 %v2903, %v3915
  %3917 = vmatpush1.msra.mxu0 %v3916
  %3918 = vmatprep.subr.mxu0 0.0
  %v3919 = vand.u32 %v2904, 4294901760
  %v3920 = vsub.f32 %v2904, %v3919
  %3921 = vmatpush1.msra.mxu0 %v3920
  %3922 = vmatprep.subr.mxu0 0.0
  %v3923 = vand.u32 %v2905, 4294901760
  %v3924 = vsub.f32 %v2905, %v3923
  %3925 = vmatpush1.msra.mxu0 %v3924
  %3926 = vmatprep.subr.mxu0 0.0
  %v3927 = vand.u32 %v2906, 4294901760
  %v3928 = vsub.f32 %v2906, %v3927
  %3929 = vmatpush1.msra.mxu0 %v3928
  %3930 = vmatprep.subr.mxu0 0.0
  %3931 = vmatpush1.msra.mxu0 0.0
  %3932 = vmatprep.subr.mxu0 0.0
  %3933 = vmatpush1.msra.mxu0 0.0
  %3934 = vmatprep.subr.mxu0 0.0
  %3935 = vmatpush1.msra.mxu0 0.0
  %3936 = vmatprep.subr.mxu0 0.0
  %3937 = vmatpush1.msra.mxu0 0.0
  %3938 = vmatprep.subr.mxu0 0.0
  %3939 = vmatpush1.msra.mxu0 0.0
  %3940 = vmatprep.subr.mxu0 0.0
  %3941 = vmatpush1.msra.mxu0 0.0
  %3942 = vmatprep.subr.mxu0 0.0
  %3943 = vmatpush1.msra.mxu0 0.0
  %3944 = vmatprep.subr.mxu0 0.0
  %3945 = vmatpush1.msra.mxu0 0.0
  %3946 = vmatprep.subr.mxu0 0.0
  %3947 = vmatpush1.msra.mxu0 0.0
  %3948 = vmatprep.subr.mxu0 0.0
  %3949 = vmatpush1.msra.mxu0 0.0
  %3950 = vmatprep.subr.mxu0 0.0
  %3951 = vmatpush1.msra.mxu0 0.0
  %3952 = vmatprep.subr.mxu0 0.0
  %3953 = vmatpush1.msra.mxu0 0.0
  %3954 = vmatprep.subr.mxu0 0.0
  %3955 = vmatpush1.msra.mxu0 0.0
  %3956 = vmatprep.subr.mxu0 0.0
  %3957 = vmatpush1.msra.mxu0 0.0
  %3958 = vmatprep.subr.mxu0 0.0
  %3959 = vmatpush1.msra.mxu0 0.0
  %3960 = vmatprep.subr.mxu0 0.0
  %3961 = vmatpush1.msra.mxu0 0.0
  %3962 = vmatprep.mubr.f32.mxu0 0.0
  %v3963 = vand.u32 %v2883, 4294901760
  %v3964 = vsub.f32 %v2883, %v3963
  %3965 = vmatmul.mubr.f32.gmra.mrb[0].mxu0 %v3964
  %v3966 = vpop.f32.mrb[0].mxu0
  %v3967 = vadd.f32 %v3857, %v3966
  %v3968 = vpop.f32.mrb[0].mxu0
  %3969 = vmatprep.mubr.f32.mxu0 0.0
  %v3970 = vand.u32 %v2884, 4294901760
  %v3971 = vsub.f32 %v2884, %v3970
  %3972 = vmatmul.mubr.f32.gmra.mrb[0].mxu0 %v3971
  %v3973 = vpop.f32.mrb[0].mxu0
  %v3974 = vadd.f32 %v3863, %v3973
  %v3975 = vpop.f32.mrb[0].mxu0
  %3976 = vdwg.mxu0
  %3977 = vmatprep.subr.mxu0 0.0
  %v3978 = vand.u32 %v2891, 4294901760
  %3979 = vmatpush1.msra.mxu0 %v3978
  %3980 = vmatprep.subr.mxu0 0.0
  %v3981 = vand.u32 %v2892, 4294901760
  %3982 = vmatpush1.msra.mxu0 %v3981
  %3983 = vmatprep.subr.mxu0 0.0
  %v3984 = vand.u32 %v2893, 4294901760
  %3985 = vmatpush1.msra.mxu0 %v3984
  %3986 = vmatprep.subr.mxu0 0.0
  %v3987 = vand.u32 %v2894, 4294901760
  %3988 = vmatpush1.msra.mxu0 %v3987
  %3989 = vmatprep.subr.mxu0 0.0
  %v3990 = vand.u32 %v2895, 4294901760
  %3991 = vmatpush1.msra.mxu0 %v3990
  %3992 = vmatprep.subr.mxu0 0.0
  %v3993 = vand.u32 %v2896, 4294901760
  %3994 = vmatpush1.msra.mxu0 %v3993
  %3995 = vmatprep.subr.mxu0 0.0
  %v3996 = vand.u32 %v2897, 4294901760
  %3997 = vmatpush1.msra.mxu0 %v3996
  %3998 = vmatprep.subr.mxu0 0.0
  %v3999 = vand.u32 %v2898, 4294901760
  %4000 = vmatpush1.msra.mxu0 %v3999
  %4001 = vmatprep.subr.mxu0 0.0
  %v4002 = vand.u32 %v2899, 4294901760
  %4003 = vmatpush1.msra.mxu0 %v4002
  %4004 = vmatprep.subr.mxu0 0.0
  %v4005 = vand.u32 %v2900, 4294901760
  %4006 = vmatpush1.msra.mxu0 %v4005
  %4007 = vmatprep.subr.mxu0 0.0
  %v4008 = vand.u32 %v2901, 4294901760
  %4009 = vmatpush1.msra.mxu0 %v4008
  %4010 = vmatprep.subr.mxu0 0.0
  %v4011 = vand.u32 %v2902, 4294901760
  %4012 = vmatpush1.msra.mxu0 %v4011
  %4013 = vmatprep.subr.mxu0 0.0
  %v4014 = vand.u32 %v2903, 4294901760
  %4015 = vmatpush1.msra.mxu0 %v4014
  %4016 = vmatprep.subr.mxu0 0.0
  %v4017 = vand.u32 %v2904, 4294901760
  %4018 = vmatpush1.msra.mxu0 %v4017
  %4019 = vmatprep.subr.mxu0 0.0
  %v4020 = vand.u32 %v2905, 4294901760
  %4021 = vmatpush1.msra.mxu0 %v4020
  %4022 = vmatprep.subr.mxu0 0.0
  %v4023 = vand.u32 %v2906, 4294901760
  %4024 = vmatpush1.msra.mxu0 %v4023
  %4025 = vmatprep.subr.mxu0 0.0
  %4026 = vmatpush1.msra.mxu0 0.0
  %4027 = vmatprep.subr.mxu0 0.0
  %4028 = vmatpush1.msra.mxu0 0.0
  %4029 = vmatprep.subr.mxu0 0.0
  %4030 = vmatpush1.msra.mxu0 0.0
  %4031 = vmatprep.subr.mxu0 0.0
  %4032 = vmatpush1.msra.mxu0 0.0
  %4033 = vmatprep.subr.mxu0 0.0
  %4034 = vmatpush1.msra.mxu0 0.0
  %4035 = vmatprep.subr.mxu0 0.0
  %4036 = vmatpush1.msra.mxu0 0.0
  %4037 = vmatprep.subr.mxu0 0.0
  %4038 = vmatpush1.msra.mxu0 0.0
  %4039 = vmatprep.subr.mxu0 0.0
  %4040 = vmatpush1.msra.mxu0 0.0
  %4041 = vmatprep.subr.mxu0 0.0
  %4042 = vmatpush1.msra.mxu0 0.0
  %4043 = vmatprep.subr.mxu0 0.0
  %4044 = vmatpush1.msra.mxu0 0.0
  %4045 = vmatprep.subr.mxu0 0.0
  %4046 = vmatpush1.msra.mxu0 0.0
  %4047 = vmatprep.subr.mxu0 0.0
  %4048 = vmatpush1.msra.mxu0 0.0
  %4049 = vmatprep.subr.mxu0 0.0
  %4050 = vmatpush1.msra.mxu0 0.0
  %4051 = vmatprep.subr.mxu0 0.0
  %4052 = vmatpush1.msra.mxu0 0.0
  %4053 = vmatprep.subr.mxu0 0.0
  %4054 = vmatpush1.msra.mxu0 0.0
  %4055 = vmatprep.subr.mxu0 0.0
  %4056 = vmatpush1.msra.mxu0 0.0
  %4057 = vmatprep.mubr.f32.mxu0 0.0
  %v4058 = vand.u32 %v2883, 4294901760
  %v4059 = vsub.f32 %v2883, %v4058
  %v4060 = vand.u32 %v4059, 4294901760
  %4061 = vmatmul.mubr.f32.gmra.mrb[0].mxu0 %v4060
  %v4062 = vpop.f32.mrb[0].mxu0
  %v4063 = vadd.f32 %v3967, %v4062
  %v4064 = vpop.f32.mrb[0].mxu0
  %4065 = vmatprep.mubr.f32.mxu0 0.0
  %v4066 = vand.u32 %v2884, 4294901760
  %v4067 = vsub.f32 %v2884, %v4066
  %v4068 = vand.u32 %v4067, 4294901760
  %4069 = vmatmul.mubr.f32.gmra.mrb[0].mxu0 %v4068
  %v4070 = vpop.f32.mrb[0].mxu0
  %v4071 = vadd.f32 %v3974, %v4070
  %v4072 = vpop.f32.mrb[0].mxu0
  %4073 = vdwg.mxu0
  %4074 = vmatprep.subr.mxu0 0.0
  %v4075 = vand.u32 %v2891, 4294901760
  %v4076 = vsub.f32 %v2891, %v4075
  %v4077 = vand.u32 %v4076, 4294901760
  %4078 = vmatpush1.msra.mxu0 %v4077
  %4079 = vmatprep.subr.mxu0 0.0
  %v4080 = vand.u32 %v2892, 4294901760
  %v4081 = vsub.f32 %v2892, %v4080
  %v4082 = vand.u32 %v4081, 4294901760
  %4083 = vmatpush1.msra.mxu0 %v4082
  %4084 = vmatprep.subr.mxu0 0.0
  %v4085 = vand.u32 %v2893, 4294901760
  %v4086 = vsub.f32 %v2893, %v4085
  %v4087 = vand.u32 %v4086, 4294901760
  %4088 = vmatpush1.msra.mxu0 %v4087
  %4089 = vmatprep.subr.mxu0 0.0
  %v4090 = vand.u32 %v2894, 4294901760
  %v4091 = vsub.f32 %v2894, %v4090
  %v4092 = vand.u32 %v4091, 4294901760
  %4093 = vmatpush1.msra.mxu0 %v4092
  %4094 = vmatprep.subr.mxu0 0.0
  %v4095 = vand.u32 %v2895, 4294901760
  %v4096 = vsub.f32 %v2895, %v4095
  %v4097 = vand.u32 %v4096, 4294901760
  %4098 = vmatpush1.msra.mxu0 %v4097
  %4099 = vmatprep.subr.mxu0 0.0
  %v4100 = vand.u32 %v2896, 4294901760
  %v4101 = vsub.f32 %v2896, %v4100
  %v4102 = vand.u32 %v4101, 4294901760
  %4103 = vmatpush1.msra.mxu0 %v4102
  %4104 = vmatprep.subr.mxu0 0.0
  %v4105 = vand.u32 %v2897, 4294901760
  %v4106 = vsub.f32 %v2897, %v4105
  %v4107 = vand.u32 %v4106, 4294901760
  %4108 = vmatpush1.msra.mxu0 %v4107
  %4109 = vmatprep.subr.mxu0 0.0
  %v4110 = vand.u32 %v2898, 4294901760
  %v4111 = vsub.f32 %v2898, %v4110
  %v4112 = vand.u32 %v4111, 4294901760
  %4113 = vmatpush1.msra.mxu0 %v4112
  %4114 = vmatprep.subr.mxu0 0.0
  %v4115 = vand.u32 %v2899, 4294901760
  %v4116 = vsub.f32 %v2899, %v4115
  %v4117 = vand.u32 %v4116, 4294901760
  %4118 = vmatpush1.msra.mxu0 %v4117
  %4119 = vmatprep.subr.mxu0 0.0
  %v4120 = vand.u32 %v2900, 4294901760
  %v4121 = vsub.f32 %v2900, %v4120
  %v4122 = vand.u32 %v4121, 4294901760
  %4123 = vmatpush1.msra.mxu0 %v4122
  %4124 = vmatprep.subr.mxu0 0.0
  %v4125 = vand.u32 %v2901, 4294901760
  %v4126 = vsub.f32 %v2901, %v4125
  %v4127 = vand.u32 %v4126, 4294901760
  %4128 = vmatpush1.msra.mxu0 %v4127
  %4129 = vmatprep.subr.mxu0 0.0
  %v4130 = vand.u32 %v2902, 4294901760
  %v4131 = vsub.f32 %v2902, %v4130
  %v4132 = vand.u32 %v4131, 4294901760
  %4133 = vmatpush1.msra.mxu0 %v4132
  %4134 = vmatprep.subr.mxu0 0.0
  %v4135 = vand.u32 %v2903, 4294901760
  %v4136 = vsub.f32 %v2903, %v4135
  %v4137 = vand.u32 %v4136, 4294901760
  %4138 = vmatpush1.msra.mxu0 %v4137
  %4139 = vmatprep.subr.mxu0 0.0
  %v4140 = vand.u32 %v2904, 4294901760
  %v4141 = vsub.f32 %v2904, %v4140
  %v4142 = vand.u32 %v4141, 4294901760
  %4143 = vmatpush1.msra.mxu0 %v4142
  %4144 = vmatprep.subr.mxu0 0.0
  %v4145 = vand.u32 %v2905, 4294901760
  %v4146 = vsub.f32 %v2905, %v4145
  %v4147 = vand.u32 %v4146, 4294901760
  %4148 = vmatpush1.msra.mxu0 %v4147
  %4149 = vmatprep.subr.mxu0 0.0
  %v4150 = vand.u32 %v2906, 4294901760
  %v4151 = vsub.f32 %v2906, %v4150
  %v4152 = vand.u32 %v4151, 4294901760
  %4153 = vmatpush1.msra.mxu0 %v4152
  %4154 = vmatprep.subr.mxu0 0.0
  %4155 = vmatpush1.msra.mxu0 0.0
  %4156 = vmatprep.subr.mxu0 0.0
  %4157 = vmatpush1.msra.mxu0 0.0
  %4158 = vmatprep.subr.mxu0 0.0
  %4159 = vmatpush1.msra.mxu0 0.0
  %4160 = vmatprep.subr.mxu0 0.0
  %4161 = vmatpush1.msra.mxu0 0.0
  %4162 = vmatprep.subr.mxu0 0.0
  %4163 = vmatpush1.msra.mxu0 0.0
  %4164 = vmatprep.subr.mxu0 0.0
  %4165 = vmatpush1.msra.mxu0 0.0
  %4166 = vmatprep.subr.mxu0 0.0
  %4167 = vmatpush1.msra.mxu0 0.0
  %4168 = vmatprep.subr.mxu0 0.0
  %4169 = vmatpush1.msra.mxu0 0.0
  %4170 = vmatprep.subr.mxu0 0.0
  %4171 = vmatpush1.msra.mxu0 0.0
  %4172 = vmatprep.subr.mxu0 0.0
  %4173 = vmatpush1.msra.mxu0 0.0
  %4174 = vmatprep.subr.mxu0 0.0
  %4175 = vmatpush1.msra.mxu0 0.0
  %4176 = vmatprep.subr.mxu0 0.0
  %4177 = vmatpush1.msra.mxu0 0.0
  %4178 = vmatprep.subr.mxu0 0.0
  %4179 = vmatpush1.msra.mxu0 0.0
  %4180 = vmatprep.subr.mxu0 0.0
  %4181 = vmatpush1.msra.mxu0 0.0
  %4182 = vmatprep.subr.mxu0 0.0
  %4183 = vmatpush1.msra.mxu0 0.0
  %4184 = vmatprep.subr.mxu0 0.0
  %4185 = vmatpush1.msra.mxu0 0.0
  %4186 = vmatprep.mubr.f32.mxu0 0.0
  %v4187 = vand.u32 %v2883, 4294901760
  %4188 = vmatmul.mubr.f32.gmra.mrb[0].mxu0 %v4187
  %v4189 = vpop.f32.mrb[0].mxu0
  %v4190 = vadd.f32 %v4063, %v4189
  %v4191 = vpop.f32.mrb[0].mxu0
  %4192 = vmatprep.mubr.f32.mxu0 0.0
  %v4193 = vand.u32 %v2884, 4294901760
  %4194 = vmatmul.mubr.f32.gmra.mrb[0].mxu0 %v4193
  %v4195 = vpop.f32.mrb[0].mxu0
  %v4196 = vadd.f32 %v4071, %v4195
  %v4197 = vpop.f32.mrb[0].mxu0
  %4198 = vdwg.mxu0
  %4199 = vmatprep.subr.mxu0 0.0
  %v4200 = vand.u32 %v2891, 4294901760
  %4201 = vmatpush1.msra.mxu0 %v4200
  %4202 = vmatprep.subr.mxu0 0.0
  %v4203 = vand.u32 %v2892, 4294901760
  %4204 = vmatpush1.msra.mxu0 %v4203
  %4205 = vmatprep.subr.mxu0 0.0
  %v4206 = vand.u32 %v2893, 4294901760
  %4207 = vmatpush1.msra.mxu0 %v4206
  %4208 = vmatprep.subr.mxu0 0.0
  %v4209 = vand.u32 %v2894, 4294901760
  %4210 = vmatpush1.msra.mxu0 %v4209
  %4211 = vmatprep.subr.mxu0 0.0
  %v4212 = vand.u32 %v2895, 4294901760
  %4213 = vmatpush1.msra.mxu0 %v4212
  %4214 = vmatprep.subr.mxu0 0.0
  %v4215 = vand.u32 %v2896, 4294901760
  %4216 = vmatpush1.msra.mxu0 %v4215
  %4217 = vmatprep.subr.mxu0 0.0
  %v4218 = vand.u32 %v2897, 4294901760
  %4219 = vmatpush1.msra.mxu0 %v4218
  %4220 = vmatprep.subr.mxu0 0.0
  %v4221 = vand.u32 %v2898, 4294901760
  %4222 = vmatpush1.msra.mxu0 %v4221
  %4223 = vmatprep.subr.mxu0 0.0
  %v4224 = vand.u32 %v2899, 4294901760
  %4225 = vmatpush1.msra.mxu0 %v4224
  %4226 = vmatprep.subr.mxu0 0.0
  %v4227 = vand.u32 %v2900, 4294901760
  %4228 = vmatpush1.msra.mxu0 %v4227
  %4229 = vmatprep.subr.mxu0 0.0
  %v4230 = vand.u32 %v2901, 4294901760
  %4231 = vmatpush1.msra.mxu0 %v4230
  %4232 = vmatprep.subr.mxu0 0.0
  %v4233 = vand.u32 %v2902, 4294901760
  %4234 = vmatpush1.msra.mxu0 %v4233
  %4235 = vmatprep.subr.mxu0 0.0
  %v4236 = vand.u32 %v2903, 4294901760
  %4237 = vmatpush1.msra.mxu0 %v4236
  %4238 = vmatprep.subr.mxu0 0.0
  %v4239 = vand.u32 %v2904, 4294901760
  %4240 = vmatpush1.msra.mxu0 %v4239
  %4241 = vmatprep.subr.mxu0 0.0
  %v4242 = vand.u32 %v2905, 4294901760
  %4243 = vmatpush1.msra.mxu0 %v4242
  %4244 = vmatprep.subr.mxu0 0.0
  %v4245 = vand.u32 %v2906, 4294901760
  %4246 = vmatpush1.msra.mxu0 %v4245
  %4247 = vmatprep.subr.mxu0 0.0
  %4248 = vmatpush1.msra.mxu0 0.0
  %4249 = vmatprep.subr.mxu0 0.0
  %4250 = vmatpush1.msra.mxu0 0.0
  %4251 = vmatprep.subr.mxu0 0.0
  %4252 = vmatpush1.msra.mxu0 0.0
  %4253 = vmatprep.subr.mxu0 0.0
  %4254 = vmatpush1.msra.mxu0 0.0
  %4255 = vmatprep.subr.mxu0 0.0
  %4256 = vmatpush1.msra.mxu0 0.0
  %4257 = vmatprep.subr.mxu0 0.0
  %4258 = vmatpush1.msra.mxu0 0.0
  %4259 = vmatprep.subr.mxu0 0.0
  %4260 = vmatpush1.msra.mxu0 0.0
  %4261 = vmatprep.subr.mxu0 0.0
  %4262 = vmatpush1.msra.mxu0 0.0
  %4263 = vmatprep.subr.mxu0 0.0
  %4264 = vmatpush1.msra.mxu0 0.0
  %4265 = vmatprep.subr.mxu0 0.0
  %4266 = vmatpush1.msra.mxu0 0.0
  %4267 = vmatprep.subr.mxu0 0.0
  %4268 = vmatpush1.msra.mxu0 0.0
  %4269 = vmatprep.subr.mxu0 0.0
  %4270 = vmatpush1.msra.mxu0 0.0
  %4271 = vmatprep.subr.mxu0 0.0
  %4272 = vmatpush1.msra.mxu0 0.0
  %4273 = vmatprep.subr.mxu0 0.0
  %4274 = vmatpush1.msra.mxu0 0.0
  %4275 = vmatprep.subr.mxu0 0.0
  %4276 = vmatpush1.msra.mxu0 0.0
  %4277 = vmatprep.subr.mxu0 0.0
  %4278 = vmatpush1.msra.mxu0 0.0
  %4279 = vmatprep.mubr.f32.mxu0 0.0
  %v4280 = vand.u32 %v2883, 4294901760
  %4281 = vmatmul.mubr.f32.gmra.mrb[0].mxu0 %v4280
  %v4282 = vpop.f32.mrb[0].mxu0
  %v4283 = vadd.f32 %v4190, %v4282
  %v4284 = vpop.f32.mrb[0].mxu0
  %4285 = vmatprep.mubr.f32.mxu0 0.0
  %v4286 = vand.u32 %v2884, 4294901760
  %4287 = vmatmul.mubr.f32.gmra.mrb[0].mxu0 %v4286
  %v4288 = vpop.f32.mrb[0].mxu0
  %v4289 = vadd.f32 %v4196, %v4288
  %v4290 = vpop.f32.mrb[0].mxu0
  %4291 = vdwg.mxu0
  %s4292 = scalar_lea.vmem %s2, 256
  %v4293 = vld [vmem:[%s4292] sm:$0xff]
  %v4294 = vld [vmem:[%s4292 + $0x8] sm:$0xff]
  %v4295 = vld [vmem:[%s4292 + $0x10] sm:$0xff]
  %v4296 = vld [vmem:[%s4292 + $0x18] sm:$0xff]
  %v4297 = vld [vmem:[%s4292 + $0x20] sm:$0xff]
  %v4298 = vld [vmem:[%s4292 + $0x28] sm:$0xff]
  %v4299 = vld [vmem:[%s4292 + $0x30] sm:$0xff]
  %v4300 = vld [vmem:[%s4292 + $0x38] sm:$0xff]
  %v4301 = vld [vmem:[%s4292 + $0x40] sm:$0xff]
  %v4302 = vld [vmem:[%s4292 + $0x48] sm:$0xff]
  %v4303 = vld [vmem:[%s4292 + $0x50] sm:$0xff]
  %v4304 = vld [vmem:[%s4292 + $0x58] sm:$0xff]
  %v4305 = vld [vmem:[%s4292 + $0x60] sm:$0xff]
  %v4306 = vld [vmem:[%s4292 + $0x68] sm:$0xff]
  %v4307 = vld [vmem:[%s4292 + $0x70] sm:$0xff]
  %v4308 = vld [vmem:[%s4292 + $0x78] sm:$0xff]
  %4309 = vmatprep.subr.mxu0 0.0
  %v4310 = vand.u32 %v4293, 4294901760
  %4311 = vmatpush1.msra.mxu0 %v4310
  %4312 = vmatprep.subr.mxu0 0.0
  %v4313 = vand.u32 %v4294, 4294901760
  %4314 = vmatpush1.msra.mxu0 %v4313
  %4315 = vmatprep.subr.mxu0 0.0
  %v4316 = vand.u32 %v4295, 4294901760
  %4317 = vmatpush1.msra.mxu0 %v4316
  %4318 = vmatprep.subr.mxu0 0.0
  %v4319 = vand.u32 %v4296, 4294901760
  %4320 = vmatpush1.msra.mxu0 %v4319
  %4321 = vmatprep.subr.mxu0 0.0
  %v4322 = vand.u32 %v4297, 4294901760
  %4323 = vmatpush1.msra.mxu0 %v4322
  %4324 = vmatprep.subr.mxu0 0.0
  %v4325 = vand.u32 %v4298, 4294901760
  %4326 = vmatpush1.msra.mxu0 %v4325
  %4327 = vmatprep.subr.mxu0 0.0
  %v4328 = vand.u32 %v4299, 4294901760
  %4329 = vmatpush1.msra.mxu0 %v4328
  %4330 = vmatprep.subr.mxu0 0.0
  %v4331 = vand.u32 %v4300, 4294901760
  %4332 = vmatpush1.msra.mxu0 %v4331
  %4333 = vmatprep.subr.mxu0 0.0
  %v4334 = vand.u32 %v4301, 4294901760
  %4335 = vmatpush1.msra.mxu0 %v4334
  %4336 = vmatprep.subr.mxu0 0.0
  %v4337 = vand.u32 %v4302, 4294901760
  %4338 = vmatpush1.msra.mxu0 %v4337
  %4339 = vmatprep.subr.mxu0 0.0
  %v4340 = vand.u32 %v4303, 4294901760
  %4341 = vmatpush1.msra.mxu0 %v4340
  %4342 = vmatprep.subr.mxu0 0.0
  %v4343 = vand.u32 %v4304, 4294901760
  %4344 = vmatpush1.msra.mxu0 %v4343
  %4345 = vmatprep.subr.mxu0 0.0
  %v4346 = vand.u32 %v4305, 4294901760
  %4347 = vmatpush1.msra.mxu0 %v4346
  %4348 = vmatprep.subr.mxu0 0.0
  %v4349 = vand.u32 %v4306, 4294901760
  %4350 = vmatpush1.msra.mxu0 %v4349
  %4351 = vmatprep.subr.mxu0 0.0
  %v4352 = vand.u32 %v4307, 4294901760
  %4353 = vmatpush1.msra.mxu0 %v4352
  %4354 = vmatprep.subr.mxu0 0.0
  %v4355 = vand.u32 %v4308, 4294901760
  %4356 = vmatpush1.msra.mxu0 %v4355
  %4357 = vmatprep.subr.mxu0 0.0
  %4358 = vmatpush1.msra.mxu0 0.0
  %4359 = vmatprep.subr.mxu0 0.0
  %4360 = vmatpush1.msra.mxu0 0.0
  %4361 = vmatprep.subr.mxu0 0.0
  %4362 = vmatpush1.msra.mxu0 0.0
  %4363 = vmatprep.subr.mxu0 0.0
  %4364 = vmatpush1.msra.mxu0 0.0
  %4365 = vmatprep.subr.mxu0 0.0
  %4366 = vmatpush1.msra.mxu0 0.0
  %4367 = vmatprep.subr.mxu0 0.0
  %4368 = vmatpush1.msra.mxu0 0.0
  %4369 = vmatprep.subr.mxu0 0.0
  %4370 = vmatpush1.msra.mxu0 0.0
  %4371 = vmatprep.subr.mxu0 0.0
  %4372 = vmatpush1.msra.mxu0 0.0
  %4373 = vmatprep.subr.mxu0 0.0
  %4374 = vmatpush1.msra.mxu0 0.0
  %4375 = vmatprep.subr.mxu0 0.0
  %4376 = vmatpush1.msra.mxu0 0.0
  %4377 = vmatprep.subr.mxu0 0.0
  %4378 = vmatpush1.msra.mxu0 0.0
  %4379 = vmatprep.subr.mxu0 0.0
  %4380 = vmatpush1.msra.mxu0 0.0
  %4381 = vmatprep.subr.mxu0 0.0
  %4382 = vmatpush1.msra.mxu0 0.0
  %4383 = vmatprep.subr.mxu0 0.0
  %4384 = vmatpush1.msra.mxu0 0.0
  %4385 = vmatprep.subr.mxu0 0.0
  %4386 = vmatpush1.msra.mxu0 0.0
  %4387 = vmatprep.subr.mxu0 0.0
  %4388 = vmatpush1.msra.mxu0 0.0
  %4389 = vmatprep.mubr.f32.mxu0 0.0
  %v4390 = vand.u32 %v2889, 4294901760
  %v4391 = vsub.f32 %v2889, %v4390
  %v4392 = vand.u32 %v4391, 4294901760
  %v4393 = vsub.f32 %v4391, %v4392
  %v4394 = vand.u32 %v4393, 4294901760
  %4395 = vmatmul.mubr.f32.gmra.mrb[0].mxu0 %v4394
  %v4396 = vpop.f32.mrb[0].mxu0
  %v4397 = vadd.f32 0.0, %v4396
  %v4398 = vpop.f32.mrb[0].mxu0
  %4399 = vmatprep.mubr.f32.mxu0 0.0
  %v4400 = vand.u32 %v2890, 4294901760
  %v4401 = vsub.f32 %v2890, %v4400
  %v4402 = vand.u32 %v4401, 4294901760
  %v4403 = vsub.f32 %v4401, %v4402
  %v4404 = vand.u32 %v4403, 4294901760
  %4405 = vmatmul.mubr.f32.gmra.mrb[0].mxu0 %v4404
  %v4406 = vpop.f32.mrb[0].mxu0
  %v4407 = vadd.f32 0.0, %v4406
  %v4408 = vpop.f32.mrb[0].mxu0
  %4409 = vdwg.mxu0
  %4410 = vmatprep.subr.mxu0 0.0
  %v4411 = vand.u32 %v4293, 4294901760
  %v4412 = vsub.f32 %v4293, %v4411
  %v4413 = vand.u32 %v4412, 4294901760
  %v4414 = vsub.f32 %v4412, %v4413
  %v4415 = vand.u32 %v4414, 4294901760
  %4416 = vmatpush1.msra.mxu0 %v4415
  %4417 = vmatprep.subr.mxu0 0.0
  %v4418 = vand.u32 %v4294, 4294901760
  %v4419 = vsub.f32 %v4294, %v4418
  %v4420 = vand.u32 %v4419, 4294901760
  %v4421 = vsub.f32 %v4419, %v4420
  %v4422 = vand.u32 %v4421, 4294901760
  %4423 = vmatpush1.msra.mxu0 %v4422
  %4424 = vmatprep.subr.mxu0 0.0
  %v4425 = vand.u32 %v4295, 4294901760
  %v4426 = vsub.f32 %v4295, %v4425
  %v4427 = vand.u32 %v4426, 4294901760
  %v4428 = vsub.f32 %v4426, %v4427
  %v4429 = vand.u32 %v4428, 4294901760
  %4430 = vmatpush1.msra.mxu0 %v4429
  %4431 = vmatprep.subr.mxu0 0.0
  %v4432 = vand.u32 %v4296, 4294901760
  %v4433 = vsub.f32 %v4296, %v4432
  %v4434 = vand.u32 %v4433, 4294901760
  %v4435 = vsub.f32 %v4433, %v4434
  %v4436 = vand.u32 %v4435, 4294901760
  %4437 = vmatpush1.msra.mxu0 %v4436
  %4438 = vmatprep.subr.mxu0 0.0
  %v4439 = vand.u32 %v4297, 4294901760
  %v4440 = vsub.f32 %v4297, %v4439
  %v4441 = vand.u32 %v4440, 4294901760
  %v4442 = vsub.f32 %v4440, %v4441
  %v4443 = vand.u32 %v4442, 4294901760
  %4444 = vmatpush1.msra.mxu0 %v4443
  %4445 = vmatprep.subr.mxu0 0.0
  %v4446 = vand.u32 %v4298, 4294901760
  %v4447 = vsub.f32 %v4298, %v4446
  %v4448 = vand.u32 %v4447, 4294901760
  %v4449 = vsub.f32 %v4447, %v4448
  %v4450 = vand.u32 %v4449, 4294901760
  %4451 = vmatpush1.msra.mxu0 %v4450
  %4452 = vmatprep.subr.mxu0 0.0
  %v4453 = vand.u32 %v4299, 4294901760
  %v4454 = vsub.f32 %v4299, %v4453
  %v4455 = vand.u32 %v4454, 4294901760
  %v4456 = vsub.f32 %v4454, %v4455
  %v4457 = vand.u32 %v4456, 4294901760
  %4458 = vmatpush1.msra.mxu0 %v4457
  %4459 = vmatprep.subr.mxu0 0.0
  %v4460 = vand.u32 %v4300, 4294901760
  %v4461 = vsub.f32 %v4300, %v4460
  %v4462 = vand.u32 %v4461, 4294901760
  %v4463 = vsub.f32 %v4461, %v4462
  %v4464 = vand.u32 %v4463, 4294901760
  %4465 = vmatpush1.msra.mxu0 %v4464
  %4466 = vmatprep.subr.mxu0 0.0
  %v4467 = vand.u32 %v4301, 4294901760
  %v4468 = vsub.f32 %v4301, %v4467
  %v4469 = vand.u32 %v4468, 4294901760
  %v4470 = vsub.f32 %v4468, %v4469
  %v4471 = vand.u32 %v4470, 4294901760
  %4472 = vmatpush1.msra.mxu0 %v4471
  %4473 = vmatprep.subr.mxu0 0.0
  %v4474 = vand.u32 %v4302, 4294901760
  %v4475 = vsub.f32 %v4302, %v4474
  %v4476 = vand.u32 %v4475, 4294901760
  %v4477 = vsub.f32 %v4475, %v4476
  %v4478 = vand.u32 %v4477, 4294901760
  %4479 = vmatpush1.msra.mxu0 %v4478
  %4480 = vmatprep.subr.mxu0 0.0
  %v4481 = vand.u32 %v4303, 4294901760
  %v4482 = vsub.f32 %v4303, %v4481
  %v4483 = vand.u32 %v4482, 4294901760
  %v4484 = vsub.f32 %v4482, %v4483
  %v4485 = vand.u32 %v4484, 4294901760
  %4486 = vmatpush1.msra.mxu0 %v4485
  %4487 = vmatprep.subr.mxu0 0.0
  %v4488 = vand.u32 %v4304, 4294901760
  %v4489 = vsub.f32 %v4304, %v4488
  %v4490 = vand.u32 %v4489, 4294901760
  %v4491 = vsub.f32 %v4489, %v4490
  %v4492 = vand.u32 %v4491, 4294901760
  %4493 = vmatpush1.msra.mxu0 %v4492
  %4494 = vmatprep.subr.mxu0 0.0
  %v4495 = vand.u32 %v4305, 4294901760
  %v4496 = vsub.f32 %v4305, %v4495
  %v4497 = vand.u32 %v4496, 4294901760
  %v4498 = vsub.f32 %v4496, %v4497
  %v4499 = vand.u32 %v4498, 4294901760
  %4500 = vmatpush1.msra.mxu0 %v4499
  %4501 = vmatprep.subr.mxu0 0.0
  %v4502 = vand.u32 %v4306, 4294901760
  %v4503 = vsub.f32 %v4306, %v4502
  %v4504 = vand.u32 %v4503, 4294901760
  %v4505 = vsub.f32 %v4503, %v4504
  %v4506 = vand.u32 %v4505, 4294901760
  %4507 = vmatpush1.msra.mxu0 %v4506
  %4508 = vmatprep.subr.mxu0 0.0
  %v4509 = vand.u32 %v4307, 4294901760
  %v4510 = vsub.f32 %v4307, %v4509
  %v4511 = vand.u32 %v4510, 4294901760
  %v4512 = vsub.f32 %v4510, %v4511
  %v4513 = vand.u32 %v4512, 4294901760
  %4514 = vmatpush1.msra.mxu0 %v4513
  %4515 = vmatprep.subr.mxu0 0.0
  %v4516 = vand.u32 %v4308, 4294901760
  %v4517 = vsub.f32 %v4308, %v4516
  %v4518 = vand.u32 %v4517, 4294901760
  %v4519 = vsub.f32 %v4517, %v4518
  %v4520 = vand.u32 %v4519, 4294901760
  %4521 = vmatpush1.msra.mxu0 %v4520
  %4522 = vmatprep.subr.mxu0 0.0
  %4523 = vmatpush1.msra.mxu0 0.0
  %4524 = vmatprep.subr.mxu0 0.0
  %4525 = vmatpush1.msra.mxu0 0.0
  %4526 = vmatprep.subr.mxu0 0.0
  %4527 = vmatpush1.msra.mxu0 0.0
  %4528 = vmatprep.subr.mxu0 0.0
  %4529 = vmatpush1.msra.mxu0 0.0
  %4530 = vmatprep.subr.mxu0 0.0
  %4531 = vmatpush1.msra.mxu0 0.0
  %4532 = vmatprep.subr.mxu0 0.0
  %4533 = vmatpush1.msra.mxu0 0.0
  %4534 = vmatprep.subr.mxu0 0.0
  %4535 = vmatpush1.msra.mxu0 0.0
  %4536 = vmatprep.subr.mxu0 0.0
  %4537 = vmatpush1.msra.mxu0 0.0
  %4538 = vmatprep.subr.mxu0 0.0
  %4539 = vmatpush1.msra.mxu0 0.0
  %4540 = vmatprep.subr.mxu0 0.0
  %4541 = vmatpush1.msra.mxu0 0.0
  %4542 = vmatprep.subr.mxu0 0.0
  %4543 = vmatpush1.msra.mxu0 0.0
  %4544 = vmatprep.subr.mxu0 0.0
  %4545 = vmatpush1.msra.mxu0 0.0
  %4546 = vmatprep.subr.mxu0 0.0
  %4547 = vmatpush1.msra.mxu0 0.0
  %4548 = vmatprep.subr.mxu0 0.0
  %4549 = vmatpush1.msra.mxu0 0.0
  %4550 = vmatprep.subr.mxu0 0.0
  %4551 = vmatpush1.msra.mxu0 0.0
  %4552 = vmatprep.subr.mxu0 0.0
  %4553 = vmatpush1.msra.mxu0 0.0
  %4554 = vmatprep.mubr.f32.mxu0 0.0
  %v4555 = vand.u32 %v2889, 4294901760
  %4556 = vmatmul.mubr.f32.gmra.mrb[0].mxu0 %v4555
  %v4557 = vpop.f32.mrb[0].mxu0
  %v4558 = vadd.f32 %v4397, %v4557
  %v4559 = vpop.f32.mrb[0].mxu0
  %4560 = vmatprep.mubr.f32.mxu0 0.0
  %v4561 = vand.u32 %v2890, 4294901760
  %4562 = vmatmul.mubr.f32.gmra.mrb[0].mxu0 %v4561
  %v4563 = vpop.f32.mrb[0].mxu0
  %v4564 = vadd.f32 %v4407, %v4563
  %v4565 = vpop.f32.mrb[0].mxu0
  %4566 = vdwg.mxu0
  %4567 = vmatprep.subr.mxu0 0.0
  %v4568 = vand.u32 %v4293, 4294901760
  %v4569 = vsub.f32 %v4293, %v4568
  %4570 = vmatpush1.msra.mxu0 %v4569
  %4571 = vmatprep.subr.mxu0 0.0
  %v4572 = vand.u32 %v4294, 4294901760
  %v4573 = vsub.f32 %v4294, %v4572
  %4574 = vmatpush1.msra.mxu0 %v4573
  %4575 = vmatprep.subr.mxu0 0.0
  %v4576 = vand.u32 %v4295, 4294901760
  %v4577 = vsub.f32 %v4295, %v4576
  %4578 = vmatpush1.msra.mxu0 %v4577
  %4579 = vmatprep.subr.mxu0 0.0
  %v4580 = vand.u32 %v4296, 4294901760
  %v4581 = vsub.f32 %v4296, %v4580
  %4582 = vmatpush1.msra.mxu0 %v4581
  %4583 = vmatprep.subr.mxu0 0.0
  %v4584 = vand.u32 %v4297, 4294901760
  %v4585 = vsub.f32 %v4297, %v4584
  %4586 = vmatpush1.msra.mxu0 %v4585
  %4587 = vmatprep.subr.mxu0 0.0
  %v4588 = vand.u32 %v4298, 4294901760
  %v4589 = vsub.f32 %v4298, %v4588
  %4590 = vmatpush1.msra.mxu0 %v4589
  %4591 = vmatprep.subr.mxu0 0.0
  %v4592 = vand.u32 %v4299, 4294901760
  %v4593 = vsub.f32 %v4299, %v4592
  %4594 = vmatpush1.msra.mxu0 %v4593
  %4595 = vmatprep.subr.mxu0 0.0
  %v4596 = vand.u32 %v4300, 4294901760
  %v4597 = vsub.f32 %v4300, %v4596
  %4598 = vmatpush1.msra.mxu0 %v4597
  %4599 = vmatprep.subr.mxu0 0.0
  %v4600 = vand.u32 %v4301, 4294901760
  %v4601 = vsub.f32 %v4301, %v4600
  %4602 = vmatpush1.msra.mxu0 %v4601
  %4603 = vmatprep.subr.mxu0 0.0
  %v4604 = vand.u32 %v4302, 4294901760
  %v4605 = vsub.f32 %v4302, %v4604
  %4606 = vmatpush1.msra.mxu0 %v4605
  %4607 = vmatprep.subr.mxu0 0.0
  %v4608 = vand.u32 %v4303, 4294901760
  %v4609 = vsub.f32 %v4303, %v4608
  %4610 = vmatpush1.msra.mxu0 %v4609
  %4611 = vmatprep.subr.mxu0 0.0
  %v4612 = vand.u32 %v4304, 4294901760
  %v4613 = vsub.f32 %v4304, %v4612
  %4614 = vmatpush1.msra.mxu0 %v4613
  %4615 = vmatprep.subr.mxu0 0.0
  %v4616 = vand.u32 %v4305, 4294901760
  %v4617 = vsub.f32 %v4305, %v4616
  %4618 = vmatpush1.msra.mxu0 %v4617
  %4619 = vmatprep.subr.mxu0 0.0
  %v4620 = vand.u32 %v4306, 4294901760
  %v4621 = vsub.f32 %v4306, %v4620
  %4622 = vmatpush1.msra.mxu0 %v4621
  %4623 = vmatprep.subr.mxu0 0.0
  %v4624 = vand.u32 %v4307, 4294901760
  %v4625 = vsub.f32 %v4307, %v4624
  %4626 = vmatpush1.msra.mxu0 %v4625
  %4627 = vmatprep.subr.mxu0 0.0
  %v4628 = vand.u32 %v4308, 4294901760
  %v4629 = vsub.f32 %v4308, %v4628
  %4630 = vmatpush1.msra.mxu0 %v4629
  %4631 = vmatprep.subr.mxu0 0.0
  %4632 = vmatpush1.msra.mxu0 0.0
  %4633 = vmatprep.subr.mxu0 0.0
  %4634 = vmatpush1.msra.mxu0 0.0
  %4635 = vmatprep.subr.mxu0 0.0
  %4636 = vmatpush1.msra.mxu0 0.0
  %4637 = vmatprep.subr.mxu0 0.0
  %4638 = vmatpush1.msra.mxu0 0.0
  %4639 = vmatprep.subr.mxu0 0.0
  %4640 = vmatpush1.msra.mxu0 0.0
  %4641 = vmatprep.subr.mxu0 0.0
  %4642 = vmatpush1.msra.mxu0 0.0
  %4643 = vmatprep.subr.mxu0 0.0
  %4644 = vmatpush1.msra.mxu0 0.0
  %4645 = vmatprep.subr.mxu0 0.0
  %4646 = vmatpush1.msra.mxu0 0.0
  %4647 = vmatprep.subr.mxu0 0.0
  %4648 = vmatpush1.msra.mxu0 0.0
  %4649 = vmatprep.subr.mxu0 0.0
  %4650 = vmatpush1.msra.mxu0 0.0
  %4651 = vmatprep.subr.mxu0 0.0
  %4652 = vmatpush1.msra.mxu0 0.0
  %4653 = vmatprep.subr.mxu0 0.0
  %4654 = vmatpush1.msra.mxu0 0.0
  %4655 = vmatprep.subr.mxu0 0.0
  %4656 = vmatpush1.msra.mxu0 0.0
  %4657 = vmatprep.subr.mxu0 0.0
  %4658 = vmatpush1.msra.mxu0 0.0
  %4659 = vmatprep.subr.mxu0 0.0
  %4660 = vmatpush1.msra.mxu0 0.0
  %4661 = vmatprep.subr.mxu0 0.0
  %4662 = vmatpush1.msra.mxu0 0.0
  %4663 = vmatprep.mubr.f32.mxu0 0.0
  %v4664 = vand.u32 %v2889, 4294901760
  %v4665 = vsub.f32 %v2889, %v4664
  %4666 = vmatmul.mubr.f32.gmra.mrb[0].mxu0 %v4665
  %v4667 = vpop.f32.mrb[0].mxu0
  %v4668 = vadd.f32 %v4558, %v4667
  %v4669 = vpop.f32.mrb[0].mxu0
  %4670 = vmatprep.mubr.f32.mxu0 0.0
  %v4671 = vand.u32 %v2890, 4294901760
  %v4672 = vsub.f32 %v2890, %v4671
  %4673 = vmatmul.mubr.f32.gmra.mrb[0].mxu0 %v4672
  %v4674 = vpop.f32.mrb[0].mxu0
  %v4675 = vadd.f32 %v4564, %v4674
  %v4676 = vpop.f32.mrb[0].mxu0
  %4677 = vdwg.mxu0
  %4678 = vmatprep.subr.mxu0 0.0
  %v4679 = vand.u32 %v4293, 4294901760
  %4680 = vmatpush1.msra.mxu0 %v4679
  %4681 = vmatprep.subr.mxu0 0.0
  %v4682 = vand.u32 %v4294, 4294901760
  %4683 = vmatpush1.msra.mxu0 %v4682
  %4684 = vmatprep.subr.mxu0 0.0
  %v4685 = vand.u32 %v4295, 4294901760
  %4686 = vmatpush1.msra.mxu0 %v4685
  %4687 = vmatprep.subr.mxu0 0.0
  %v4688 = vand.u32 %v4296, 4294901760
  %4689 = vmatpush1.msra.mxu0 %v4688
  %4690 = vmatprep.subr.mxu0 0.0
  %v4691 = vand.u32 %v4297, 4294901760
  %4692 = vmatpush1.msra.mxu0 %v4691
  %4693 = vmatprep.subr.mxu0 0.0
  %v4694 = vand.u32 %v4298, 4294901760
  %4695 = vmatpush1.msra.mxu0 %v4694
  %4696 = vmatprep.subr.mxu0 0.0
  %v4697 = vand.u32 %v4299, 4294901760
  %4698 = vmatpush1.msra.mxu0 %v4697
  %4699 = vmatprep.subr.mxu0 0.0
  %v4700 = vand.u32 %v4300, 4294901760
  %4701 = vmatpush1.msra.mxu0 %v4700
  %4702 = vmatprep.subr.mxu0 0.0
  %v4703 = vand.u32 %v4301, 4294901760
  %4704 = vmatpush1.msra.mxu0 %v4703
  %4705 = vmatprep.subr.mxu0 0.0
  %v4706 = vand.u32 %v4302, 4294901760
  %4707 = vmatpush1.msra.mxu0 %v4706
  %4708 = vmatprep.subr.mxu0 0.0
  %v4709 = vand.u32 %v4303, 4294901760
  %4710 = vmatpush1.msra.mxu0 %v4709
  %4711 = vmatprep.subr.mxu0 0.0
  %v4712 = vand.u32 %v4304, 4294901760
  %4713 = vmatpush1.msra.mxu0 %v4712
  %4714 = vmatprep.subr.mxu0 0.0
  %v4715 = vand.u32 %v4305, 4294901760
  %4716 = vmatpush1.msra.mxu0 %v4715
  %4717 = vmatprep.subr.mxu0 0.0
  %v4718 = vand.u32 %v4306, 4294901760
  %4719 = vmatpush1.msra.mxu0 %v4718
  %4720 = vmatprep.subr.mxu0 0.0
  %v4721 = vand.u32 %v4307, 4294901760
  %4722 = vmatpush1.msra.mxu0 %v4721
  %4723 = vmatprep.subr.mxu0 0.0
  %v4724 = vand.u32 %v4308, 4294901760
  %4725 = vmatpush1.msra.mxu0 %v4724
  %4726 = vmatprep.subr.mxu0 0.0
  %4727 = vmatpush1.msra.mxu0 0.0
  %4728 = vmatprep.subr.mxu0 0.0
  %4729 = vmatpush1.msra.mxu0 0.0
  %4730 = vmatprep.subr.mxu0 0.0
  %4731 = vmatpush1.msra.mxu0 0.0
  %4732 = vmatprep.subr.mxu0 0.0
  %4733 = vmatpush1.msra.mxu0 0.0
  %4734 = vmatprep.subr.mxu0 0.0
  %4735 = vmatpush1.msra.mxu0 0.0
  %4736 = vmatprep.subr.mxu0 0.0
  %4737 = vmatpush1.msra.mxu0 0.0
  %4738 = vmatprep.subr.mxu0 0.0
  %4739 = vmatpush1.msra.mxu0 0.0
  %4740 = vmatprep.subr.mxu0 0.0
  %4741 = vmatpush1.msra.mxu0 0.0
  %4742 = vmatprep.subr.mxu0 0.0
  %4743 = vmatpush1.msra.mxu0 0.0
  %4744 = vmatprep.subr.mxu0 0.0
  %4745 = vmatpush1.msra.mxu0 0.0
  %4746 = vmatprep.subr.mxu0 0.0
  %4747 = vmatpush1.msra.mxu0 0.0
  %4748 = vmatprep.subr.mxu0 0.0
  %4749 = vmatpush1.msra.mxu0 0.0
  %4750 = vmatprep.subr.mxu0 0.0
  %4751 = vmatpush1.msra.mxu0 0.0
  %4752 = vmatprep.subr.mxu0 0.0
  %4753 = vmatpush1.msra.mxu0 0.0
  %4754 = vmatprep.subr.mxu0 0.0
  %4755 = vmatpush1.msra.mxu0 0.0
  %4756 = vmatprep.subr.mxu0 0.0
  %4757 = vmatpush1.msra.mxu0 0.0
  %4758 = vmatprep.mubr.f32.mxu0 0.0
  %v4759 = vand.u32 %v2889, 4294901760
  %v4760 = vsub.f32 %v2889, %v4759
  %v4761 = vand.u32 %v4760, 4294901760
  %4762 = vmatmul.mubr.f32.gmra.mrb[0].mxu0 %v4761
  %v4763 = vpop.f32.mrb[0].mxu0
  %v4764 = vadd.f32 %v4668, %v4763
  %v4765 = vpop.f32.mrb[0].mxu0
  %4766 = vmatprep.mubr.f32.mxu0 0.0
  %v4767 = vand.u32 %v2890, 4294901760
  %v4768 = vsub.f32 %v2890, %v4767
  %v4769 = vand.u32 %v4768, 4294901760
  %4770 = vmatmul.mubr.f32.gmra.mrb[0].mxu0 %v4769
  %v4771 = vpop.f32.mrb[0].mxu0
  %v4772 = vadd.f32 %v4675, %v4771
  %v4773 = vpop.f32.mrb[0].mxu0
  %4774 = vdwg.mxu0
  %4775 = vmatprep.subr.mxu0 0.0
  %v4776 = vand.u32 %v4293, 4294901760
  %v4777 = vsub.f32 %v4293, %v4776
  %v4778 = vand.u32 %v4777, 4294901760
  %4779 = vmatpush1.msra.mxu0 %v4778
  %4780 = vmatprep.subr.mxu0 0.0
  %v4781 = vand.u32 %v4294, 4294901760
  %v4782 = vsub.f32 %v4294, %v4781
  %v4783 = vand.u32 %v4782, 4294901760
  %4784 = vmatpush1.msra.mxu0 %v4783
  %4785 = vmatprep.subr.mxu0 0.0
  %v4786 = vand.u32 %v4295, 4294901760
  %v4787 = vsub.f32 %v4295, %v4786
  %v4788 = vand.u32 %v4787, 4294901760
  %4789 = vmatpush1.msra.mxu0 %v4788
  %4790 = vmatprep.subr.mxu0 0.0
  %v4791 = vand.u32 %v4296, 4294901760
  %v4792 = vsub.f32 %v4296, %v4791
  %v4793 = vand.u32 %v4792, 4294901760
  %4794 = vmatpush1.msra.mxu0 %v4793
  %4795 = vmatprep.subr.mxu0 0.0
  %v4796 = vand.u32 %v4297, 4294901760
  %v4797 = vsub.f32 %v4297, %v4796
  %v4798 = vand.u32 %v4797, 4294901760
  %4799 = vmatpush1.msra.mxu0 %v4798
  %4800 = vmatprep.subr.mxu0 0.0
  %v4801 = vand.u32 %v4298, 4294901760
  %v4802 = vsub.f32 %v4298, %v4801
  %v4803 = vand.u32 %v4802, 4294901760
  %4804 = vmatpush1.msra.mxu0 %v4803
  %4805 = vmatprep.subr.mxu0 0.0
  %v4806 = vand.u32 %v4299, 4294901760
  %v4807 = vsub.f32 %v4299, %v4806
  %v4808 = vand.u32 %v4807, 4294901760
  %4809 = vmatpush1.msra.mxu0 %v4808
  %4810 = vmatprep.subr.mxu0 0.0
  %v4811 = vand.u32 %v4300, 4294901760
  %v4812 = vsub.f32 %v4300, %v4811
  %v4813 = vand.u32 %v4812, 4294901760
  %4814 = vmatpush1.msra.mxu0 %v4813
  %4815 = vmatprep.subr.mxu0 0.0
  %v4816 = vand.u32 %v4301, 4294901760
  %v4817 = vsub.f32 %v4301, %v4816
  %v4818 = vand.u32 %v4817, 4294901760
  %4819 = vmatpush1.msra.mxu0 %v4818
  %4820 = vmatprep.subr.mxu0 0.0
  %v4821 = vand.u32 %v4302, 4294901760
  %v4822 = vsub.f32 %v4302, %v4821
  %v4823 = vand.u32 %v4822, 4294901760
  %4824 = vmatpush1.msra.mxu0 %v4823
  %4825 = vmatprep.subr.mxu0 0.0
  %v4826 = vand.u32 %v4303, 4294901760
  %v4827 = vsub.f32 %v4303, %v4826
  %v4828 = vand.u32 %v4827, 4294901760
  %4829 = vmatpush1.msra.mxu0 %v4828
  %4830 = vmatprep.subr.mxu0 0.0
  %v4831 = vand.u32 %v4304, 4294901760
  %v4832 = vsub.f32 %v4304, %v4831
  %v4833 = vand.u32 %v4832, 4294901760
  %4834 = vmatpush1.msra.mxu0 %v4833
  %4835 = vmatprep.subr.mxu0 0.0
  %v4836 = vand.u32 %v4305, 4294901760
  %v4837 = vsub.f32 %v4305, %v4836
  %v4838 = vand.u32 %v4837, 4294901760
  %4839 = vmatpush1.msra.mxu0 %v4838
  %4840 = vmatprep.subr.mxu0 0.0
  %v4841 = vand.u32 %v4306, 4294901760
  %v4842 = vsub.f32 %v4306, %v4841
  %v4843 = vand.u32 %v4842, 4294901760
  %4844 = vmatpush1.msra.mxu0 %v4843
  %4845 = vmatprep.subr.mxu0 0.0
  %v4846 = vand.u32 %v4307, 4294901760
  %v4847 = vsub.f32 %v4307, %v4846
  %v4848 = vand.u32 %v4847, 4294901760
  %4849 = vmatpush1.msra.mxu0 %v4848
  %4850 = vmatprep.subr.mxu0 0.0
  %v4851 = vand.u32 %v4308, 4294901760
  %v4852 = vsub.f32 %v4308, %v4851
  %v4853 = vand.u32 %v4852, 4294901760
  %4854 = vmatpush1.msra.mxu0 %v4853
  %4855 = vmatprep.subr.mxu0 0.0
  %4856 = vmatpush1.msra.mxu0 0.0
  %4857 = vmatprep.subr.mxu0 0.0
  %4858 = vmatpush1.msra.mxu0 0.0
  %4859 = vmatprep.subr.mxu0 0.0
  %4860 = vmatpush1.msra.mxu0 0.0
  %4861 = vmatprep.subr.mxu0 0.0
  %4862 = vmatpush1.msra.mxu0 0.0
  %4863 = vmatprep.subr.mxu0 0.0
  %4864 = vmatpush1.msra.mxu0 0.0
  %4865 = vmatprep.subr.mxu0 0.0
  %4866 = vmatpush1.msra.mxu0 0.0
  %4867 = vmatprep.subr.mxu0 0.0
  %4868 = vmatpush1.msra.mxu0 0.0
  %4869 = vmatprep.subr.mxu0 0.0
  %4870 = vmatpush1.msra.mxu0 0.0
  %4871 = vmatprep.subr.mxu0 0.0
  %4872 = vmatpush1.msra.mxu0 0.0
  %4873 = vmatprep.subr.mxu0 0.0
  %4874 = vmatpush1.msra.mxu0 0.0
  %4875 = vmatprep.subr.mxu0 0.0
  %4876 = vmatpush1.msra.mxu0 0.0
  %4877 = vmatprep.subr.mxu0 0.0
  %4878 = vmatpush1.msra.mxu0 0.0
  %4879 = vmatprep.subr.mxu0 0.0
  %4880 = vmatpush1.msra.mxu0 0.0
  %4881 = vmatprep.subr.mxu0 0.0
  %4882 = vmatpush1.msra.mxu0 0.0
  %4883 = vmatprep.subr.mxu0 0.0
  %4884 = vmatpush1.msra.mxu0 0.0
  %4885 = vmatprep.subr.mxu0 0.0
  %4886 = vmatpush1.msra.mxu0 0.0
  %4887 = vmatprep.mubr.f32.mxu0 0.0
  %v4888 = vand.u32 %v2889, 4294901760
  %4889 = vmatmul.mubr.f32.gmra.mrb[0].mxu0 %v4888
  %v4890 = vpop.f32.mrb[0].mxu0
  %v4891 = vadd.f32 %v4764, %v4890
  %v4892 = vpop.f32.mrb[0].mxu0
  %4893 = vmatprep.mubr.f32.mxu0 0.0
  %v4894 = vand.u32 %v2890, 4294901760
  %4895 = vmatmul.mubr.f32.gmra.mrb[0].mxu0 %v4894
  %v4896 = vpop.f32.mrb[0].mxu0
  %v4897 = vadd.f32 %v4772, %v4896
  %v4898 = vpop.f32.mrb[0].mxu0
  %4899 = vdwg.mxu0
  %4900 = vmatprep.subr.mxu0 0.0
  %v4901 = vand.u32 %v4293, 4294901760
  %4902 = vmatpush1.msra.mxu0 %v4901
  %4903 = vmatprep.subr.mxu0 0.0
  %v4904 = vand.u32 %v4294, 4294901760
  %4905 = vmatpush1.msra.mxu0 %v4904
  %4906 = vmatprep.subr.mxu0 0.0
  %v4907 = vand.u32 %v4295, 4294901760
  %4908 = vmatpush1.msra.mxu0 %v4907
  %4909 = vmatprep.subr.mxu0 0.0
  %v4910 = vand.u32 %v4296, 4294901760
  %4911 = vmatpush1.msra.mxu0 %v4910
  %4912 = vmatprep.subr.mxu0 0.0
  %v4913 = vand.u32 %v4297, 4294901760
  %4914 = vmatpush1.msra.mxu0 %v4913
  %4915 = vmatprep.subr.mxu0 0.0
  %v4916 = vand.u32 %v4298, 4294901760
  %4917 = vmatpush1.msra.mxu0 %v4916
  %4918 = vmatprep.subr.mxu0 0.0
  %v4919 = vand.u32 %v4299, 4294901760
  %4920 = vmatpush1.msra.mxu0 %v4919
  %4921 = vmatprep.subr.mxu0 0.0
  %v4922 = vand.u32 %v4300, 4294901760
  %4923 = vmatpush1.msra.mxu0 %v4922
  %4924 = vmatprep.subr.mxu0 0.0
  %v4925 = vand.u32 %v4301, 4294901760
  %4926 = vmatpush1.msra.mxu0 %v4925
  %4927 = vmatprep.subr.mxu0 0.0
  %v4928 = vand.u32 %v4302, 4294901760
  %4929 = vmatpush1.msra.mxu0 %v4928
  %4930 = vmatprep.subr.mxu0 0.0
  %v4931 = vand.u32 %v4303, 4294901760
  %4932 = vmatpush1.msra.mxu0 %v4931
  %4933 = vmatprep.subr.mxu0 0.0
  %v4934 = vand.u32 %v4304, 4294901760
  %4935 = vmatpush1.msra.mxu0 %v4934
  %4936 = vmatprep.subr.mxu0 0.0
  %v4937 = vand.u32 %v4305, 4294901760
  %4938 = vmatpush1.msra.mxu0 %v4937
  %4939 = vmatprep.subr.mxu0 0.0
  %v4940 = vand.u32 %v4306, 4294901760
  %4941 = vmatpush1.msra.mxu0 %v4940
  %4942 = vmatprep.subr.mxu0 0.0
  %v4943 = vand.u32 %v4307, 4294901760
  %4944 = vmatpush1.msra.mxu0 %v4943
  %4945 = vmatprep.subr.mxu0 0.0
  %v4946 = vand.u32 %v4308, 4294901760
  %4947 = vmatpush1.msra.mxu0 %v4946
  %4948 = vmatprep.subr.mxu0 0.0
  %4949 = vmatpush1.msra.mxu0 0.0
  %4950 = vmatprep.subr.mxu0 0.0
  %4951 = vmatpush1.msra.mxu0 0.0
  %4952 = vmatprep.subr.mxu0 0.0
  %4953 = vmatpush1.msra.mxu0 0.0
  %4954 = vmatprep.subr.mxu0 0.0
  %4955 = vmatpush1.msra.mxu0 0.0
  %4956 = vmatprep.subr.mxu0 0.0
  %4957 = vmatpush1.msra.mxu0 0.0
  %4958 = vmatprep.subr.mxu0 0.0
  %4959 = vmatpush1.msra.mxu0 0.0
  %4960 = vmatprep.subr.mxu0 0.0
  %4961 = vmatpush1.msra.mxu0 0.0
  %4962 = vmatprep.subr.mxu0 0.0
  %4963 = vmatpush1.msra.mxu0 0.0
  %4964 = vmatprep.subr.mxu0 0.0
  %4965 = vmatpush1.msra.mxu0 0.0
  %4966 = vmatprep.subr.mxu0 0.0
  %4967 = vmatpush1.msra.mxu0 0.0
  %4968 = vmatprep.subr.mxu0 0.0
  %4969 = vmatpush1.msra.mxu0 0.0
  %4970 = vmatprep.subr.mxu0 0.0
  %4971 = vmatpush1.msra.mxu0 0.0
  %4972 = vmatprep.subr.mxu0 0.0
  %4973 = vmatpush1.msra.mxu0 0.0
  %4974 = vmatprep.subr.mxu0 0.0
  %4975 = vmatpush1.msra.mxu0 0.0
  %4976 = vmatprep.subr.mxu0 0.0
  %4977 = vmatpush1.msra.mxu0 0.0
  %4978 = vmatprep.subr.mxu0 0.0
  %4979 = vmatpush1.msra.mxu0 0.0
  %4980 = vmatprep.mubr.f32.mxu0 0.0
  %v4981 = vand.u32 %v2889, 4294901760
  %4982 = vmatmul.mubr.f32.gmra.mrb[0].mxu0 %v4981
  %v4983 = vpop.f32.mrb[0].mxu0
  %v4984 = vadd.f32 %v4891, %v4983
  %v4985 = vpop.f32.mrb[0].mxu0
  %4986 = vmatprep.mubr.f32.mxu0 0.0
  %v4987 = vand.u32 %v2890, 4294901760
  %4988 = vmatmul.mubr.f32.gmra.mrb[0].mxu0 %v4987
  %v4989 = vpop.f32.mrb[0].mxu0
  %v4990 = vadd.f32 %v4897, %v4989
  %v4991 = vpop.f32.mrb[0].mxu0
  %4992 = vdwg.mxu0
  %v4993 = vadd.f32 %v4283, %v4984
  %v4994 = vadd.f32 %v4289, %v4990
  %v4995 = vadd.f32 %v4993, %v4994
  %v4996 = vrot.slane %v4995, 4
  %v4997 = vadd.f32 %v4995, %v4996
  %v4998 = vrot.slane %v4997, 2
  %v4999 = vadd.f32 %v4997, %v4998
  %v5000 = vrot.slane %v4999, 1
  %v5001 = vadd.f32 %v4999, %v5000
  %v5002 = vmul.f32 %v4993, %v4993
  %v5003 = vmul.f32 %v4994, %v4994
  %v5004 = vadd.f32 %v5002, %v5003
  %v5005 = vrot.slane %v5004, 4
  %v5006 = vadd.f32 %v5004, %v5005
  %v5007 = vrot.slane %v5006, 2
  %v5008 = vadd.f32 %v5006, %v5007
  %v5009 = vrot.slane %v5008, 1
  %v5010 = vadd.f32 %v5008, %v5009
  %v5011 = vsel %vm2172, %v5001, %v5010
  %5012 = vmatprep.subr.mxu0 0.0
  %v5013 = vand.u32 %v2174, 4294901760
  %5014 = vmatpush1.msra.mxu0 %v5013
  %5015 = vmatprep.subr.mxu0 0.0
  %v5016 = vand.u32 %v2175, 4294901760
  %5017 = vmatpush1.msra.mxu0 %v5016
  %5018 = vmatprep.subr.mxu0 0.0
  %v5019 = vand.u32 %v2176, 4294901760
  %5020 = vmatpush1.msra.mxu0 %v5019
  %5021 = vmatprep.subr.mxu0 0.0
  %v5022 = vand.u32 %v2177, 4294901760
  %5023 = vmatpush1.msra.mxu0 %v5022
  %5024 = vmatprep.subr.mxu0 0.0
  %v5025 = vand.u32 %v2178, 4294901760
  %5026 = vmatpush1.msra.mxu0 %v5025
  %5027 = vmatprep.subr.mxu0 0.0
  %v5028 = vand.u32 %v2179, 4294901760
  %5029 = vmatpush1.msra.mxu0 %v5028
  %5030 = vmatprep.subr.mxu0 0.0
  %v5031 = vand.u32 %v2180, 4294901760
  %5032 = vmatpush1.msra.mxu0 %v5031
  %5033 = vmatprep.subr.mxu0 0.0
  %v5034 = vand.u32 %v2181, 4294901760
  %5035 = vmatpush1.msra.mxu0 %v5034
  %5036 = vmatprep.subr.mxu0 0.0
  %v5037 = vand.u32 %v2182, 4294901760
  %5038 = vmatpush1.msra.mxu0 %v5037
  %5039 = vmatprep.subr.mxu0 0.0
  %v5040 = vand.u32 %v2183, 4294901760
  %5041 = vmatpush1.msra.mxu0 %v5040
  %5042 = vmatprep.subr.mxu0 0.0
  %v5043 = vand.u32 %v2184, 4294901760
  %5044 = vmatpush1.msra.mxu0 %v5043
  %5045 = vmatprep.subr.mxu0 0.0
  %v5046 = vand.u32 %v2185, 4294901760
  %5047 = vmatpush1.msra.mxu0 %v5046
  %5048 = vmatprep.subr.mxu0 0.0
  %v5049 = vand.u32 %v2186, 4294901760
  %5050 = vmatpush1.msra.mxu0 %v5049
  %5051 = vmatprep.subr.mxu0 0.0
  %v5052 = vand.u32 %v2187, 4294901760
  %5053 = vmatpush1.msra.mxu0 %v5052
  %5054 = vmatprep.subr.mxu0 0.0
  %v5055 = vand.u32 %v2188, 4294901760
  %5056 = vmatpush1.msra.mxu0 %v5055
  %5057 = vmatprep.subr.mxu0 0.0
  %v5058 = vand.u32 %v2189, 4294901760
  %5059 = vmatpush1.msra.mxu0 %v5058
  %5060 = vmatprep.subr.mxu0 0.0
  %5061 = vmatpush1.msra.mxu0 0.0
  %5062 = vmatprep.subr.mxu0 0.0
  %5063 = vmatpush1.msra.mxu0 0.0
  %5064 = vmatprep.subr.mxu0 0.0
  %5065 = vmatpush1.msra.mxu0 0.0
  %5066 = vmatprep.subr.mxu0 0.0
  %5067 = vmatpush1.msra.mxu0 0.0
  %5068 = vmatprep.subr.mxu0 0.0
  %5069 = vmatpush1.msra.mxu0 0.0
  %5070 = vmatprep.subr.mxu0 0.0
  %5071 = vmatpush1.msra.mxu0 0.0
  %5072 = vmatprep.subr.mxu0 0.0
  %5073 = vmatpush1.msra.mxu0 0.0
  %5074 = vmatprep.subr.mxu0 0.0
  %5075 = vmatpush1.msra.mxu0 0.0
  %5076 = vmatprep.subr.mxu0 0.0
  %5077 = vmatpush1.msra.mxu0 0.0
  %5078 = vmatprep.subr.mxu0 0.0
  %5079 = vmatpush1.msra.mxu0 0.0
  %5080 = vmatprep.subr.mxu0 0.0
  %5081 = vmatpush1.msra.mxu0 0.0
  %5082 = vmatprep.subr.mxu0 0.0
  %5083 = vmatpush1.msra.mxu0 0.0
  %5084 = vmatprep.subr.mxu0 0.0
  %5085 = vmatpush1.msra.mxu0 0.0
  %5086 = vmatprep.subr.mxu0 0.0
  %5087 = vmatpush1.msra.mxu0 0.0
  %5088 = vmatprep.subr.mxu0 0.0
  %5089 = vmatpush1.msra.mxu0 0.0
  %5090 = vmatprep.subr.mxu0 0.0
  %5091 = vmatpush1.msra.mxu0 0.0
  %5092 = vmatprep.mubr.f32.mxu0 0.0
  %v5093 = vand.u32 %v5011, 4294901760
  %v5094 = vsub.f32 %v5011, %v5093
  %v5095 = vand.u32 %v5094, 4294901760
  %v5096 = vsub.f32 %v5094, %v5095
  %v5097 = vand.u32 %v5096, 4294901760
  %5098 = vmatmul.mubr.f32.gmra.mrb[0].mxu0 %v5097
  %v5099 = vpop.f32.mrb[0].mxu0
  %v5100 = vadd.f32 0.0, %v5099
  %v5101 = vpop.f32.mrb[0].mxu0
  %5102 = vdwg.mxu0
  %5103 = vmatprep.subr.mxu0 0.0
  %v5104 = vand.u32 %v2174, 4294901760
  %v5105 = vsub.f32 %v2174, %v5104
  %v5106 = vand.u32 %v5105, 4294901760
  %v5107 = vsub.f32 %v5105, %v5106
  %v5108 = vand.u32 %v5107, 4294901760
  %5109 = vmatpush1.msra.mxu0 %v5108
  %5110 = vmatprep.subr.mxu0 0.0
  %v5111 = vand.u32 %v2175, 4294901760
  %v5112 = vsub.f32 %v2175, %v5111
  %v5113 = vand.u32 %v5112, 4294901760
  %v5114 = vsub.f32 %v5112, %v5113
  %v5115 = vand.u32 %v5114, 4294901760
  %5116 = vmatpush1.msra.mxu0 %v5115
  %5117 = vmatprep.subr.mxu0 0.0
  %v5118 = vand.u32 %v2176, 4294901760
  %v5119 = vsub.f32 %v2176, %v5118
  %v5120 = vand.u32 %v5119, 4294901760
  %v5121 = vsub.f32 %v5119, %v5120
  %v5122 = vand.u32 %v5121, 4294901760
  %5123 = vmatpush1.msra.mxu0 %v5122
  %5124 = vmatprep.subr.mxu0 0.0
  %v5125 = vand.u32 %v2177, 4294901760
  %v5126 = vsub.f32 %v2177, %v5125
  %v5127 = vand.u32 %v5126, 4294901760
  %v5128 = vsub.f32 %v5126, %v5127
  %v5129 = vand.u32 %v5128, 4294901760
  %5130 = vmatpush1.msra.mxu0 %v5129
  %5131 = vmatprep.subr.mxu0 0.0
  %v5132 = vand.u32 %v2178, 4294901760
  %v5133 = vsub.f32 %v2178, %v5132
  %v5134 = vand.u32 %v5133, 4294901760
  %v5135 = vsub.f32 %v5133, %v5134
  %v5136 = vand.u32 %v5135, 4294901760
  %5137 = vmatpush1.msra.mxu0 %v5136
  %5138 = vmatprep.subr.mxu0 0.0
  %v5139 = vand.u32 %v2179, 4294901760
  %v5140 = vsub.f32 %v2179, %v5139
  %v5141 = vand.u32 %v5140, 4294901760
  %v5142 = vsub.f32 %v5140, %v5141
  %v5143 = vand.u32 %v5142, 4294901760
  %5144 = vmatpush1.msra.mxu0 %v5143
  %5145 = vmatprep.subr.mxu0 0.0
  %v5146 = vand.u32 %v2180, 4294901760
  %v5147 = vsub.f32 %v2180, %v5146
  %v5148 = vand.u32 %v5147, 4294901760
  %v5149 = vsub.f32 %v5147, %v5148
  %v5150 = vand.u32 %v5149, 4294901760
  %5151 = vmatpush1.msra.mxu0 %v5150
  %5152 = vmatprep.subr.mxu0 0.0
  %v5153 = vand.u32 %v2181, 4294901760
  %v5154 = vsub.f32 %v2181, %v5153
  %v5155 = vand.u32 %v5154, 4294901760
  %v5156 = vsub.f32 %v5154, %v5155
  %v5157 = vand.u32 %v5156, 4294901760
  %5158 = vmatpush1.msra.mxu0 %v5157
  %5159 = vmatprep.subr.mxu0 0.0
  %v5160 = vand.u32 %v2182, 4294901760
  %v5161 = vsub.f32 %v2182, %v5160
  %v5162 = vand.u32 %v5161, 4294901760
  %v5163 = vsub.f32 %v5161, %v5162
  %v5164 = vand.u32 %v5163, 4294901760
  %5165 = vmatpush1.msra.mxu0 %v5164
  %5166 = vmatprep.subr.mxu0 0.0
  %v5167 = vand.u32 %v2183, 4294901760
  %v5168 = vsub.f32 %v2183, %v5167
  %v5169 = vand.u32 %v5168, 4294901760
  %v5170 = vsub.f32 %v5168, %v5169
  %v5171 = vand.u32 %v5170, 4294901760
  %5172 = vmatpush1.msra.mxu0 %v5171
  %5173 = vmatprep.subr.mxu0 0.0
  %v5174 = vand.u32 %v2184, 4294901760
  %v5175 = vsub.f32 %v2184, %v5174
  %v5176 = vand.u32 %v5175, 4294901760
  %v5177 = vsub.f32 %v5175, %v5176
  %v5178 = vand.u32 %v5177, 4294901760
  %5179 = vmatpush1.msra.mxu0 %v5178
  %5180 = vmatprep.subr.mxu0 0.0
  %v5181 = vand.u32 %v2185, 4294901760
  %v5182 = vsub.f32 %v2185, %v5181
  %v5183 = vand.u32 %v5182, 4294901760
  %v5184 = vsub.f32 %v5182, %v5183
  %v5185 = vand.u32 %v5184, 4294901760
  %5186 = vmatpush1.msra.mxu0 %v5185
  %5187 = vmatprep.subr.mxu0 0.0
  %v5188 = vand.u32 %v2186, 4294901760
  %v5189 = vsub.f32 %v2186, %v5188
  %v5190 = vand.u32 %v5189, 4294901760
  %v5191 = vsub.f32 %v5189, %v5190
  %v5192 = vand.u32 %v5191, 4294901760
  %5193 = vmatpush1.msra.mxu0 %v5192
  %5194 = vmatprep.subr.mxu0 0.0
  %v5195 = vand.u32 %v2187, 4294901760
  %v5196 = vsub.f32 %v2187, %v5195
  %v5197 = vand.u32 %v5196, 4294901760
  %v5198 = vsub.f32 %v5196, %v5197
  %v5199 = vand.u32 %v5198, 4294901760
  %5200 = vmatpush1.msra.mxu0 %v5199
  %5201 = vmatprep.subr.mxu0 0.0
  %v5202 = vand.u32 %v2188, 4294901760
  %v5203 = vsub.f32 %v2188, %v5202
  %v5204 = vand.u32 %v5203, 4294901760
  %v5205 = vsub.f32 %v5203, %v5204
  %v5206 = vand.u32 %v5205, 4294901760
  %5207 = vmatpush1.msra.mxu0 %v5206
  %5208 = vmatprep.subr.mxu0 0.0
  %v5209 = vand.u32 %v2189, 4294901760
  %v5210 = vsub.f32 %v2189, %v5209
  %v5211 = vand.u32 %v5210, 4294901760
  %v5212 = vsub.f32 %v5210, %v5211
  %v5213 = vand.u32 %v5212, 4294901760
  %5214 = vmatpush1.msra.mxu0 %v5213
  %5215 = vmatprep.subr.mxu0 0.0
  %5216 = vmatpush1.msra.mxu0 0.0
  %5217 = vmatprep.subr.mxu0 0.0
  %5218 = vmatpush1.msra.mxu0 0.0
  %5219 = vmatprep.subr.mxu0 0.0
  %5220 = vmatpush1.msra.mxu0 0.0
  %5221 = vmatprep.subr.mxu0 0.0
  %5222 = vmatpush1.msra.mxu0 0.0
  %5223 = vmatprep.subr.mxu0 0.0
  %5224 = vmatpush1.msra.mxu0 0.0
  %5225 = vmatprep.subr.mxu0 0.0
  %5226 = vmatpush1.msra.mxu0 0.0
  %5227 = vmatprep.subr.mxu0 0.0
  %5228 = vmatpush1.msra.mxu0 0.0
  %5229 = vmatprep.subr.mxu0 0.0
  %5230 = vmatpush1.msra.mxu0 0.0
  %5231 = vmatprep.subr.mxu0 0.0
  %5232 = vmatpush1.msra.mxu0 0.0
  %5233 = vmatprep.subr.mxu0 0.0
  %5234 = vmatpush1.msra.mxu0 0.0
  %5235 = vmatprep.subr.mxu0 0.0
  %5236 = vmatpush1.msra.mxu0 0.0
  %5237 = vmatprep.subr.mxu0 0.0
  %5238 = vmatpush1.msra.mxu0 0.0
  %5239 = vmatprep.subr.mxu0 0.0
  %5240 = vmatpush1.msra.mxu0 0.0
  %5241 = vmatprep.subr.mxu0 0.0
  %5242 = vmatpush1.msra.mxu0 0.0
  %5243 = vmatprep.subr.mxu0 0.0
  %5244 = vmatpush1.msra.mxu0 0.0
  %5245 = vmatprep.subr.mxu0 0.0
  %5246 = vmatpush1.msra.mxu0 0.0
  %5247 = vmatprep.mubr.f32.mxu0 0.0
  %v5248 = vand.u32 %v5011, 4294901760
  %5249 = vmatmul.mubr.f32.gmra.mrb[0].mxu0 %v5248
  %v5250 = vpop.f32.mrb[0].mxu0
  %v5251 = vadd.f32 %v5100, %v5250
  %v5252 = vpop.f32.mrb[0].mxu0
  %5253 = vdwg.mxu0
  %5254 = vmatprep.subr.mxu0 0.0
  %v5255 = vand.u32 %v2174, 4294901760
  %v5256 = vsub.f32 %v2174, %v5255
  %5257 = vmatpush1.msra.mxu0 %v5256
  %5258 = vmatprep.subr.mxu0 0.0
  %v5259 = vand.u32 %v2175, 4294901760
  %v5260 = vsub.f32 %v2175, %v5259
  %5261 = vmatpush1.msra.mxu0 %v5260
  %5262 = vmatprep.subr.mxu0 0.0
  %v5263 = vand.u32 %v2176, 4294901760
  %v5264 = vsub.f32 %v2176, %v5263
  %5265 = vmatpush1.msra.mxu0 %v5264
  %5266 = vmatprep.subr.mxu0 0.0
  %v5267 = vand.u32 %v2177, 4294901760
  %v5268 = vsub.f32 %v2177, %v5267
  %5269 = vmatpush1.msra.mxu0 %v5268
  %5270 = vmatprep.subr.mxu0 0.0
  %v5271 = vand.u32 %v2178, 4294901760
  %v5272 = vsub.f32 %v2178, %v5271
  %5273 = vmatpush1.msra.mxu0 %v5272
  %5274 = vmatprep.subr.mxu0 0.0
  %v5275 = vand.u32 %v2179, 4294901760
  %v5276 = vsub.f32 %v2179, %v5275
  %5277 = vmatpush1.msra.mxu0 %v5276
  %5278 = vmatprep.subr.mxu0 0.0
  %v5279 = vand.u32 %v2180, 4294901760
  %v5280 = vsub.f32 %v2180, %v5279
  %5281 = vmatpush1.msra.mxu0 %v5280
  %5282 = vmatprep.subr.mxu0 0.0
  %v5283 = vand.u32 %v2181, 4294901760
  %v5284 = vsub.f32 %v2181, %v5283
  %5285 = vmatpush1.msra.mxu0 %v5284
  %5286 = vmatprep.subr.mxu0 0.0
  %v5287 = vand.u32 %v2182, 4294901760
  %v5288 = vsub.f32 %v2182, %v5287
  %5289 = vmatpush1.msra.mxu0 %v5288
  %5290 = vmatprep.subr.mxu0 0.0
  %v5291 = vand.u32 %v2183, 4294901760
  %v5292 = vsub.f32 %v2183, %v5291
  %5293 = vmatpush1.msra.mxu0 %v5292
  %5294 = vmatprep.subr.mxu0 0.0
  %v5295 = vand.u32 %v2184, 4294901760
  %v5296 = vsub.f32 %v2184, %v5295
  %5297 = vmatpush1.msra.mxu0 %v5296
  %5298 = vmatprep.subr.mxu0 0.0
  %v5299 = vand.u32 %v2185, 4294901760
  %v5300 = vsub.f32 %v2185, %v5299
  %5301 = vmatpush1.msra.mxu0 %v5300
  %5302 = vmatprep.subr.mxu0 0.0
  %v5303 = vand.u32 %v2186, 4294901760
  %v5304 = vsub.f32 %v2186, %v5303
  %5305 = vmatpush1.msra.mxu0 %v5304
  %5306 = vmatprep.subr.mxu0 0.0
  %v5307 = vand.u32 %v2187, 4294901760
  %v5308 = vsub.f32 %v2187, %v5307
  %5309 = vmatpush1.msra.mxu0 %v5308
  %5310 = vmatprep.subr.mxu0 0.0
  %v5311 = vand.u32 %v2188, 4294901760
  %v5312 = vsub.f32 %v2188, %v5311
  %5313 = vmatpush1.msra.mxu0 %v5312
  %5314 = vmatprep.subr.mxu0 0.0
  %v5315 = vand.u32 %v2189, 4294901760
  %v5316 = vsub.f32 %v2189, %v5315
  %5317 = vmatpush1.msra.mxu0 %v5316
  %5318 = vmatprep.subr.mxu0 0.0
  %5319 = vmatpush1.msra.mxu0 0.0
  %5320 = vmatprep.subr.mxu0 0.0
  %5321 = vmatpush1.msra.mxu0 0.0
  %5322 = vmatprep.subr.mxu0 0.0
  %5323 = vmatpush1.msra.mxu0 0.0
  %5324 = vmatprep.subr.mxu0 0.0
  %5325 = vmatpush1.msra.mxu0 0.0
  %5326 = vmatprep.subr.mxu0 0.0
  %5327 = vmatpush1.msra.mxu0 0.0
  %5328 = vmatprep.subr.mxu0 0.0
  %5329 = vmatpush1.msra.mxu0 0.0
  %5330 = vmatprep.subr.mxu0 0.0
  %5331 = vmatpush1.msra.mxu0 0.0
  %5332 = vmatprep.subr.mxu0 0.0
  %5333 = vmatpush1.msra.mxu0 0.0
  %5334 = vmatprep.subr.mxu0 0.0
  %5335 = vmatpush1.msra.mxu0 0.0
  %5336 = vmatprep.subr.mxu0 0.0
  %5337 = vmatpush1.msra.mxu0 0.0
  %5338 = vmatprep.subr.mxu0 0.0
  %5339 = vmatpush1.msra.mxu0 0.0
  %5340 = vmatprep.subr.mxu0 0.0
  %5341 = vmatpush1.msra.mxu0 0.0
  %5342 = vmatprep.subr.mxu0 0.0
  %5343 = vmatpush1.msra.mxu0 0.0
  %5344 = vmatprep.subr.mxu0 0.0
  %5345 = vmatpush1.msra.mxu0 0.0
  %5346 = vmatprep.subr.mxu0 0.0
  %5347 = vmatpush1.msra.mxu0 0.0
  %5348 = vmatprep.subr.mxu0 0.0
  %5349 = vmatpush1.msra.mxu0 0.0
  %5350 = vmatprep.mubr.f32.mxu0 0.0
  %v5351 = vand.u32 %v5011, 4294901760
  %v5352 = vsub.f32 %v5011, %v5351
  %5353 = vmatmul.mubr.f32.gmra.mrb[0].mxu0 %v5352
  %v5354 = vpop.f32.mrb[0].mxu0
  %v5355 = vadd.f32 %v5251, %v5354
  %v5356 = vpop.f32.mrb[0].mxu0
  %5357 = vdwg.mxu0
  %5358 = vmatprep.subr.mxu0 0.0
  %v5359 = vand.u32 %v2174, 4294901760
  %5360 = vmatpush1.msra.mxu0 %v5359
  %5361 = vmatprep.subr.mxu0 0.0
  %v5362 = vand.u32 %v2175, 4294901760
  %5363 = vmatpush1.msra.mxu0 %v5362
  %5364 = vmatprep.subr.mxu0 0.0
  %v5365 = vand.u32 %v2176, 4294901760
  %5366 = vmatpush1.msra.mxu0 %v5365
  %5367 = vmatprep.subr.mxu0 0.0
  %v5368 = vand.u32 %v2177, 4294901760
  %5369 = vmatpush1.msra.mxu0 %v5368
  %5370 = vmatprep.subr.mxu0 0.0
  %v5371 = vand.u32 %v2178, 4294901760
  %5372 = vmatpush1.msra.mxu0 %v5371
  %5373 = vmatprep.subr.mxu0 0.0
  %v5374 = vand.u32 %v2179, 4294901760
  %5375 = vmatpush1.msra.mxu0 %v5374
  %5376 = vmatprep.subr.mxu0 0.0
  %v5377 = vand.u32 %v2180, 4294901760
  %5378 = vmatpush1.msra.mxu0 %v5377
  %5379 = vmatprep.subr.mxu0 0.0
  %v5380 = vand.u32 %v2181, 4294901760
  %5381 = vmatpush1.msra.mxu0 %v5380
  %5382 = vmatprep.subr.mxu0 0.0
  %v5383 = vand.u32 %v2182, 4294901760
  %5384 = vmatpush1.msra.mxu0 %v5383
  %5385 = vmatprep.subr.mxu0 0.0
  %v5386 = vand.u32 %v2183, 4294901760
  %5387 = vmatpush1.msra.mxu0 %v5386
  %5388 = vmatprep.subr.mxu0 0.0
  %v5389 = vand.u32 %v2184, 4294901760
  %5390 = vmatpush1.msra.mxu0 %v5389
  %5391 = vmatprep.subr.mxu0 0.0
  %v5392 = vand.u32 %v2185, 4294901760
  %5393 = vmatpush1.msra.mxu0 %v5392
  %5394 = vmatprep.subr.mxu0 0.0
  %v5395 = vand.u32 %v2186, 4294901760
  %5396 = vmatpush1.msra.mxu0 %v5395
  %5397 = vmatprep.subr.mxu0 0.0
  %v5398 = vand.u32 %v2187, 4294901760
  %5399 = vmatpush1.msra.mxu0 %v5398
  %5400 = vmatprep.subr.mxu0 0.0
  %v5401 = vand.u32 %v2188, 4294901760
  %5402 = vmatpush1.msra.mxu0 %v5401
  %5403 = vmatprep.subr.mxu0 0.0
  %v5404 = vand.u32 %v2189, 4294901760
  %5405 = vmatpush1.msra.mxu0 %v5404
  %5406 = vmatprep.subr.mxu0 0.0
  %5407 = vmatpush1.msra.mxu0 0.0
  %5408 = vmatprep.subr.mxu0 0.0
  %5409 = vmatpush1.msra.mxu0 0.0
  %5410 = vmatprep.subr.mxu0 0.0
  %5411 = vmatpush1.msra.mxu0 0.0
  %5412 = vmatprep.subr.mxu0 0.0
  %5413 = vmatpush1.msra.mxu0 0.0
  %5414 = vmatprep.subr.mxu0 0.0
  %5415 = vmatpush1.msra.mxu0 0.0
  %5416 = vmatprep.subr.mxu0 0.0
  %5417 = vmatpush1.msra.mxu0 0.0
  %5418 = vmatprep.subr.mxu0 0.0
  %5419 = vmatpush1.msra.mxu0 0.0
  %5420 = vmatprep.subr.mxu0 0.0
  %5421 = vmatpush1.msra.mxu0 0.0
  %5422 = vmatprep.subr.mxu0 0.0
  %5423 = vmatpush1.msra.mxu0 0.0
  %5424 = vmatprep.subr.mxu0 0.0
  %5425 = vmatpush1.msra.mxu0 0.0
  %5426 = vmatprep.subr.mxu0 0.0
  %5427 = vmatpush1.msra.mxu0 0.0
  %5428 = vmatprep.subr.mxu0 0.0
  %5429 = vmatpush1.msra.mxu0 0.0
  %5430 = vmatprep.subr.mxu0 0.0
  %5431 = vmatpush1.msra.mxu0 0.0
  %5432 = vmatprep.subr.mxu0 0.0
  %5433 = vmatpush1.msra.mxu0 0.0
  %5434 = vmatprep.subr.mxu0 0.0
  %5435 = vmatpush1.msra.mxu0 0.0
  %5436 = vmatprep.subr.mxu0 0.0
  %5437 = vmatpush1.msra.mxu0 0.0
  %5438 = vmatprep.mubr.f32.mxu0 0.0
  %v5439 = vand.u32 %v5011, 4294901760
  %v5440 = vsub.f32 %v5011, %v5439
  %v5441 = vand.u32 %v5440, 4294901760
  %5442 = vmatmul.mubr.f32.gmra.mrb[0].mxu0 %v5441
  %v5443 = vpop.f32.mrb[0].mxu0
  %v5444 = vadd.f32 %v5355, %v5443
  %v5445 = vpop.f32.mrb[0].mxu0
  %5446 = vdwg.mxu0
  %5447 = vmatprep.subr.mxu0 0.0
  %v5448 = vand.u32 %v2174, 4294901760
  %v5449 = vsub.f32 %v2174, %v5448
  %v5450 = vand.u32 %v5449, 4294901760
  %5451 = vmatpush1.msra.mxu0 %v5450
  %5452 = vmatprep.subr.mxu0 0.0
  %v5453 = vand.u32 %v2175, 4294901760
  %v5454 = vsub.f32 %v2175, %v5453
  %v5455 = vand.u32 %v5454, 4294901760
  %5456 = vmatpush1.msra.mxu0 %v5455
  %5457 = vmatprep.subr.mxu0 0.0
  %v5458 = vand.u32 %v2176, 4294901760
  %v5459 = vsub.f32 %v2176, %v5458
  %v5460 = vand.u32 %v5459, 4294901760
  %5461 = vmatpush1.msra.mxu0 %v5460
  %5462 = vmatprep.subr.mxu0 0.0
  %v5463 = vand.u32 %v2177, 4294901760
  %v5464 = vsub.f32 %v2177, %v5463
  %v5465 = vand.u32 %v5464, 4294901760
  %5466 = vmatpush1.msra.mxu0 %v5465
  %5467 = vmatprep.subr.mxu0 0.0
  %v5468 = vand.u32 %v2178, 4294901760
  %v5469 = vsub.f32 %v2178, %v5468
  %v5470 = vand.u32 %v5469, 4294901760
  %5471 = vmatpush1.msra.mxu0 %v5470
  %5472 = vmatprep.subr.mxu0 0.0
  %v5473 = vand.u32 %v2179, 4294901760
  %v5474 = vsub.f32 %v2179, %v5473
  %v5475 = vand.u32 %v5474, 4294901760
  %5476 = vmatpush1.msra.mxu0 %v5475
  %5477 = vmatprep.subr.mxu0 0.0
  %v5478 = vand.u32 %v2180, 4294901760
  %v5479 = vsub.f32 %v2180, %v5478
  %v5480 = vand.u32 %v5479, 4294901760
  %5481 = vmatpush1.msra.mxu0 %v5480
  %5482 = vmatprep.subr.mxu0 0.0
  %v5483 = vand.u32 %v2181, 4294901760
  %v5484 = vsub.f32 %v2181, %v5483
  %v5485 = vand.u32 %v5484, 4294901760
  %5486 = vmatpush1.msra.mxu0 %v5485
  %5487 = vmatprep.subr.mxu0 0.0
  %v5488 = vand.u32 %v2182, 4294901760
  %v5489 = vsub.f32 %v2182, %v5488
  %v5490 = vand.u32 %v5489, 4294901760
  %5491 = vmatpush1.msra.mxu0 %v5490
  %5492 = vmatprep.subr.mxu0 0.0
  %v5493 = vand.u32 %v2183, 4294901760
  %v5494 = vsub.f32 %v2183, %v5493
  %v5495 = vand.u32 %v5494, 4294901760
  %5496 = vmatpush1.msra.mxu0 %v5495
  %5497 = vmatprep.subr.mxu0 0.0
  %v5498 = vand.u32 %v2184, 4294901760
  %v5499 = vsub.f32 %v2184, %v5498
  %v5500 = vand.u32 %v5499, 4294901760
  %5501 = vmatpush1.msra.mxu0 %v5500
  %5502 = vmatprep.subr.mxu0 0.0
  %v5503 = vand.u32 %v2185, 4294901760
  %v5504 = vsub.f32 %v2185, %v5503
  %v5505 = vand.u32 %v5504, 4294901760
  %5506 = vmatpush1.msra.mxu0 %v5505
  %5507 = vmatprep.subr.mxu0 0.0
  %v5508 = vand.u32 %v2186, 4294901760
  %v5509 = vsub.f32 %v2186, %v5508
  %v5510 = vand.u32 %v5509, 4294901760
  %5511 = vmatpush1.msra.mxu0 %v5510
  %5512 = vmatprep.subr.mxu0 0.0
  %v5513 = vand.u32 %v2187, 4294901760
  %v5514 = vsub.f32 %v2187, %v5513
  %v5515 = vand.u32 %v5514, 4294901760
  %5516 = vmatpush1.msra.mxu0 %v5515
  %5517 = vmatprep.subr.mxu0 0.0
  %v5518 = vand.u32 %v2188, 4294901760
  %v5519 = vsub.f32 %v2188, %v5518
  %v5520 = vand.u32 %v5519, 4294901760
  %5521 = vmatpush1.msra.mxu0 %v5520
  %5522 = vmatprep.subr.mxu0 0.0
  %v5523 = vand.u32 %v2189, 4294901760
  %v5524 = vsub.f32 %v2189, %v5523
  %v5525 = vand.u32 %v5524, 4294901760
  %5526 = vmatpush1.msra.mxu0 %v5525
  %5527 = vmatprep.subr.mxu0 0.0
  %5528 = vmatpush1.msra.mxu0 0.0
  %5529 = vmatprep.subr.mxu0 0.0
  %5530 = vmatpush1.msra.mxu0 0.0
  %5531 = vmatprep.subr.mxu0 0.0
  %5532 = vmatpush1.msra.mxu0 0.0
  %5533 = vmatprep.subr.mxu0 0.0
  %5534 = vmatpush1.msra.mxu0 0.0
  %5535 = vmatprep.subr.mxu0 0.0
  %5536 = vmatpush1.msra.mxu0 0.0
  %5537 = vmatprep.subr.mxu0 0.0
  %5538 = vmatpush1.msra.mxu0 0.0
  %5539 = vmatprep.subr.mxu0 0.0
  %5540 = vmatpush1.msra.mxu0 0.0
  %5541 = vmatprep.subr.mxu0 0.0
  %5542 = vmatpush1.msra.mxu0 0.0
  %5543 = vmatprep.subr.mxu0 0.0
  %5544 = vmatpush1.msra.mxu0 0.0
  %5545 = vmatprep.subr.mxu0 0.0
  %5546 = vmatpush1.msra.mxu0 0.0
  %5547 = vmatprep.subr.mxu0 0.0
  %5548 = vmatpush1.msra.mxu0 0.0
  %5549 = vmatprep.subr.mxu0 0.0
  %5550 = vmatpush1.msra.mxu0 0.0
  %5551 = vmatprep.subr.mxu0 0.0
  %5552 = vmatpush1.msra.mxu0 0.0
  %5553 = vmatprep.subr.mxu0 0.0
  %5554 = vmatpush1.msra.mxu0 0.0
  %5555 = vmatprep.subr.mxu0 0.0
  %5556 = vmatpush1.msra.mxu0 0.0
  %5557 = vmatprep.subr.mxu0 0.0
  %5558 = vmatpush1.msra.mxu0 0.0
  %5559 = vmatprep.mubr.f32.mxu0 0.0
  %v5560 = vand.u32 %v5011, 4294901760
  %5561 = vmatmul.mubr.f32.gmra.mrb[0].mxu0 %v5560
  %v5562 = vpop.f32.mrb[0].mxu0
  %v5563 = vadd.f32 %v5444, %v5562
  %v5564 = vpop.f32.mrb[0].mxu0
  %5565 = vdwg.mxu0
  %5566 = vmatprep.subr.mxu0 0.0
  %v5567 = vand.u32 %v2174, 4294901760
  %5568 = vmatpush1.msra.mxu0 %v5567
  %5569 = vmatprep.subr.mxu0 0.0
  %v5570 = vand.u32 %v2175, 4294901760
  %5571 = vmatpush1.msra.mxu0 %v5570
  %5572 = vmatprep.subr.mxu0 0.0
  %v5573 = vand.u32 %v2176, 4294901760
  %5574 = vmatpush1.msra.mxu0 %v5573
  %5575 = vmatprep.subr.mxu0 0.0
  %v5576 = vand.u32 %v2177, 4294901760
  %5577 = vmatpush1.msra.mxu0 %v5576
  %5578 = vmatprep.subr.mxu0 0.0
  %v5579 = vand.u32 %v2178, 4294901760
  %5580 = vmatpush1.msra.mxu0 %v5579
  %5581 = vmatprep.subr.mxu0 0.0
  %v5582 = vand.u32 %v2179, 4294901760
  %5583 = vmatpush1.msra.mxu0 %v5582
  %5584 = vmatprep.subr.mxu0 0.0
  %v5585 = vand.u32 %v2180, 4294901760
  %5586 = vmatpush1.msra.mxu0 %v5585
  %5587 = vmatprep.subr.mxu0 0.0
  %v5588 = vand.u32 %v2181, 4294901760
  %5589 = vmatpush1.msra.mxu0 %v5588
  %5590 = vmatprep.subr.mxu0 0.0
  %v5591 = vand.u32 %v2182, 4294901760
  %5592 = vmatpush1.msra.mxu0 %v5591
  %5593 = vmatprep.subr.mxu0 0.0
  %v5594 = vand.u32 %v2183, 4294901760
  %5595 = vmatpush1.msra.mxu0 %v5594
  %5596 = vmatprep.subr.mxu0 0.0
  %v5597 = vand.u32 %v2184, 4294901760
  %5598 = vmatpush1.msra.mxu0 %v5597
  %5599 = vmatprep.subr.mxu0 0.0
  %v5600 = vand.u32 %v2185, 4294901760
  %5601 = vmatpush1.msra.mxu0 %v5600
  %5602 = vmatprep.subr.mxu0 0.0
  %v5603 = vand.u32 %v2186, 4294901760
  %5604 = vmatpush1.msra.mxu0 %v5603
  %5605 = vmatprep.subr.mxu0 0.0
  %v5606 = vand.u32 %v2187, 4294901760
  %5607 = vmatpush1.msra.mxu0 %v5606
  %5608 = vmatprep.subr.mxu0 0.0
  %v5609 = vand.u32 %v2188, 4294901760
  %5610 = vmatpush1.msra.mxu0 %v5609
  %5611 = vmatprep.subr.mxu0 0.0
  %v5612 = vand.u32 %v2189, 4294901760
  %5613 = vmatpush1.msra.mxu0 %v5612
  %5614 = vmatprep.subr.mxu0 0.0
  %5615 = vmatpush1.msra.mxu0 0.0
  %5616 = vmatprep.subr.mxu0 0.0
  %5617 = vmatpush1.msra.mxu0 0.0
  %5618 = vmatprep.subr.mxu0 0.0
  %5619 = vmatpush1.msra.mxu0 0.0
  %5620 = vmatprep.subr.mxu0 0.0
  %5621 = vmatpush1.msra.mxu0 0.0
  %5622 = vmatprep.subr.mxu0 0.0
  %5623 = vmatpush1.msra.mxu0 0.0
  %5624 = vmatprep.subr.mxu0 0.0
  %5625 = vmatpush1.msra.mxu0 0.0
  %5626 = vmatprep.subr.mxu0 0.0
  %5627 = vmatpush1.msra.mxu0 0.0
  %5628 = vmatprep.subr.mxu0 0.0
  %5629 = vmatpush1.msra.mxu0 0.0
  %5630 = vmatprep.subr.mxu0 0.0
  %5631 = vmatpush1.msra.mxu0 0.0
  %5632 = vmatprep.subr.mxu0 0.0
  %5633 = vmatpush1.msra.mxu0 0.0
  %5634 = vmatprep.subr.mxu0 0.0
  %5635 = vmatpush1.msra.mxu0 0.0
  %5636 = vmatprep.subr.mxu0 0.0
  %5637 = vmatpush1.msra.mxu0 0.0
  %5638 = vmatprep.subr.mxu0 0.0
  %5639 = vmatpush1.msra.mxu0 0.0
  %5640 = vmatprep.subr.mxu0 0.0
  %5641 = vmatpush1.msra.mxu0 0.0
  %5642 = vmatprep.subr.mxu0 0.0
  %5643 = vmatpush1.msra.mxu0 0.0
  %5644 = vmatprep.subr.mxu0 0.0
  %5645 = vmatpush1.msra.mxu0 0.0
  %5646 = vmatprep.mubr.f32.mxu0 0.0
  %v5647 = vand.u32 %v5011, 4294901760
  %5648 = vmatmul.mubr.f32.gmra.mrb[0].mxu0 %v5647
  %v5649 = vpop.f32.mrb[0].mxu0
  %v5650 = vadd.f32 %v5563, %v5649
  %v5651 = vpop.f32.mrb[0].mxu0
  %5652 = vdwg.mxu0
  %v5653 = vmul.f32 %v5650, %v5650
  %v5655 = vrot.slane %v5653, 7
  %v5657 = vsub.f32 %v5650, %v5655
  %v5658 = vmax.f32 %v5657, 0.0
  %v5659 = vld [vmem:[%s5] sm:$0x1]
  %v5660 = vadd.f32 %v5658, 1e-05
  %v5661 = vrsqrt.pop %v5660
  %v5664 = vunpack.c.l.s4 1966171168
  %v5665 = vunpack.c.0.s8 %v5664
  %v5666 = vlaneseq
  %v5667 = vshrl.u32 %v5666, 7
  %v5668 = vsub.s32 %v5665, %v5667
  %v5669 = vrot.slane %v5661, %v5668
  %v5670 = vcombine.high %v5669, %v5669
  %v5672 = vunpack.c.l.s4 1966171168
  %v5673 = vunpack.c.0.s8 %v5672
  %v5674 = vlaneseq
  %v5675 = vshrl.u32 %v5674, 7
  %v5676 = vsub.s32 %v5673, %v5675
  %v5677 = vrot.slane %v5670, %v5676
  %v5679 = vmul.f32 %v5659, %v5677
  %v5680 = vld [vmem:[%s6] sm:$0x1]
  %v5681 = vmul.f32 %v5650, %v5679
  %v5682 = vsub.f32 %v5680, %v5681
  %v5684 = vlaneseq
  %v5685 = vshrl.u32 %v5684, 7
  %v5686 = vsub.s32 0, %v5685
  %v5687 = vrot.slane %v5679, %v5686
  %v5689 = vmul.f32 %v4993, %v5687
  %v5690 = vmul.f32 %v4994, %v5687
  %v5692 = vlaneseq
  %v5693 = vshrl.u32 %v5692, 7
  %v5694 = vsub.s32 0, %v5693
  %v5695 = vrot.slane %v5682, %v5694
  %v5697 = vadd.f32 %v5689, %v5695
  %v5698 = vadd.f32 %v5690, %v5695
  %v5699 = vadd.f32 %v5697, %v36
  %v5700 = vadd.f32 %v5698, %v37
  %v5701 = vmax.f32 %v5699, 0.0
  %v5702 = vmax.f32 %v5700, 0.0
  %5703 = vst [vmem:[%s8] sm:$0xff] %v5701
  %5704 = vst [vmem:[%s8 + $0x8] sm:$0xff] %v5702
  // Predicated region
  $region34: #{basic_block_forward.1} parent=0 // pred_check
    _
  $region35: #{basic_block_forward.1} parent=0 // pred_check_branch
    %5706 = sbr.rel (0) target = $region37
  $region36: #{basic_block_forward.1} parent=0 // pred_region
    _
  $region37: #{basic_block_forward.1} parent=0 // pred_fallthru
    _
  // Predicated region
  $region38: #{basic_block_forward.1} parent=0 // pred_check
    _
  $region39: #{basic_block_forward.1} parent=0 // pred_check_branch
    %5708 = sbr.rel (0) target = $region41
  $region40: #{basic_block_forward.1} parent=0 // pred_region
    _
  $region41: #{basic_block_forward.1} parent=0 // pred_fallthru
    _

</llo_original>
